<compile_context>
chip_gen: v7x
topology: tpu7x:2x2x1
jax: 0.10.0
libtpu: 0.0.40
codegen_flags: <defaults>
</compile_context>

<pallas_src>
import functools

import jax
import jax.numpy as jnp
from jax import lax
from jax.experimental import pallas as pl
from jax.experimental.pallas import tpu as pltpu


def _round_up(x, m):
    return ((x + m - 1) // m) * m


def _largest_divisor_leq(n, cap):
    cap = max(1, min(n, cap))
    for d in range(cap, 0, -1):
        if n % d == 0:
            return d
    return 1


def _vmem_block_bytes(bc, H, W, C_in, HID):
    """Rough per-grid-step VMEM footprint (double-buffered I/O + scratch)."""
    CP = _round_up(C_in, 128)
    G = 4 * HID
    x_blk = bc * H * W * CP * 2                       # bf16, lane-padded tile
    cprev_blk = bc * H * W * _round_up(HID, 128) * 4  # lane-padded in VMEM
    out_blk = 2 * bc * H * W * HID * 4
    acc = bc * (H + 2) * W * G * 4
    wgt = 3 * CP * 3 * G * 2
    return 2 * (x_blk + cprev_blk + out_blk) + acc + 2 * wgt


def _default_batch_block(B, H, W, C_in, HID):
    """Generation-aware batch folding.

    Single-TensorCore parts (v5e / v6e): fold the whole batch into one grid
    step (each extra grid step costs ~0.35us of fixed pipeline overhead, which
    is comparable to the whole per-step compute at these sizes).
    Megacore parts (v4 / v5p / v7x): keep an even number (>=2) of parallel
    grid steps so the ("parallel",) axis splits across both TensorCores.
    Both are capped by a conservative VMEM budget.
    """
    if B <= 1:
        return 1
    try:
        kind = jax.devices()[0].device_kind.lower()
        single_tc = any(t in kind for t in ("lite", "v5e", "v6e"))
    except Exception:   # default is correct everywhere, just not optimal
        single_tc = False
    budget = 24 * 1024 * 1024     # stay well under the 32 MiB scoped limit

    def fits(bc):
        return _vmem_block_bytes(bc, H, W, C_in, HID) <= budget

    if single_tc:
        for bc in range(B, 0, -1):
            if B % bc == 0 and fits(bc):
                return bc
        return 1
    for bc in range(B // 2, 0, -1):
        if B % bc == 0 and (B // bc) % 2 == 0 and fits(bc):
            return bc
    return 1


def _convlstm_kernel(x_ref, w_ref, b_ref, c_prev_ref, h_out_ref, c_out_ref,
                     acc_ref, *, bc, H, W, HID, C_in, CP, rc_conv, rc_gate):
    """ConvLSTM cell for a block of `bc` batch elements (NHWC, lane-dense).

    x_ref      : (bc, H, W, CP)       bf16 stacked input; only the first C_in
                                      lanes are valid (partial lane block).
    w_ref      : (3, CP, 3*4*HID)     bf16 conv weights, dx taps merged on N.
    b_ref      : (1, 4*HID)           f32 bias.
    c_prev_ref : (bc, H, W, HID)      f32 previous cell state.
    h_out_ref  : (bc, H, W*HID)       f32 new hidden state (lane-dense).
    c_out_ref  : (bc, H, W*HID)       f32 new cell state   (lane-dense).
    acc_ref    : (bc, H+2, W, 4*HID)  f32 scratch; rows 0 and H+1 are discard
                                      bins for the dy row shifts.
    """
    G = 4 * HID

    # ---- hoisted constants (broadcast/iota are not CSE'd: build them once) --
    if CP > C_in:
        ch_mask = lax.broadcasted_iota(jnp.int32, (1, CP), 1) < C_in
    else:
        ch_mask = None
    col = lax.broadcasted_iota(jnp.int32, (1, 1, W, G), 2)
    left_ok = col >= 1           # dx=0 tap: output column 0 has no left input
    right_ok = col <= W - 2      # dx=2 tap: output column W-1 has no right input

    # ---- init accumulator with the broadcast bias (halo rows too, discarded) -
    bias = b_ref[...].reshape(1, 1, 1, G)
    acc_ref[...] = jnp.broadcast_to(bias, (bc, H + 2, W, G))

    # ---- conv phase: 3x3 conv as 3 MXU matmuls per input-row chunk ----------
    # out[h, x] += in[h+dy-1, x+dx-1] @ w[dy, dx]; with a +1 row halo at the
    # top of acc_ref, input rows [r0, r0+rc) for tap dy land at acc rows
    # [r0+2-dy, r0+rc+2-dy), always in range -> no edge clipping needed.
    def conv_body(i, carry):
        r0 = i * rc_conv
        xs = x_ref[:, pl.ds(r0, rc_conv)].reshape(bc * rc_conv * W, CP)
        if ch_mask is not None:
            # Mandatory: the padded lanes of the VMEM tile are garbage and the
            # zero weight tail does not protect against NaN/Inf (NaN*0 = NaN).
            xs = jnp.where(ch_mask, xs, jnp.array(0, xs.dtype))
        for dy in range(3):
            y = jnp.dot(xs, w_ref[dy], preferred_element_type=jnp.float32)
            y = y.reshape(bc, rc_conv, W, 3 * G)
            contrib = y[..., G:2 * G]                                    # dx=1
            contrib = contrib + jnp.where(
                left_ok, pltpu.roll(y[..., 0:G], 1, 2), 0.0)             # dx=0
            contrib = contrib + jnp.where(
                right_ok, pltpu.roll(y[..., 2 * G:3 * G], W - 1, 2), 0.0)  # dx=2
            a0 = r0 + (2 - dy)
            acc_ref[:, pl.ds(a0, rc_conv)] = (
                acc_ref[:, pl.ds(a0, rc_conv)] + contrib)
        return carry

    lax.fori_loop(0, H // rc_conv, conv_body, 0, unroll=True)

    # ---- gate phase, chunked over output rows --------------------------------
    # Gate order matches torch .chunk(4, 1): in, remember, out, cell.
    def gate_body(i, carry):
        r0 = i * rc_gate
        acc = acc_ref[:, pl.ds(r0 + 1, rc_gate)]          # (bc, rc, W, G)
        sig = jax.nn.sigmoid(acc)            # full 128-lane EUP pass, no :96 slice
        in_g = sig[..., 0 * HID:1 * HID]
        rem_g = sig[..., 1 * HID:2 * HID]
        out_g = sig[..., 2 * HID:3 * HID]
        cell_g = jnp.tanh(acc[..., 3 * HID:4 * HID])
        c_prev = c_prev_ref[:, pl.ds(r0, rc_gate)]        # f32 recurrence stays f32
        c_new = rem_g * c_prev + in_g * cell_g
        h_new = out_g * jnp.tanh(c_new)
        # Lane-dense stores: last dim W*HID is a multiple of 128 -> unmasked vst.
        h_out_ref[:, pl.ds(r0, rc_gate)] = h_new.reshape(bc, rc_gate, W * HID)
        c_out_ref[:, pl.ds(r0, rc_gate)] = c_new.reshape(bc, rc_gate, W * HID)
        return carry

    lax.fori_loop(0, H // rc_gate, gate_body, 0, unroll=True)


def init_generative_cell_params(key, input_size, hidden_size):
    """Deterministic synthetic parameters. Conv2d weight in PyTorch OIHW layout."""
    c_in = input_size['error'] + input_size['up_state'] + hidden_size
    k1, k2 = jax.random.split(key)
    w = jax.random.normal(k1, (4 * hidden_size, c_in, 3, 3), jnp.float32) * 0.05
    b = jax.random.normal(k2, (4 * hidden_size,), jnp.float32) * 0.05
    return {'w': w, 'b': b}


def prepare_generative_cell_params(params, hidden_size, *,
                                   compute_dtype=jnp.bfloat16):
    """One-time re-layout of the OIHW conv weight (hoisted out of forward).

    Returns {'wk': (3, CP, 3*4*HID) with index [dy, c_padded, dx*4*HID + o],
             'b' : (1, 4*HID) float32}.
    """
    w = params['w']                                     # (4*HID, C_in, 3, 3)
    G = 4 * hidden_size
    assert w.shape[0] == G and w.shape[2:] == (3, 3)
    C_in = w.shape[1]
    CP = _round_up(C_in, 128)
    wk = jnp.transpose(w, (2, 1, 3, 0)).reshape(3, C_in, 3 * G)   # [dy, c, dx*G+o]
    wk = jnp.pad(wk, ((0, 0), (0, CP - C_in), (0, 0)))            # zero-pad K
    return {'wk': wk.astype(compute_dtype),
            'b': params['b'].reshape(1, G).astype(jnp.float32)}


def _prepare_stacked_input(error, top_down_state, state, hidden_size,
                           error_init_size):
    """Glue identical to the PyTorch forward (all NCHW)."""
    if error is None:
        if error_init_size is None:
            raise ValueError("error_init_size must be given when error is None")
        error = jnp.zeros(error_init_size, jnp.float32)
    model_input = error
    if top_down_state is not None:
        up = jnp.repeat(jnp.repeat(top_down_state, 2, axis=2), 2, axis=3)
        model_input = jnp.concatenate([error, up], axis=1)
    B, _, H, W = model_input.shape
    if state is None:
        zeros = jnp.zeros((B, hidden_size, H, W), jnp.float32)
        state = (zeros, zeros)
    prev_h, prev_c = state
    stacked = jnp.concatenate([model_input, prev_h], axis=1)  # (B, C_in, H, W)
    return stacked, prev_c


def generative_cell_forward(error, top_down_state, state, prepared_params, *,
                            hidden_size, error_init_size=None,
                            batch_block=None, compute_dtype=jnp.bfloat16):
    """GenerativeCell.forward. Inputs/outputs are NCHW (PyTorch convention)."""
    stacked, prev_c = _prepare_stacked_input(
        error, top_down_state, state, hidden_size, error_init_size)
    B, C_in, H, W = stacked.shape
    HID = hidden_size
    G = 4 * HID
    CP = _round_up(C_in, 128)

    wk = prepared_params['wk'].astype(compute_dtype)    # (3, CP, 3*G)
    b = prepared_params['b'].astype(jnp.float32)        # (1, G)
    assert wk.shape == (3, CP, 3 * G)

    # NCHW -> NHWC.  The true C_in channels ship to the kernel un-padded (the
    # 128-lane pad happens only inside the VMEM block and is masked in-kernel),
    # so no extra XLA pad op / HBM round trip.
    # TODO(synk): for full-PredNet use keep the whole layer stack NHWC so these
    # interface transposes (and the channel concats) disappear from the HBM path.
    x = jnp.transpose(stacked, (0, 2, 3, 1)).astype(compute_dtype)    # (B,H,W,C_in)
    c_prev = jnp.transpose(prev_c, (0, 2, 3, 1)).astype(jnp.float32)  # (B,H,W,HID)

    if batch_block is None:
        batch_block = _default_batch_block(B, H, W, C_in, HID)
    bc = batch_block
    assert B % bc == 0, "batch_block must divide the batch size"
    n_steps = B // bc

    # Row chunk sizes: conv targets ~128 matmul M-rows per chunk; gate math
    # uses 8-row chunks when possible so the lane-dense output stores stay
    # sublane-aligned.
    rc_conv = _largest_divisor_leq(H, max(1, 128 // max(1, bc * W)))
    rc_gate = _largest_divisor_leq(H, 8)

    kernel = functools.partial(_convlstm_kernel, bc=bc, H=H, W=W, HID=HID,
                               C_in=C_in, CP=CP, rc_conv=rc_conv,
                               rc_gate=rc_gate)

    flops = 2 * 9 * B * H * W * CP * G            # conv-as-matmul MAC count *2
    transcendentals = 6 * B * H * W * HID         # 4*HID sigmoid + 2*HID tanh / px
    bytes_accessed = (x.size * 2 + c_prev.size * 4 + wk.size * 2 + b.size * 4
                      + 2 * B * H * W * HID * 4)

    h_flat, c_flat = pl.pallas_call(
        kernel,
        out_shape=(jax.ShapeDtypeStruct((B, H, W * HID), jnp.float32),
                   jax.ShapeDtypeStruct((B, H, W * HID), jnp.float32)),
        grid_spec=pltpu.PrefetchScalarGridSpec(
            num_scalar_prefetch=0,
            grid=(n_steps,),
            in_specs=[
                # Lane block CP=128 over a C_in-channel array: one partial
                # block; only C_in channels move HBM->VMEM, tail lanes are
                # garbage and get masked in the kernel.
                pl.BlockSpec((bc, H, W, CP), lambda i: (i, 0, 0, 0)),
                pl.BlockSpec((3, CP, 3 * G), lambda i: (0, 0, 0)),
                pl.BlockSpec((1, G), lambda i: (0, 0)),
                # c_prev keeps HID (= full extent) as the last dim: the gate
                # math runs at HID lanes anyway (see header comment).
                pl.BlockSpec((bc, H, W, HID), lambda i: (i, 0, 0, 0)),
            ],
            out_specs=(
                pl.BlockSpec((bc, H, W * HID), lambda i: (i, 0, 0)),
                pl.BlockSpec((bc, H, W * HID), lambda i: (i, 0, 0)),
            ),
            scratch_shapes=[pltpu.VMEM((bc, H + 2, W, G), jnp.float32)],
        ),
        compiler_params=pltpu.CompilerParams(
            dimension_semantics=("parallel",),
            vmem_limit_bytes=32 * 1024 * 1024),
        cost_estimate=pl.CostEstimate(flops=int(flops),
                                      transcendentals=int(transcendentals),
                                      bytes_accessed=int(bytes_accessed)),
    )(x, wk, b, c_prev)

    # Free flat view back to (B, H, W, HID), then to the NCHW interface.
    hidden = jnp.transpose(h_flat.reshape(B, H, W, HID), (0, 3, 1, 2))
    cell = jnp.transpose(c_flat.reshape(B, H, W, HID), (0, 3, 1, 2))
    return hidden, cell


def generative_cell_reference(error, top_down_state, state, params, *,
                              hidden_size, error_init_size=None):
    """Pure-JAX (XLA) reference mirroring the PyTorch module, for checking."""
    stacked, prev_c = _prepare_stacked_input(
        error, top_down_state, state, hidden_size, error_init_size)
    gates = lax.conv_general_dilated(
        stacked, params['w'], window_strides=(1, 1), padding='SAME',
        dimension_numbers=('NCHW', 'OIHW', 'NCHW'),
        precision=lax.Precision.HIGHEST)
    gates = gates + params['b'][None, :, None, None]
    in_g, rem_g, out_g, cell_g = jnp.split(gates, 4, axis=1)
    in_g, rem_g, out_g = map(jax.nn.sigmoid, (in_g, rem_g, out_g))
    cell_g = jnp.tanh(cell_g)
    cell = rem_g * prev_c + in_g * cell_g
    hidden = out_g * jnp.tanh(cell)
    return hidden, cell


if __name__ == "__main__":
    # Small shapes consistent with the module: a mid PredNet layer where the
    # error has 2*channels and the top-down R state comes from a coarser layer.
    B, H, W = 2, 16, 16
    input_size = {'error': 8, 'up_state': 4}
    hidden_size = 32

    key = jax.random.PRNGKey(0)
    k_err, k_top, k_h, k_c, k_par = jax.random.split(key, 5)

    error = jax.random.normal(k_err, (B, input_size['error'], H, W), jnp.float32)
    top_down_state = jax.random.normal(
        k_top, (B, input_size['up_state'], H // 2, W // 2), jnp.float32)
    prev_hidden = jax.random.normal(k_h, (B, hidden_size, H, W), jnp.float32)
    prev_cell = jax.random.normal(k_c, (B, hidden_size, H, W), jnp.float32)
    state = (prev_hidden, prev_cell)

    raw_params = init_generative_cell_params(k_par, input_size, hidden_size)
    # One-time weight re-layout (hoisted out of the forward pass).
    prepared = prepare_generative_cell_params(raw_params, hidden_size)

    fwd = jax.jit(functools.partial(generative_cell_forward,
                                    hidden_size=hidden_size))
    hidden, cell = fwd(error, top_down_state, state, prepared)
    jax.block_until_ready((hidden, cell))

    ref_hidden, ref_cell = generative_cell_reference(
        error, top_down_state, state, raw_params, hidden_size=hidden_size)
    jax.block_until_ready((ref_hidden, ref_cell))

    assert hidden.shape == (B, hidden_size, H, W)
    assert cell.shape == (B, hidden_size, H, W)
    # bf16 MXU operands with f32 accumulation: worst-case abs error ~1e-2.
    assert jnp.allclose(hidden, ref_hidden, atol=2e-2, rtol=2e-2), \
        float(jnp.max(jnp.abs(hidden - ref_hidden)))
    assert jnp.allclose(cell, ref_cell, atol=2e-2, rtol=2e-2), \
        float(jnp.max(jnp.abs(cell - ref_cell)))

    print("KERNEL_OK")
</pallas_src>

<mosaic_0001>
module attributes {stable_mosaic.version = 11 : i64} {
  func.func @_convlstm_kernel(%arg0: i32, %arg1: memref<1x16x16x128xbf16, #tpu.memory_space<vmem>>, %arg2: memref<3x128x384xbf16, #tpu.memory_space<vmem>>, %arg3: memref<1x128xf32, #tpu.memory_space<vmem>>, %arg4: memref<1x16x16x32xf32, #tpu.memory_space<vmem>>, %arg5: memref<1x16x512xf32, #tpu.memory_space<vmem>>, %arg6: memref<1x16x512xf32, #tpu.memory_space<vmem>>, %arg7: memref<1x18x16x128xf32, #tpu.memory_space<vmem>>) attributes {dimension_semantics = [#tpu.dimension_semantics<parallel>], iteration_bounds = array<i64: 2>, scalar_prefetch = 0 : i64, scratch_operands = 1 : i64, tpu.core_type = #tpu.core_type<tc>, window_params = [{transform_indices = @transform_0, window_bounds = array<i64: 1, 16, 16, 128>}, {pipeline_mode = #tpu.pipeline_mode<synchronous>, transform_indices = @transform_1, window_bounds = array<i64: 3, 128, 384>}, {pipeline_mode = #tpu.pipeline_mode<synchronous>, transform_indices = @transform_2, window_bounds = array<i64: 1, 128>}, {transform_indices = @transform_3, window_bounds = array<i64: 1, 16, 16, 32>}, {transform_indices = @transform_4, window_bounds = array<i64: 1, 16, 512>}, {transform_indices = @transform_5, window_bounds = array<i64: 1, 16, 512>}]} {
    %0 = tpu.iota {dimensions = array<i32: 1>} : vector<1x128xi32>
    %c44_i32 = arith.constant 44 : i32
    %1 = vector.broadcast %c44_i32 : i32 to vector<1x128xi32>
    %2 = arith.cmpi slt, %0, %1 : vector<1x128xi32>
    %3 = tpu.iota {dimensions = array<i32: 2>} : vector<1x1x16x128xi32>
    %c1_i32 = arith.constant 1 : i32
    %4 = vector.broadcast %c1_i32 : i32 to vector<1x1x16x128xi32>
    %5 = arith.cmpi sge, %3, %4 : vector<1x1x16x128xi32>
    %c14_i32 = arith.constant 14 : i32
    %6 = vector.broadcast %c14_i32 : i32 to vector<1x1x16x128xi32>
    %7 = arith.cmpi sle, %3, %6 : vector<1x1x16x128xi32>
    %c0 = arith.constant 0 : index
    %c0_0 = arith.constant 0 : index
    %8 = vector.load %arg3[%c0, %c0_0] : memref<1x128xf32, #tpu.memory_space<vmem>>, vector<1x128xf32>
    %9 = vector.shape_cast %8 : vector<1x128xf32> to vector<1x1x1x128xf32>
    %10 = vector.shape_cast %9 : vector<1x1x1x128xf32> to vector<1x1x1x128xf32>
    %11 = vector.broadcast %10 : vector<1x1x1x128xf32> to vector<1x18x16x128xf32>
    %c0_1 = arith.constant 0 : index
    %c0_2 = arith.constant 0 : index
    %c0_3 = arith.constant 0 : index
    %c0_4 = arith.constant 0 : index
    %12 = vector.load %arg7[%c0_1, %c0_2, %c0_3, %c0_4] : memref<1x18x16x128xf32, #tpu.memory_space<vmem>>, vector<1x18x16x128xf32>
    tpu.vector_store %arg7[%c0_1, %c0_2, %c0_3, %c0_4], %11 {strides = array<i32>} : memref<1x18x16x128xf32, #tpu.memory_space<vmem>>, vector<1x18x16x128xf32>,
    %c0_i32 = arith.constant 0 : i32
    %c8_i32 = arith.constant 8 : i32
    %13 = arith.muli %c0_i32, %c8_i32 : i32
    %c0_5 = arith.constant 0 : index
    %14 = arith.index_cast %13 : i32 to index
    %c0_6 = arith.constant 0 : index
    %c0_7 = arith.constant 0 : index
    %15 = vector.load %arg1[%c0_5, %14, %c0_6, %c0_7] : memref<1x16x16x128xbf16, #tpu.memory_space<vmem>>, vector<1x8x16x128xbf16>
    %16 = vector.shape_cast %15 : vector<1x8x16x128xbf16> to vector<128x128xbf16>
    %cst = arith.constant 0.000000e+00 : bf16
    %17 = vector.shape_cast %2 : vector<1x128xi1> to vector<1x128xi1>
    %18 = vector.broadcast %17 : vector<1x128xi1> to vector<128x128xi1>
    %19 = vector.broadcast %cst : bf16 to vector<128x128xbf16>
    %20 = arith.select %18, %16, %19 : vector<128x128xi1>, vector<128x128xbf16>
    %c0_8 = arith.constant 0 : index
    %c0_9 = arith.constant 0 : index
    %c0_10 = arith.constant 0 : index
    %21 = vector.load %arg2[%c0_8, %c0_9, %c0_10] : memref<3x128x384xbf16, #tpu.memory_space<vmem>>, vector<1x128x384xbf16>
    %22 = vector.shape_cast %21 : vector<1x128x384xbf16> to vector<128x384xbf16>
    %cst_11 = arith.constant dense<0.000000e+00> : vector<128x384xf32>
    %23 = tpu.matmul %20, %22, %cst_11 {dimension_numbers = #tpu.dot_dimension_numbers<[1], [0], [0], [1], [0, 0, 1, 1], [], []>} : vector<128x128xbf16>, vector<128x384xbf16>, vector<128x384xf32> -> vector<128x384xf32>
    %24 = vector.shape_cast %23 : vector<128x384xf32> to vector<1x8x16x384xf32>
    %25 = vector.extract_strided_slice %24 {offsets = [0, 0, 0, 128], sizes = [1, 8, 16, 128], strides = [1, 1, 1, 1]} : vector<1x8x16x384xf32> to vector<1x8x16x128xf32>
    %26 = vector.extract_strided_slice %24 {offsets = [0, 0, 0, 0], sizes = [1, 8, 16, 128], strides = [1, 1, 1, 1]} : vector<1x8x16x384xf32> to vector<1x8x16x128xf32>
    %c1_i32_12 = arith.constant 1 : i32
    %27 = tpu.dynamic_rotate %26 by %c1_i32_12 dim 2 : vector<1x8x16x128xf32>, i32 -> vector<1x8x16x128xf32>
    %cst_13 = arith.constant 0.000000e+00 : f32
    %28 = vector.shape_cast %5 : vector<1x1x16x128xi1> to vector<1x1x16x128xi1>
    %29 = vector.broadcast %28 : vector<1x1x16x128xi1> to vector<1x8x16x128xi1>
    %30 = vector.broadcast %cst_13 : f32 to vector<1x8x16x128xf32>
    %31 = arith.select %29, %27, %30 : vector<1x8x16x128xi1>, vector<1x8x16x128xf32>
    %32 = arith.addf %25, %31 : vector<1x8x16x128xf32>
    %33 = vector.extract_strided_slice %24 {offsets = [0, 0, 0, 256], sizes = [1, 8, 16, 128], strides = [1, 1, 1, 1]} : vector<1x8x16x384xf32> to vector<1x8x16x128xf32>
    %c15_i32 = arith.constant 15 : i32
    %34 = tpu.dynamic_rotate %33 by %c15_i32 dim 2 : vector<1x8x16x128xf32>, i32 -> vector<1x8x16x128xf32>
    %cst_14 = arith.constant 0.000000e+00 : f32
    %35 = vector.shape_cast %7 : vector<1x1x16x128xi1> to vector<1x1x16x128xi1>
    %36 = vector.broadcast %35 : vector<1x1x16x128xi1> to vector<1x8x16x128xi1>
    %37 = vector.broadcast %cst_14 : f32 to vector<1x8x16x128xf32>
    %38 = arith.select %36, %34, %37 : vector<1x8x16x128xi1>, vector<1x8x16x128xf32>
    %39 = arith.addf %32, %38 : vector<1x8x16x128xf32>
    %c2_i32 = arith.constant 2 : i32
    %40 = arith.addi %13, %c2_i32 : i32
    %c0_15 = arith.constant 0 : index
    %41 = arith.index_cast %40 : i32 to index
    %c0_16 = arith.constant 0 : index
    %c0_17 = arith.constant 0 : index
    %42 = vector.load %arg7[%c0_15, %41, %c0_16, %c0_17] : memref<1x18x16x128xf32, #tpu.memory_space<vmem>>, vector<1x8x16x128xf32>
    %43 = arith.addf %42, %39 : vector<1x8x16x128xf32>
    %c0_18 = arith.constant 0 : index
    %44 = arith.index_cast %40 : i32 to index
    %c0_19 = arith.constant 0 : index
    %c0_20 = arith.constant 0 : index
    %45 = vector.load %arg7[%c0_18, %44, %c0_19, %c0_20] : memref<1x18x16x128xf32, #tpu.memory_space<vmem>>, vector<1x8x16x128xf32>
    tpu.vector_store %arg7[%c0_18, %44, %c0_19, %c0_20], %43 {strides = array<i32>} : memref<1x18x16x128xf32, #tpu.memory_space<vmem>>, vector<1x8x16x128xf32>,
    %c1 = arith.constant 1 : index
    %c0_21 = arith.constant 0 : index
    %c0_22 = arith.constant 0 : index
    %46 = vector.load %arg2[%c1, %c0_21, %c0_22] : memref<3x128x384xbf16, #tpu.memory_space<vmem>>, vector<1x128x384xbf16>
    %47 = vector.shape_cast %46 : vector<1x128x384xbf16> to vector<128x384xbf16>
    %cst_23 = arith.constant dense<0.000000e+00> : vector<128x384xf32>
    %48 = tpu.matmul %20, %47, %cst_23 {dimension_numbers = #tpu.dot_dimension_numbers<[1], [0], [0], [1], [0, 0, 1, 1], [], []>} : vector<128x128xbf16>, vector<128x384xbf16>, vector<128x384xf32> -> vector<128x384xf32>
    %49 = vector.shape_cast %48 : vector<128x384xf32> to vector<1x8x16x384xf32>
    %50 = vector.extract_strided_slice %49 {offsets = [0, 0, 0, 128], sizes = [1, 8, 16, 128], strides = [1, 1, 1, 1]} : vector<1x8x16x384xf32> to vector<1x8x16x128xf32>
    %51 = vector.extract_strided_slice %49 {offsets = [0, 0, 0, 0], sizes = [1, 8, 16, 128], strides = [1, 1, 1, 1]} : vector<1x8x16x384xf32> to vector<1x8x16x128xf32>
    %c1_i32_24 = arith.constant 1 : i32
    %52 = tpu.dynamic_rotate %51 by %c1_i32_24 dim 2 : vector<1x8x16x128xf32>, i32 -> vector<1x8x16x128xf32>
    %cst_25 = arith.constant 0.000000e+00 : f32
    %53 = vector.shape_cast %5 : vector<1x1x16x128xi1> to vector<1x1x16x128xi1>
    %54 = vector.broadcast %53 : vector<1x1x16x128xi1> to vector<1x8x16x128xi1>
    %55 = vector.broadcast %cst_25 : f32 to vector<1x8x16x128xf32>
    %56 = arith.select %54, %52, %55 : vector<1x8x16x128xi1>, vector<1x8x16x128xf32>
    %57 = arith.addf %50, %56 : vector<1x8x16x128xf32>
    %58 = vector.extract_strided_slice %49 {offsets = [0, 0, 0, 256], sizes = [1, 8, 16, 128], strides = [1, 1, 1, 1]} : vector<1x8x16x384xf32> to vector<1x8x16x128xf32>
    %c15_i32_26 = arith.constant 15 : i32
    %59 = tpu.dynamic_rotate %58 by %c15_i32_26 dim 2 : vector<1x8x16x128xf32>, i32 -> vector<1x8x16x128xf32>
    %cst_27 = arith.constant 0.000000e+00 : f32
    %60 = vector.shape_cast %7 : vector<1x1x16x128xi1> to vector<1x1x16x128xi1>
    %61 = vector.broadcast %60 : vector<1x1x16x128xi1> to vector<1x8x16x128xi1>
    %62 = vector.broadcast %cst_27 : f32 to vector<1x8x16x128xf32>
    %63 = arith.select %61, %59, %62 : vector<1x8x16x128xi1>, vector<1x8x16x128xf32>
    %64 = arith.addf %57, %63 : vector<1x8x16x128xf32>
    %c1_i32_28 = arith.constant 1 : i32
    %65 = arith.addi %13, %c1_i32_28 : i32
    %c0_29 = arith.constant 0 : index
    %66 = arith.index_cast %65 : i32 to index
    %c0_30 = arith.constant 0 : index
    %c0_31 = arith.constant 0 : index
    %67 = vector.load %arg7[%c0_29, %66, %c0_30, %c0_31] : memref<1x18x16x128xf32, #tpu.memory_space<vmem>>, vector<1x8x16x128xf32>
    %68 = arith.addf %67, %64 : vector<1x8x16x128xf32>
    %c0_32 = arith.constant 0 : index
    %69 = arith.index_cast %65 : i32 to index
    %c0_33 = arith.constant 0 : index
    %c0_34 = arith.constant 0 : index
    %70 = vector.load %arg7[%c0_32, %69, %c0_33, %c0_34] : memref<1x18x16x128xf32, #tpu.memory_space<vmem>>, vector<1x8x16x128xf32>
    tpu.vector_store %arg7[%c0_32, %69, %c0_33, %c0_34], %68 {strides = array<i32>} : memref<1x18x16x128xf32, #tpu.memory_space<vmem>>, vector<1x8x16x128xf32>,
    %c2 = arith.constant 2 : index
    %c0_35 = arith.constant 0 : index
    %c0_36 = arith.constant 0 : index
    %71 = vector.load %arg2[%c2, %c0_35, %c0_36] : memref<3x128x384xbf16, #tpu.memory_space<vmem>>, vector<1x128x384xbf16>
    %72 = vector.shape_cast %71 : vector<1x128x384xbf16> to vector<128x384xbf16>
    %cst_37 = arith.constant dense<0.000000e+00> : vector<128x384xf32>
    %73 = tpu.matmul %20, %72, %cst_37 {dimension_numbers = #tpu.dot_dimension_numbers<[1], [0], [0], [1], [0, 0, 1, 1], [], []>} : vector<128x128xbf16>, vector<128x384xbf16>, vector<128x384xf32> -> vector<128x384xf32>
    %74 = vector.shape_cast %73 : vector<128x384xf32> to vector<1x8x16x384xf32>
    %75 = vector.extract_strided_slice %74 {offsets = [0, 0, 0, 128], sizes = [1, 8, 16, 128], strides = [1, 1, 1, 1]} : vector<1x8x16x384xf32> to vector<1x8x16x128xf32>
    %76 = vector.extract_strided_slice %74 {offsets = [0, 0, 0, 0], sizes = [1, 8, 16, 128], strides = [1, 1, 1, 1]} : vector<1x8x16x384xf32> to vector<1x8x16x128xf32>
    %c1_i32_38 = arith.constant 1 : i32
    %77 = tpu.dynamic_rotate %76 by %c1_i32_38 dim 2 : vector<1x8x16x128xf32>, i32 -> vector<1x8x16x128xf32>
    %cst_39 = arith.constant 0.000000e+00 : f32
    %78 = vector.shape_cast %5 : vector<1x1x16x128xi1> to vector<1x1x16x128xi1>
    %79 = vector.broadcast %78 : vector<1x1x16x128xi1> to vector<1x8x16x128xi1>
    %80 = vector.broadcast %cst_39 : f32 to vector<1x8x16x128xf32>
    %81 = arith.select %79, %77, %80 : vector<1x8x16x128xi1>, vector<1x8x16x128xf32>
    %82 = arith.addf %75, %81 : vector<1x8x16x128xf32>
    %83 = vector.extract_strided_slice %74 {offsets = [0, 0, 0, 256], sizes = [1, 8, 16, 128], strides = [1, 1, 1, 1]} : vector<1x8x16x384xf32> to vector<1x8x16x128xf32>
    %c15_i32_40 = arith.constant 15 : i32
    %84 = tpu.dynamic_rotate %83 by %c15_i32_40 dim 2 : vector<1x8x16x128xf32>, i32 -> vector<1x8x16x128xf32>
    %cst_41 = arith.constant 0.000000e+00 : f32
    %85 = vector.shape_cast %7 : vector<1x1x16x128xi1> to vector<1x1x16x128xi1>
    %86 = vector.broadcast %85 : vector<1x1x16x128xi1> to vector<1x8x16x128xi1>
    %87 = vector.broadcast %cst_41 : f32 to vector<1x8x16x128xf32>
    %88 = arith.select %86, %84, %87 : vector<1x8x16x128xi1>, vector<1x8x16x128xf32>
    %89 = arith.addf %82, %88 : vector<1x8x16x128xf32>
    %c0_i32_42 = arith.constant 0 : i32
    %90 = arith.addi %13, %c0_i32_42 : i32
    %c0_43 = arith.constant 0 : index
    %91 = arith.index_cast %90 : i32 to index
    %c0_44 = arith.constant 0 : index
    %c0_45 = arith.constant 0 : index
    %92 = vector.load %arg7[%c0_43, %91, %c0_44, %c0_45] : memref<1x18x16x128xf32, #tpu.memory_space<vmem>>, vector<1x8x16x128xf32>
    %93 = arith.addf %92, %89 : vector<1x8x16x128xf32>
    %c0_46 = arith.constant 0 : index
    %94 = arith.index_cast %90 : i32 to index
    %c0_47 = arith.constant 0 : index
    %c0_48 = arith.constant 0 : index
    %95 = vector.load %arg7[%c0_46, %94, %c0_47, %c0_48] : memref<1x18x16x128xf32, #tpu.memory_space<vmem>>, vector<1x8x16x128xf32>
    tpu.vector_store %arg7[%c0_46, %94, %c0_47, %c0_48], %93 {strides = array<i32>} : memref<1x18x16x128xf32, #tpu.memory_space<vmem>>, vector<1x8x16x128xf32>,
    %c1_i32_49 = arith.constant 1 : i32
    %c8_i32_50 = arith.constant 8 : i32
    %96 = arith.muli %c1_i32_49, %c8_i32_50 : i32
    %c0_51 = arith.constant 0 : index
    %97 = arith.index_cast %96 : i32 to index
    %c0_52 = arith.constant 0 : index
    %c0_53 = arith.constant 0 : index
    %98 = vector.load %arg1[%c0_51, %97, %c0_52, %c0_53] : memref<1x16x16x128xbf16, #tpu.memory_space<vmem>>, vector<1x8x16x128xbf16>
    %99 = vector.shape_cast %98 : vector<1x8x16x128xbf16> to vector<128x128xbf16>
    %cst_54 = arith.constant 0.000000e+00 : bf16
    %100 = vector.shape_cast %2 : vector<1x128xi1> to vector<1x128xi1>
    %101 = vector.broadcast %100 : vector<1x128xi1> to vector<128x128xi1>
    %102 = vector.broadcast %cst_54 : bf16 to vector<128x128xbf16>
    %103 = arith.select %101, %99, %102 : vector<128x128xi1>, vector<128x128xbf16>
    %c0_55 = arith.constant 0 : index
    %c0_56 = arith.constant 0 : index
    %c0_57 = arith.constant 0 : index
    %104 = vector.load %arg2[%c0_55, %c0_56, %c0_57] : memref<3x128x384xbf16, #tpu.memory_space<vmem>>, vector<1x128x384xbf16>
    %105 = vector.shape_cast %104 : vector<1x128x384xbf16> to vector<128x384xbf16>
    %cst_58 = arith.constant dense<0.000000e+00> : vector<128x384xf32>
    %106 = tpu.matmul %103, %105, %cst_58 {dimension_numbers = #tpu.dot_dimension_numbers<[1], [0], [0], [1], [0, 0, 1, 1], [], []>} : vector<128x128xbf16>, vector<128x384xbf16>, vector<128x384xf32> -> vector<128x384xf32>
    %107 = vector.shape_cast %106 : vector<128x384xf32> to vector<1x8x16x384xf32>
    %108 = vector.extract_strided_slice %107 {offsets = [0, 0, 0, 128], sizes = [1, 8, 16, 128], strides = [1, 1, 1, 1]} : vector<1x8x16x384xf32> to vector<1x8x16x128xf32>
    %109 = vector.extract_strided_slice %107 {offsets = [0, 0, 0, 0], sizes = [1, 8, 16, 128], strides = [1, 1, 1, 1]} : vector<1x8x16x384xf32> to vector<1x8x16x128xf32>
    %c1_i32_59 = arith.constant 1 : i32
    %110 = tpu.dynamic_rotate %109 by %c1_i32_59 dim 2 : vector<1x8x16x128xf32>, i32 -> vector<1x8x16x128xf32>
    %cst_60 = arith.constant 0.000000e+00 : f32
    %111 = vector.shape_cast %5 : vector<1x1x16x128xi1> to vector<1x1x16x128xi1>
    %112 = vector.broadcast %111 : vector<1x1x16x128xi1> to vector<1x8x16x128xi1>
    %113 = vector.broadcast %cst_60 : f32 to vector<1x8x16x128xf32>
    %114 = arith.select %112, %110, %113 : vector<1x8x16x128xi1>, vector<1x8x16x128xf32>
    %115 = arith.addf %108, %114 : vector<1x8x16x128xf32>
    %116 = vector.extract_strided_slice %107 {offsets = [0, 0, 0, 256], sizes = [1, 8, 16, 128], strides = [1, 1, 1, 1]} : vector<1x8x16x384xf32> to vector<1x8x16x128xf32>
    %c15_i32_61 = arith.constant 15 : i32
    %117 = tpu.dynamic_rotate %116 by %c15_i32_61 dim 2 : vector<1x8x16x128xf32>, i32 -> vector<1x8x16x128xf32>
    %cst_62 = arith.constant 0.000000e+00 : f32
    %118 = vector.shape_cast %7 : vector<1x1x16x128xi1> to vector<1x1x16x128xi1>
    %119 = vector.broadcast %118 : vector<1x1x16x128xi1> to vector<1x8x16x128xi1>
    %120 = vector.broadcast %cst_62 : f32 to vector<1x8x16x128xf32>
    %121 = arith.select %119, %117, %120 : vector<1x8x16x128xi1>, vector<1x8x16x128xf32>
    %122 = arith.addf %115, %121 : vector<1x8x16x128xf32>
    %c2_i32_63 = arith.constant 2 : i32
    %123 = arith.addi %96, %c2_i32_63 : i32
    %c0_64 = arith.constant 0 : index
    %124 = arith.index_cast %123 : i32 to index
    %c0_65 = arith.constant 0 : index
    %c0_66 = arith.constant 0 : index
    %125 = vector.load %arg7[%c0_64, %124, %c0_65, %c0_66] : memref<1x18x16x128xf32, #tpu.memory_space<vmem>>, vector<1x8x16x128xf32>
    %126 = arith.addf %125, %122 : vector<1x8x16x128xf32>
    %c0_67 = arith.constant 0 : index
    %127 = arith.index_cast %123 : i32 to index
    %c0_68 = arith.constant 0 : index
    %c0_69 = arith.constant 0 : index
    %128 = vector.load %arg7[%c0_67, %127, %c0_68, %c0_69] : memref<1x18x16x128xf32, #tpu.memory_space<vmem>>, vector<1x8x16x128xf32>
    tpu.vector_store %arg7[%c0_67, %127, %c0_68, %c0_69], %126 {strides = array<i32>} : memref<1x18x16x128xf32, #tpu.memory_space<vmem>>, vector<1x8x16x128xf32>,
    %c1_70 = arith.constant 1 : index
    %c0_71 = arith.constant 0 : index
    %c0_72 = arith.constant 0 : index
    %129 = vector.load %arg2[%c1_70, %c0_71, %c0_72] : memref<3x128x384xbf16, #tpu.memory_space<vmem>>, vector<1x128x384xbf16>
    %130 = vector.shape_cast %129 : vector<1x128x384xbf16> to vector<128x384xbf16>
    %cst_73 = arith.constant dense<0.000000e+00> : vector<128x384xf32>
    %131 = tpu.matmul %103, %130, %cst_73 {dimension_numbers = #tpu.dot_dimension_numbers<[1], [0], [0], [1], [0, 0, 1, 1], [], []>} : vector<128x128xbf16>, vector<128x384xbf16>, vector<128x384xf32> -> vector<128x384xf32>
    %132 = vector.shape_cast %131 : vector<128x384xf32> to vector<1x8x16x384xf32>
    %133 = vector.extract_strided_slice %132 {offsets = [0, 0, 0, 128], sizes = [1, 8, 16, 128], strides = [1, 1, 1, 1]} : vector<1x8x16x384xf32> to vector<1x8x16x128xf32>
    %134 = vector.extract_strided_slice %132 {offsets = [0, 0, 0, 0], sizes = [1, 8, 16, 128], strides = [1, 1, 1, 1]} : vector<1x8x16x384xf32> to vector<1x8x16x128xf32>
    %c1_i32_74 = arith.constant 1 : i32
    %135 = tpu.dynamic_rotate %134 by %c1_i32_74 dim 2 : vector<1x8x16x128xf32>, i32 -> vector<1x8x16x128xf32>
    %cst_75 = arith.constant 0.000000e+00 : f32
    %136 = vector.shape_cast %5 : vector<1x1x16x128xi1> to vector<1x1x16x128xi1>
    %137 = vector.broadcast %136 : vector<1x1x16x128xi1> to vector<1x8x16x128xi1>
    %138 = vector.broadcast %cst_75 : f32 to vector<1x8x16x128xf32>
    %139 = arith.select %137, %135, %138 : vector<1x8x16x128xi1>, vector<1x8x16x128xf32>
    %140 = arith.addf %133, %139 : vector<1x8x16x128xf32>
    %141 = vector.extract_strided_slice %132 {offsets = [0, 0, 0, 256], sizes = [1, 8, 16, 128], strides = [1, 1, 1, 1]} : vector<1x8x16x384xf32> to vector<1x8x16x128xf32>
    %c15_i32_76 = arith.constant 15 : i32
    %142 = tpu.dynamic_rotate %141 by %c15_i32_76 dim 2 : vector<1x8x16x128xf32>, i32 -> vector<1x8x16x128xf32>
    %cst_77 = arith.constant 0.000000e+00 : f32
    %143 = vector.shape_cast %7 : vector<1x1x16x128xi1> to vector<1x1x16x128xi1>
    %144 = vector.broadcast %143 : vector<1x1x16x128xi1> to vector<1x8x16x128xi1>
    %145 = vector.broadcast %cst_77 : f32 to vector<1x8x16x128xf32>
    %146 = arith.select %144, %142, %145 : vector<1x8x16x128xi1>, vector<1x8x16x128xf32>
    %147 = arith.addf %140, %146 : vector<1x8x16x128xf32>
    %c1_i32_78 = arith.constant 1 : i32
    %148 = arith.addi %96, %c1_i32_78 : i32
    %c0_79 = arith.constant 0 : index
    %149 = arith.index_cast %148 : i32 to index
    %c0_80 = arith.constant 0 : index
    %c0_81 = arith.constant 0 : index
    %150 = vector.load %arg7[%c0_79, %149, %c0_80, %c0_81] : memref<1x18x16x128xf32, #tpu.memory_space<vmem>>, vector<1x8x16x128xf32>
    %151 = arith.addf %150, %147 : vector<1x8x16x128xf32>
    %c0_82 = arith.constant 0 : index
    %152 = arith.index_cast %148 : i32 to index
    %c0_83 = arith.constant 0 : index
    %c0_84 = arith.constant 0 : index
    %153 = vector.load %arg7[%c0_82, %152, %c0_83, %c0_84] : memref<1x18x16x128xf32, #tpu.memory_space<vmem>>, vector<1x8x16x128xf32>
    tpu.vector_store %arg7[%c0_82, %152, %c0_83, %c0_84], %151 {strides = array<i32>} : memref<1x18x16x128xf32, #tpu.memory_space<vmem>>, vector<1x8x16x128xf32>,
    %c2_85 = arith.constant 2 : index
    %c0_86 = arith.constant 0 : index
    %c0_87 = arith.constant 0 : index
    %154 = vector.load %arg2[%c2_85, %c0_86, %c0_87] : memref<3x128x384xbf16, #tpu.memory_space<vmem>>, vector<1x128x384xbf16>
    %155 = vector.shape_cast %154 : vector<1x128x384xbf16> to vector<128x384xbf16>
    %cst_88 = arith.constant dense<0.000000e+00> : vector<128x384xf32>
    %156 = tpu.matmul %103, %155, %cst_88 {dimension_numbers = #tpu.dot_dimension_numbers<[1], [0], [0], [1], [0, 0, 1, 1], [], []>} : vector<128x128xbf16>, vector<128x384xbf16>, vector<128x384xf32> -> vector<128x384xf32>
    %157 = vector.shape_cast %156 : vector<128x384xf32> to vector<1x8x16x384xf32>
    %158 = vector.extract_strided_slice %157 {offsets = [0, 0, 0, 128], sizes = [1, 8, 16, 128], strides = [1, 1, 1, 1]} : vector<1x8x16x384xf32> to vector<1x8x16x128xf32>
    %159 = vector.extract_strided_slice %157 {offsets = [0, 0, 0, 0], sizes = [1, 8, 16, 128], strides = [1, 1, 1, 1]} : vector<1x8x16x384xf32> to vector<1x8x16x128xf32>
    %c1_i32_89 = arith.constant 1 : i32
    %160 = tpu.dynamic_rotate %159 by %c1_i32_89 dim 2 : vector<1x8x16x128xf32>, i32 -> vector<1x8x16x128xf32>
    %cst_90 = arith.constant 0.000000e+00 : f32
    %161 = vector.shape_cast %5 : vector<1x1x16x128xi1> to vector<1x1x16x128xi1>
    %162 = vector.broadcast %161 : vector<1x1x16x128xi1> to vector<1x8x16x128xi1>
    %163 = vector.broadcast %cst_90 : f32 to vector<1x8x16x128xf32>
    %164 = arith.select %162, %160, %163 : vector<1x8x16x128xi1>, vector<1x8x16x128xf32>
    %165 = arith.addf %158, %164 : vector<1x8x16x128xf32>
    %166 = vector.extract_strided_slice %157 {offsets = [0, 0, 0, 256], sizes = [1, 8, 16, 128], strides = [1, 1, 1, 1]} : vector<1x8x16x384xf32> to vector<1x8x16x128xf32>
    %c15_i32_91 = arith.constant 15 : i32
    %167 = tpu.dynamic_rotate %166 by %c15_i32_91 dim 2 : vector<1x8x16x128xf32>, i32 -> vector<1x8x16x128xf32>
    %cst_92 = arith.constant 0.000000e+00 : f32
    %168 = vector.shape_cast %7 : vector<1x1x16x128xi1> to vector<1x1x16x128xi1>
    %169 = vector.broadcast %168 : vector<1x1x16x128xi1> to vector<1x8x16x128xi1>
    %170 = vector.broadcast %cst_92 : f32 to vector<1x8x16x128xf32>
    %171 = arith.select %169, %167, %170 : vector<1x8x16x128xi1>, vector<1x8x16x128xf32>
    %172 = arith.addf %165, %171 : vector<1x8x16x128xf32>
    %c0_i32_93 = arith.constant 0 : i32
    %173 = arith.addi %96, %c0_i32_93 : i32
    %c0_94 = arith.constant 0 : index
    %174 = arith.index_cast %173 : i32 to index
    %c0_95 = arith.constant 0 : index
    %c0_96 = arith.constant 0 : index
    %175 = vector.load %arg7[%c0_94, %174, %c0_95, %c0_96] : memref<1x18x16x128xf32, #tpu.memory_space<vmem>>, vector<1x8x16x128xf32>
    %176 = arith.addf %175, %172 : vector<1x8x16x128xf32>
    %c0_97 = arith.constant 0 : index
    %177 = arith.index_cast %173 : i32 to index
    %c0_98 = arith.constant 0 : index
    %c0_99 = arith.constant 0 : index
    %178 = vector.load %arg7[%c0_97, %177, %c0_98, %c0_99] : memref<1x18x16x128xf32, #tpu.memory_space<vmem>>, vector<1x8x16x128xf32>
    tpu.vector_store %arg7[%c0_97, %177, %c0_98, %c0_99], %176 {strides = array<i32>} : memref<1x18x16x128xf32, #tpu.memory_space<vmem>>, vector<1x8x16x128xf32>,
    %c2_i32_100 = arith.constant 2 : i32
    %c0_i32_101 = arith.constant 0 : i32
    %c8_i32_102 = arith.constant 8 : i32
    %179 = arith.muli %c0_i32_101, %c8_i32_102 : i32
    %c1_i32_103 = arith.constant 1 : i32
    %180 = arith.addi %179, %c1_i32_103 : i32
    %c0_104 = arith.constant 0 : index
    %181 = arith.index_cast %180 : i32 to index
    %c0_105 = arith.constant 0 : index
    %c0_106 = arith.constant 0 : index
    %182 = vector.load %arg7[%c0_104, %181, %c0_105, %c0_106] : memref<1x18x16x128xf32, #tpu.memory_space<vmem>>, vector<1x8x16x128xf32>
    %183 = arith.negf %182 : vector<1x8x16x128xf32>
    %184 = math.exp %183 : vector<1x8x16x128xf32>
    %cst_107 = arith.constant 1.000000e+00 : f32
    %185 = vector.broadcast %cst_107 : f32 to vector<1x8x16x128xf32>
    %186 = arith.addf %185, %184 : vector<1x8x16x128xf32>
    %187 = arith.divf %185, %186 : vector<1x8x16x128xf32>
    %188 = vector.extract_strided_slice %187 {offsets = [0, 0, 0, 0], sizes = [1, 8, 16, 32], strides = [1, 1, 1, 1]} : vector<1x8x16x128xf32> to vector<1x8x16x32xf32>
    %189 = vector.extract_strided_slice %187 {offsets = [0, 0, 0, 32], sizes = [1, 8, 16, 32], strides = [1, 1, 1, 1]} : vector<1x8x16x128xf32> to vector<1x8x16x32xf32>
    %190 = vector.extract_strided_slice %187 {offsets = [0, 0, 0, 64], sizes = [1, 8, 16, 32], strides = [1, 1, 1, 1]} : vector<1x8x16x128xf32> to vector<1x8x16x32xf32>
    %191 = vector.extract_strided_slice %182 {offsets = [0, 0, 0, 96], sizes = [1, 8, 16, 32], strides = [1, 1, 1, 1]} : vector<1x8x16x128xf32> to vector<1x8x16x32xf32>
    %192 = math.tanh %191 : vector<1x8x16x32xf32>
    %c0_108 = arith.constant 0 : index
    %193 = arith.index_cast %179 : i32 to index
    %c0_109 = arith.constant 0 : index
    %c0_110 = arith.constant 0 : index
    %194 = vector.load %arg4[%c0_108, %193, %c0_109, %c0_110] : memref<1x16x16x32xf32, #tpu.memory_space<vmem>>, vector<1x8x16x32xf32>
    %195 = arith.mulf %189, %194 : vector<1x8x16x32xf32>
    %196 = arith.mulf %188, %192 : vector<1x8x16x32xf32>
    %197 = arith.addf %195, %196 : vector<1x8x16x32xf32>
    %198 = math.tanh %197 : vector<1x8x16x32xf32>
    %199 = arith.mulf %190, %198 : vector<1x8x16x32xf32>
    %200 = vector.shape_cast %199 : vector<1x8x16x32xf32> to vector<1x8x512xf32>
    %c0_111 = arith.constant 0 : index
    %201 = arith.index_cast %179 : i32 to index
    %c0_112 = arith.constant 0 : index
    %202 = vector.load %arg5[%c0_111, %201, %c0_112] : memref<1x16x512xf32, #tpu.memory_space<vmem>>, vector<1x8x512xf32>
    tpu.vector_store %arg5[%c0_111, %201, %c0_112], %200 {strides = array<i32>} : memref<1x16x512xf32, #tpu.memory_space<vmem>>, vector<1x8x512xf32>,
    %203 = vector.shape_cast %197 : vector<1x8x16x32xf32> to vector<1x8x512xf32>
    %c0_113 = arith.constant 0 : index
    %204 = arith.index_cast %179 : i32 to index
    %c0_114 = arith.constant 0 : index
    %205 = vector.load %arg6[%c0_113, %204, %c0_114] : memref<1x16x512xf32, #tpu.memory_space<vmem>>, vector<1x8x512xf32>
    tpu.vector_store %arg6[%c0_113, %204, %c0_114], %203 {strides = array<i32>} : memref<1x16x512xf32, #tpu.memory_space<vmem>>, vector<1x8x512xf32>,
    %c1_i32_115 = arith.constant 1 : i32
    %c8_i32_116 = arith.constant 8 : i32
    %206 = arith.muli %c1_i32_115, %c8_i32_116 : i32
    %c1_i32_117 = arith.constant 1 : i32
    %207 = arith.addi %206, %c1_i32_117 : i32
    %c0_118 = arith.constant 0 : index
    %208 = arith.index_cast %207 : i32 to index
    %c0_119 = arith.constant 0 : index
    %c0_120 = arith.constant 0 : index
    %209 = vector.load %arg7[%c0_118, %208, %c0_119, %c0_120] : memref<1x18x16x128xf32, #tpu.memory_space<vmem>>, vector<1x8x16x128xf32>
    %210 = arith.negf %209 : vector<1x8x16x128xf32>
    %211 = math.exp %210 : vector<1x8x16x128xf32>
    %cst_121 = arith.constant 1.000000e+00 : f32
    %212 = vector.broadcast %cst_121 : f32 to vector<1x8x16x128xf32>
    %213 = arith.addf %212, %211 : vector<1x8x16x128xf32>
    %214 = arith.divf %212, %213 : vector<1x8x16x128xf32>
    %215 = vector.extract_strided_slice %214 {offsets = [0, 0, 0, 0], sizes = [1, 8, 16, 32], strides = [1, 1, 1, 1]} : vector<1x8x16x128xf32> to vector<1x8x16x32xf32>
    %216 = vector.extract_strided_slice %214 {offsets = [0, 0, 0, 32], sizes = [1, 8, 16, 32], strides = [1, 1, 1, 1]} : vector<1x8x16x128xf32> to vector<1x8x16x32xf32>
    %217 = vector.extract_strided_slice %214 {offsets = [0, 0, 0, 64], sizes = [1, 8, 16, 32], strides = [1, 1, 1, 1]} : vector<1x8x16x128xf32> to vector<1x8x16x32xf32>
    %218 = vector.extract_strided_slice %209 {offsets = [0, 0, 0, 96], sizes = [1, 8, 16, 32], strides = [1, 1, 1, 1]} : vector<1x8x16x128xf32> to vector<1x8x16x32xf32>
    %219 = math.tanh %218 : vector<1x8x16x32xf32>
    %c0_122 = arith.constant 0 : index
    %220 = arith.index_cast %206 : i32 to index
    %c0_123 = arith.constant 0 : index
    %c0_124 = arith.constant 0 : index
    %221 = vector.load %arg4[%c0_122, %220, %c0_123, %c0_124] : memref<1x16x16x32xf32, #tpu.memory_space<vmem>>, vector<1x8x16x32xf32>
    %222 = arith.mulf %216, %221 : vector<1x8x16x32xf32>
    %223 = arith.mulf %215, %219 : vector<1x8x16x32xf32>
    %224 = arith.addf %222, %223 : vector<1x8x16x32xf32>
    %225 = math.tanh %224 : vector<1x8x16x32xf32>
    %226 = arith.mulf %217, %225 : vector<1x8x16x32xf32>
    %227 = vector.shape_cast %226 : vector<1x8x16x32xf32> to vector<1x8x512xf32>
    %c0_125 = arith.constant 0 : index
    %228 = arith.index_cast %206 : i32 to index
    %c0_126 = arith.constant 0 : index
    %229 = vector.load %arg5[%c0_125, %228, %c0_126] : memref<1x16x512xf32, #tpu.memory_space<vmem>>, vector<1x8x512xf32>
    tpu.vector_store %arg5[%c0_125, %228, %c0_126], %227 {strides = array<i32>} : memref<1x16x512xf32, #tpu.memory_space<vmem>>, vector<1x8x512xf32>,
    %230 = vector.shape_cast %224 : vector<1x8x16x32xf32> to vector<1x8x512xf32>
    %c0_127 = arith.constant 0 : index
    %231 = arith.index_cast %206 : i32 to index
    %c0_128 = arith.constant 0 : index
    %232 = vector.load %arg6[%c0_127, %231, %c0_128] : memref<1x16x512xf32, #tpu.memory_space<vmem>>, vector<1x8x512xf32>
    tpu.vector_store %arg6[%c0_127, %231, %c0_128], %230 {strides = array<i32>} : memref<1x16x512xf32, #tpu.memory_space<vmem>>, vector<1x8x512xf32>,
    %c2_i32_129 = arith.constant 2 : i32
    return
  }
  func.func @transform_0(%arg0: i32) -> (i32, i32, i32, i32) {
    %c0_i32 = arith.constant 0 : i32
    %c0_i32_0 = arith.constant 0 : i32
    %c0_i32_1 = arith.constant 0 : i32
    %c0_i32_2 = arith.constant 0 : i32
    return %arg0, %c0_i32, %c0_i32_0, %c0_i32_1 : i32, i32, i32, i32
  }
  func.func @transform_1(%arg0: i32) -> (i32, i32, i32) {
    %c0_i32 = arith.constant 0 : i32
    %c0_i32_0 = arith.constant 0 : i32
    %c0_i32_1 = arith.constant 0 : i32
    %c0_i32_2 = arith.constant 0 : i32
    return %c0_i32, %c0_i32_0, %c0_i32_1 : i32, i32, i32
  }
  func.func @transform_2(%arg0: i32) -> (i32, i32) {
    %c0_i32 = arith.constant 0 : i32
    %c0_i32_0 = arith.constant 0 : i32
    %c0_i32_1 = arith.constant 0 : i32
    return %c0_i32, %c0_i32_0 : i32, i32
  }
  func.func @transform_3(%arg0: i32) -> (i32, i32, i32, i32) {
    %c0_i32 = arith.constant 0 : i32
    %c0_i32_0 = arith.constant 0 : i32
    %c0_i32_1 = arith.constant 0 : i32
    %c0_i32_2 = arith.constant 0 : i32
    return %arg0, %c0_i32, %c0_i32_0, %c0_i32_1 : i32, i32, i32, i32
  }
  func.func @transform_4(%arg0: i32) -> (i32, i32, i32) {
    %c0_i32 = arith.constant 0 : i32
    %c0_i32_0 = arith.constant 0 : i32
    %c0_i32_1 = arith.constant 0 : i32
    return %arg0, %c0_i32, %c0_i32_0 : i32, i32, i32
  }
  func.func @transform_5(%arg0: i32) -> (i32, i32, i32) {
    %c0_i32 = arith.constant 0 : i32
    %c0_i32_0 = arith.constant 0 : i32
    %c0_i32_1 = arith.constant 0 : i32
    return %arg0, %c0_i32, %c0_i32_0 : i32, i32, i32
  }
}

</mosaic_0001>

<llo_original>
// kernel: generative_cell_forward.1
$region0: #{generative_cell_forward.1}
  #allocation0 [shape = 'u32[]', space=smem, size = 0x4, offset = 0x4, fixed_abs, tag = 'smem constant byte address 0x4 - core index']
  #allocation1 [shape = 'u32[144,128]{1,0:T(1,128)}', space=vmem, size = 0x12000, scoped, tag = 'internal scratch']
  #allocation2 [shape = 'f32[1,18,16,128]{3,2,1,0:T(8,128)}', space=vmem, size = 0x24000, scoped, tag = 'scratch operand']
  %s0 = inlined_call_operand.vmem [shape: bf16[2,16,16,44], index: 0, kind: input, shape index: {}]
  %s1 = inlined_call_operand.vmem [shape: bf16[3,128,384], index: 1, kind: input, shape index: {}]
  %s2 = inlined_call_operand.vmem [shape: f32[1,128], index: 2, kind: input, shape index: {}]
  %s3 = inlined_call_operand.vmem [shape: f32[2,16,16,32], index: 3, kind: input, shape index: {}]
  %s4 = inlined_call_operand.vmem [shape: f32[2,16,512], index: 4, kind: output, shape index: {0}]
  %s5 = inlined_call_operand.vmem [shape: f32[2,16,512], index: 5, kind: output, shape index: {1}]
  %6 = xla_tuple %s4, %s5
  %s7 = sld [smem:[#allocation0]]
  $region57: #{generative_cell_forward.1} parent=0
    _
  %s9 = ssub.s32 1, %s7
  %s10 = scalar_select 0, %s9, %s7
  loop: start=0, step=1, limit=4
  $region2: #{generative_cell_forward.1} parent=0 // loop_pre_header
    _
  $region3: #{generative_cell_forward.1} parent=0 // loop_header
    %s12 = sphi 0, %s16
    %p13 = scmp.ge.s32.totalorder %s12, 4
    %s22 = sphi 0, %s24
    %s25 = sphi 0, %s22
    %s26 = sphi 0, %s25
    %s42 = sphi 0, %s26
    %s46 = sphi 0, %s46
    %s48 = sphi 0, %s46
    %s49 = sphi 0, %s48
    %s63 = sphi 0, %s49
    %s67 = sphi 0, %s67
    %s69 = sphi 0, %s67
    %s70 = sphi 0, %s69
    %s84 = sphi 0, %s70
    %s90 = sphi 0, %s92
    %s93 = sphi 0, %s90
    %s94 = sphi 0, %s93
    %s110 = sphi 0, %s94
    %s116 = sphi 0, %s118
    %s119 = sphi 0, %s116
    %s120 = sphi 0, %s119
    %s136 = sphi 0, %s120
    %s142 = sphi 0, %s144
    %s145 = sphi 0, %s142
    %s146 = sphi 0, %s145
    %s162 = sphi 0, %s146
  $region4: #{generative_cell_forward.1} parent=0 // loop_header_branch
    %15 = sbr.rel (%p13) target = $region8
  $region5: #{generative_cell_forward.1} parent=0 // loop_body
    %s17 = ssub.s32 %s12, 1
    %s18 = ssub.s32 %s12, 2
    %s19 = sadd.s32 %s12, 1
    %s20 = ssub.s32 %s12, %s19
    %p21 = scmp.eq.s32.totalorder %s20, 0
    %s23 = sadd.s32 %s22, 1
    %s24 = scalar_select %p21, %s22, %s23
    %p27 = pneg %p21
    %p28 = scmp.eq.s32.totalorder %s12, 1
    %p29 = por %p27, %p28
    %p30 = scmp.ne.s32.totalorder %s22, %s25
    %p31 = scmp.eq.s32.totalorder %s12, 0
    %p32 = por %p30, %p31
    %p33 = scmp.ne.s32.totalorder %s22, %s25
    %p34 = scmp.eq.s32.totalorder %s17, 1
    %p35 = por %p33, %p34
    %p36 = scmp.ne.s32.totalorder %s25, %s26
    %p37 = scmp.eq.s32.totalorder %s17, 0
    %p38 = por %p36, %p37
    %p39 = scmp.ne.s32.totalorder %s25, %s26
    %p40 = scmp.eq.s32.totalorder %s18, 1
    %p41 = por %p39, %p40
    %p43 = scmp.ne.s32.totalorder %s26, %s42
    %p44 = scmp.eq.s32.totalorder %s18, 0
    %p45 = por %p43, %p44
    %s47 = sadd.s32 %s46, 1
    %p50 = scmp.eq.s32.totalorder %s12, 1
    %p51 = scmp.ne.s32.totalorder %s46, %s48
    %p52 = scmp.eq.s32.totalorder %s12, 0
    %p53 = por %p51, %p52
    %p54 = scmp.ne.s32.totalorder %s46, %s48
    %p55 = scmp.eq.s32.totalorder %s17, 1
    %p56 = por %p54, %p55
    %p57 = scmp.ne.s32.totalorder %s48, %s49
    %p58 = scmp.eq.s32.totalorder %s17, 0
    %p59 = por %p57, %p58
    %p60 = scmp.ne.s32.totalorder %s48, %s49
    %p61 = scmp.eq.s32.totalorder %s18, 1
    %p62 = por %p60, %p61
    %p64 = scmp.ne.s32.totalorder %s49, %s63
    %p65 = scmp.eq.s32.totalorder %s18, 0
    %p66 = por %p64, %p65
    %s68 = sadd.s32 %s67, 1
    %p71 = scmp.eq.s32.totalorder %s12, 1
    %p72 = scmp.ne.s32.totalorder %s67, %s69
    %p73 = scmp.eq.s32.totalorder %s12, 0
    %p74 = por %p72, %p73
    %p75 = scmp.ne.s32.totalorder %s67, %s69
    %p76 = scmp.eq.s32.totalorder %s17, 1
    %p77 = por %p75, %p76
    %p78 = scmp.ne.s32.totalorder %s69, %s70
    %p79 = scmp.eq.s32.totalorder %s17, 0
    %p80 = por %p78, %p79
    %p81 = scmp.ne.s32.totalorder %s69, %s70
    %p82 = scmp.eq.s32.totalorder %s18, 1
    %p83 = por %p81, %p82
    %p85 = scmp.ne.s32.totalorder %s70, %s84
    %p86 = scmp.eq.s32.totalorder %s18, 0
    %p87 = por %p85, %p86
    %s88 = ssub.s32 %s12, %s19
    %p89 = scmp.eq.s32.totalorder %s88, 0
    %s91 = sadd.s32 %s90, 1
    %s92 = scalar_select %p89, %s90, %s91
    %p95 = pneg %p89
    %p96 = scmp.eq.s32.totalorder %s12, 1
    %p97 = por %p95, %p96
    %p98 = scmp.ne.s32.totalorder %s90, %s93
    %p99 = scmp.eq.s32.totalorder %s12, 0
    %p100 = por %p98, %p99
    %p101 = scmp.ne.s32.totalorder %s90, %s93
    %p102 = scmp.eq.s32.totalorder %s17, 1
    %p103 = por %p101, %p102
    %p104 = scmp.ne.s32.totalorder %s93, %s94
    %p105 = scmp.eq.s32.totalorder %s17, 0
    %p106 = por %p104, %p105
    %p107 = scmp.ne.s32.totalorder %s93, %s94
    %p108 = scmp.eq.s32.totalorder %s18, 1
    %p109 = por %p107, %p108
    %p111 = scmp.ne.s32.totalorder %s94, %s110
    %p112 = scmp.eq.s32.totalorder %s18, 0
    %p113 = por %p111, %p112
    %s114 = ssub.s32 %s12, %s19
    %p115 = scmp.eq.s32.totalorder %s114, 0
    %s117 = sadd.s32 %s116, 1
    %s118 = scalar_select %p115, %s116, %s117
    %p121 = pneg %p115
    %p122 = scmp.eq.s32.totalorder %s12, 1
    %p123 = por %p121, %p122
    %p124 = scmp.ne.s32.totalorder %s116, %s119
    %p125 = scmp.eq.s32.totalorder %s12, 0
    %p126 = por %p124, %p125
    %p127 = scmp.ne.s32.totalorder %s116, %s119
    %p128 = scmp.eq.s32.totalorder %s17, 1
    %p129 = por %p127, %p128
    %p130 = scmp.ne.s32.totalorder %s119, %s120
    %p131 = scmp.eq.s32.totalorder %s17, 0
    %p132 = por %p130, %p131
    %p133 = scmp.ne.s32.totalorder %s119, %s120
    %p134 = scmp.eq.s32.totalorder %s18, 1
    %p135 = por %p133, %p134
    %p137 = scmp.ne.s32.totalorder %s120, %s136
    %p138 = scmp.eq.s32.totalorder %s18, 0
    %p139 = por %p137, %p138
    %s140 = ssub.s32 %s12, %s19
    %p141 = scmp.eq.s32.totalorder %s140, 0
    %s143 = sadd.s32 %s142, 1
    %s144 = scalar_select %p141, %s142, %s143
    %p147 = pneg %p141
    %p148 = scmp.eq.s32.totalorder %s12, 1
    %p149 = por %p147, %p148
    %p150 = scmp.ne.s32.totalorder %s142, %s145
    %p151 = scmp.eq.s32.totalorder %s12, 0
    %p152 = por %p150, %p151
    %p153 = scmp.ne.s32.totalorder %s142, %s145
    %p154 = scmp.eq.s32.totalorder %s17, 1
    %p155 = por %p153, %p154
    %p156 = scmp.ne.s32.totalorder %s145, %s146
    %p157 = scmp.eq.s32.totalorder %s17, 0
    %p158 = por %p156, %p157
    %p159 = scmp.ne.s32.totalorder %s145, %s146
    %p160 = scmp.eq.s32.totalorder %s18, 1
    %p161 = por %p159, %p160
    %p163 = scmp.ne.s32.totalorder %s146, %s162
    %p164 = scmp.eq.s32.totalorder %s18, 0
    %p165 = por %p163, %p164
    %p166 = scmp.le.s32.totalorder 1, %s12
    %p167 = scmp.lt.s32.totalorder %s12, 3
    %p168 = pnand %p166, %p167
    %p169 = pneg %p168
    // Predicated region
    $region9: #{generative_cell_forward.1} parent=5 // pred_check
      _
    $region10: #{generative_cell_forward.1} parent=5 // pred_check_branch
      %171 = sbr.rel (%p168) target = $region12
    $region11: #{generative_cell_forward.1} parent=5 // pred_region
      %s172 = ssub.s32 %s12, 1
      // Predicated region
      $region13: #{generative_cell_forward.1} parent=11 // pred_check
        %p173 = pneg %p59
      $region14: #{generative_cell_forward.1} parent=11 // pred_check_branch
        %175 = sbr.rel (%p173) target = $region16
      $region15: #{generative_cell_forward.1} parent=11 // pred_region
        _
      $region16: #{generative_cell_forward.1} parent=11 // pred_fallthru
        _
      // Predicated region
      $region17: #{generative_cell_forward.1} parent=11 // pred_check
        %p176 = pneg %p80
      $region18: #{generative_cell_forward.1} parent=11 // pred_check_branch
        %178 = sbr.rel (%p176) target = $region20
      $region19: #{generative_cell_forward.1} parent=11 // pred_region
        _
      $region20: #{generative_cell_forward.1} parent=11 // pred_fallthru
        _
    $region12: #{generative_cell_forward.1} parent=5 // pred_fallthru
      _
    %p179 = scmp.lt.s32.totalorder %s12, 2
    // Predicated region
    $region21: #{generative_cell_forward.1} parent=5 // pred_check
      %p180 = pneg %p179
    $region22: #{generative_cell_forward.1} parent=5 // pred_check_branch
      %182 = sbr.rel (%p180) target = $region24
    $region23: #{generative_cell_forward.1} parent=5 // pred_region
      // Predicated region
      $region25: #{generative_cell_forward.1} parent=23 // pred_check
        %p183 = pneg %p32
      $region26: #{generative_cell_forward.1} parent=23 // pred_check_branch
        %185 = sbr.rel (%p183) target = $region28
      $region27: #{generative_cell_forward.1} parent=23 // pred_region
        %p186 = scmp.lt.s32.totalorder %s12, 1
        %s187 = scalar_select %p186, %s12, 1
        %s188 = smul.addr %s187, 32
        %s189 = smul.addr %s188, 4
        %s190 = scalar_lea.vmem %s0, %s189
      $region28: #{generative_cell_forward.1} parent=23 // pred_fallthru
        _
      // Predicated region
      $region29: #{generative_cell_forward.1} parent=23 // pred_check
        %p191 = pneg %p100
      $region30: #{generative_cell_forward.1} parent=23 // pred_check_branch
        %193 = sbr.rel (%p191) target = $region32
      $region31: #{generative_cell_forward.1} parent=23 // pred_region
        %p194 = scmp.lt.s32.totalorder %s12, 1
        %s195 = scalar_select %p194, %s12, 1
        %s196 = smul.addr %s195, 32
        %s197 = smul.addr %s196, 8
        %s198 = scalar_lea.vmem %s3, %s197
      $region32: #{generative_cell_forward.1} parent=23 // pred_fallthru
        _
    $region24: #{generative_cell_forward.1} parent=5 // pred_fallthru
      _
    %p199 = scmp.le.s32.totalorder 1, %s12
    %p200 = scmp.lt.s32.totalorder %s12, 3
    %p201 = pnand %p199, %p200
    %p202 = pneg %p201
    // Predicated region
    $region33: #{generative_cell_forward.1} parent=5 // pred_check
      _
    $region34: #{generative_cell_forward.1} parent=5 // pred_check_branch
      %204 = sbr.rel (%p201) target = $region36
    $region35: #{generative_cell_forward.1} parent=5 // pred_region
      %s205 = ssub.s32 %s12, 1
      %p206 = scmp.lt.s32.totalorder %s17, 1
      %s207 = scalar_select %p206, %s17, 1
      %s208 = smul.addr %s207, 32
      %s209 = smul.addr %s208, 4
      %s210 = scalar_lea.vmem %s0, %s209
      %p211 = pneg %p38
      %p212 = pneg %p35
      %p213 = pneg %p59
      %p214 = pneg %p56
      %p215 = pneg %p80
      %p216 = pneg %p77
      %p217 = scmp.lt.s32.totalorder %s17, 1
      %s218 = scalar_select %p217, %s17, 1
      %s219 = smul.addr %s218, 32
      %s220 = smul.addr %s219, 8
      %s221 = scalar_lea.vmem %s3, %s220
      %p222 = pneg %p106
      %p223 = pneg %p103
      %p224 = pneg %p132
      %p225 = pneg %p129
      %p226 = scmp.lt.s32.totalorder %s17, 1
      %s227 = scalar_select %p226, %s17, 1
      %s228 = smul.addr %s227, 8
      %s229 = smul.addr %s228, 8
      %s230 = scalar_lea.vmem %s4, %s229
      %p231 = pneg %p158
      %p232 = pneg %p155
      %p233 = scmp.lt.s32.totalorder %s17, 1
      %s234 = scalar_select %p233, %s17, 1
      %s235 = smul.addr %s234, 8
      %s236 = smul.addr %s235, 8
      %s237 = scalar_lea.vmem %s5, %s236
      %p238 = scmp.lt.s32.totalorder %s17, 1
      %s239 = scalar_select %p238, %s17, 1
      %s240 = smul.addr %s239, 32
      %s241 = smul.addr %s240, 4
      %s242 = scalar_lea.vmem %s0, %s241
      %p243 = scmp.lt.s32.totalorder %s17, 1
      %s244 = scalar_select %p243, %s17, 1
      %s245 = smul.addr %s244, 32
      %s246 = smul.addr %s245, 8
      %s247 = scalar_lea.vmem %s3, %s246
      %p248 = scmp.lt.s32.totalorder %s17, 1
      %s249 = scalar_select %p248, %s17, 1
      %s250 = smul.addr %s249, 8
      %s251 = smul.addr %s250, 8
      %s252 = scalar_lea.vmem %s4, %s251
      %p253 = scmp.lt.s32.totalorder %s17, 1
      %s254 = scalar_select %p253, %s17, 1
      %s255 = smul.addr %s254, 8
      %s256 = smul.addr %s255, 8
      %s257 = scalar_lea.vmem %s5, %s256
      %v259 = vlaneseq
      %v260 = vand.u32 %v259, 127
      %vm261 = vcmp.lt.s32.totalorder %v260, 44
      %v262 = vlaneseq
      %v263 = vshrl.u32 %v262, 7
      %v264 = vadd.s32 %v263, 8
      %vm265 = vcmp.ge.s32.totalorder %v263, 1
      %vm266 = vcmp.ge.s32.totalorder %v264, 1
      %vm267 = vcmp.le.s32.totalorder %v263, 14
      %vm268 = vcmp.le.s32.totalorder %v264, 14
      %v269 = vld [vmem:[%s2] sm:$0x1]
      %v271 = vlaneseq
      %v272 = vshrl.u32 %v271, 7
      %v273 = vsub.s32 0, %v272
      %v274 = vrot.slane %v269, %v273
      %276 = vst [vmem:[#allocation2] sm:$0xff] %v274
      %277 = vst [vmem:[#allocation2 + $0x8] sm:$0xff] %v274
      %278 = vst [vmem:[#allocation2 + $0x10] sm:$0xff] %v274
      %279 = vst [vmem:[#allocation2 + $0x18] sm:$0xff] %v274
      %280 = vst [vmem:[#allocation2 + $0x20] sm:$0xff] %v274
      %281 = vst [vmem:[#allocation2 + $0x28] sm:$0xff] %v274
      %282 = vst [vmem:[#allocation2 + $0x30] sm:$0xff] %v274
      %283 = vst [vmem:[#allocation2 + $0x38] sm:$0xff] %v274
      %284 = vst [vmem:[#allocation2 + $0x40] sm:$0xff] %v274
      %285 = vst [vmem:[#allocation2 + $0x48] sm:$0xff] %v274
      %286 = vst [vmem:[#allocation2 + $0x50] sm:$0xff] %v274
      %287 = vst [vmem:[#allocation2 + $0x58] sm:$0xff] %v274
      %288 = vst [vmem:[#allocation2 + $0x60] sm:$0xff] %v274
      %289 = vst [vmem:[#allocation2 + $0x68] sm:$0xff] %v274
      %290 = vst [vmem:[#allocation2 + $0x70] sm:$0xff] %v274
      %291 = vst [vmem:[#allocation2 + $0x78] sm:$0xff] %v274
      %292 = vst [vmem:[#allocation2 + $0x80] sm:$0xff] %v274
      %293 = vst [vmem:[#allocation2 + $0x88] sm:$0xff] %v274
      %294 = vst [vmem:[#allocation2 + $0x90] sm:$0xff] %v274
      %295 = vst [vmem:[#allocation2 + $0x98] sm:$0xff] %v274
      %296 = vst [vmem:[#allocation2 + $0xa0] sm:$0xff] %v274
      %297 = vst [vmem:[#allocation2 + $0xa8] sm:$0xff] %v274
      %298 = vst [vmem:[#allocation2 + $0xb0] sm:$0xff] %v274
      %299 = vst [vmem:[#allocation2 + $0xb8] sm:$0xff] %v274
      %300 = vst [vmem:[#allocation2 + $0xc0] sm:$0xff] %v274
      %301 = vst [vmem:[#allocation2 + $0xc8] sm:$0xff] %v274
      %302 = vst [vmem:[#allocation2 + $0xd0] sm:$0xff] %v274
      %303 = vst [vmem:[#allocation2 + $0xd8] sm:$0xff] %v274
      %304 = vst [vmem:[#allocation2 + $0xe0] sm:$0xff] %v274
      %305 = vst [vmem:[#allocation2 + $0xe8] sm:$0xff] %v274
      %306 = vst [vmem:[#allocation2 + $0xf0] sm:$0xff] %v274
      %307 = vst [vmem:[#allocation2 + $0xf8] sm:$0xff] %v274
      %308 = vst [vmem:[#allocation2 + $0x100] sm:$0xff] %v274
      %309 = vst [vmem:[#allocation2 + $0x108] sm:$0xff] %v274
      %310 = vst [vmem:[#allocation2 + $0x110] sm:$0xff] %v274
      %311 = vst [vmem:[#allocation2 + $0x118] sm:$0xff] %v274
      %v312 = vld [vmem:[%s242] sm:$0xf]
      %v313 = vld [vmem:[%s242 + $0x4] sm:$0xf]
      %v314 = vld [vmem:[%s242 + $0x8] sm:$0xf]
      %v315 = vld [vmem:[%s242 + $0xc] sm:$0xf]
      %v316 = vld [vmem:[%s242 + $0x10] sm:$0xf]
      %v317 = vld [vmem:[%s242 + $0x14] sm:$0xf]
      %v318 = vld [vmem:[%s242 + $0x18] sm:$0xf]
      %v319 = vld [vmem:[%s242 + $0x1c] sm:$0xf]
      %v320 = vld [vmem:[%s242 + $0x20] sm:$0xf]
      %v321 = vld [vmem:[%s242 + $0x24] sm:$0xf]
      %v322 = vld [vmem:[%s242 + $0x28] sm:$0xf]
      %v323 = vld [vmem:[%s242 + $0x2c] sm:$0xf]
      %v324 = vld [vmem:[%s242 + $0x30] sm:$0xf]
      %v325 = vld [vmem:[%s242 + $0x34] sm:$0xf]
      %v326 = vld [vmem:[%s242 + $0x38] sm:$0xf]
      %v327 = vld [vmem:[%s242 + $0x3c] sm:$0xf]
      %v328 = vsel %vm261, 1, 0
      %vm329 = vcmp.eq.s32.totalorder %v328, 1
      %vm330 = vmpackc.low %vm329, %vm329
      %v331 = vsel %vm330, %v312, 0
      %v332 = vsel %vm330, %v313, 0
      %v333 = vsel %vm330, %v314, 0
      %v334 = vsel %vm330, %v315, 0
      %v335 = vsel %vm330, %v316, 0
      %v336 = vsel %vm330, %v317, 0
      %v337 = vsel %vm330, %v318, 0
      %v338 = vsel %vm330, %v319, 0
      %v339 = vsel %vm330, %v320, 0
      %v340 = vsel %vm330, %v321, 0
      %v341 = vsel %vm330, %v322, 0
      %v342 = vsel %vm330, %v323, 0
      %v343 = vsel %vm330, %v324, 0
      %v344 = vsel %vm330, %v325, 0
      %v345 = vsel %vm330, %v326, 0
      %v346 = vsel %vm330, %v327, 0
      %v347 = vld [vmem:[%s1] sm:$0xff]
      %v348 = vld [vmem:[%s1 + $0x8] sm:$0xf]
      %v349 = vld [vmem:[%s1 + $0xc] sm:$0xff]
      %v350 = vld [vmem:[%s1 + $0x14] sm:$0xf]
      %v351 = vld [vmem:[%s1 + $0x18] sm:$0xff]
      %v352 = vld [vmem:[%s1 + $0x20] sm:$0xf]
      %v353 = vld [vmem:[%s1 + $0x24] sm:$0xff]
      %v354 = vld [vmem:[%s1 + $0x2c] sm:$0xf]
      %v355 = vld [vmem:[%s1 + $0x30] sm:$0xff]
      %v356 = vld [vmem:[%s1 + $0x38] sm:$0xf]
      %v357 = vld [vmem:[%s1 + $0x3c] sm:$0xff]
      %v358 = vld [vmem:[%s1 + $0x44] sm:$0xf]
      %v359 = vld [vmem:[%s1 + $0x48] sm:$0xff]
      %v360 = vld [vmem:[%s1 + $0x50] sm:$0xf]
      %v361 = vld [vmem:[%s1 + $0x54] sm:$0xff]
      %v362 = vld [vmem:[%s1 + $0x5c] sm:$0xf]
      %v363 = vld [vmem:[%s1 + $0x60] sm:$0xff]
      %v364 = vld [vmem:[%s1 + $0x68] sm:$0xf]
      %v365 = vld [vmem:[%s1 + $0x6c] sm:$0xff]
      %v366 = vld [vmem:[%s1 + $0x74] sm:$0xf]
      %v367 = vld [vmem:[%s1 + $0x78] sm:$0xff]
      %v368 = vld [vmem:[%s1 + $0x80] sm:$0xf]
      %v369 = vld [vmem:[%s1 + $0x84] sm:$0xff]
      %v370 = vld [vmem:[%s1 + $0x8c] sm:$0xf]
      %v371 = vld [vmem:[%s1 + $0x90] sm:$0xff]
      %v372 = vld [vmem:[%s1 + $0x98] sm:$0xf]
      %v373 = vld [vmem:[%s1 + $0x9c] sm:$0xff]
      %v374 = vld [vmem:[%s1 + $0xa4] sm:$0xf]
      %v375 = vld [vmem:[%s1 + $0xa8] sm:$0xff]
      %v376 = vld [vmem:[%s1 + $0xb0] sm:$0xf]
      %v377 = vld [vmem:[%s1 + $0xb4] sm:$0xff]
      %v378 = vld [vmem:[%s1 + $0xbc] sm:$0xf]
      %v395 = vunpack.c.l.b16 %v331
      %v396 = vunpack.c.l.b16 %v332
      %v397 = vunpack.c.l.b16 %v333
      %v398 = vunpack.c.l.b16 %v334
      %v399 = vunpack.c.l.b16 %v335
      %v400 = vunpack.c.l.b16 %v336
      %v401 = vunpack.c.l.b16 %v337
      %v402 = vunpack.c.l.b16 %v338
      %v403 = vunpack.c.l.b16 %v339
      %v404 = vunpack.c.l.b16 %v340
      %v405 = vunpack.c.l.b16 %v341
      %v406 = vunpack.c.l.b16 %v342
      %v407 = vunpack.c.l.b16 %v343
      %v408 = vunpack.c.l.b16 %v344
      %v409 = vunpack.c.l.b16 %v345
      %v410 = vunpack.c.l.b16 %v346
      %v411 = vpack.c.b16 %v396, %v395
      %v412 = vpack.c.b16 %v398, %v397
      %v413 = vpack.c.b16 %v400, %v399
      %v414 = vpack.c.b16 %v402, %v401
      %v415 = vpack.c.b16 %v404, %v403
      %v416 = vpack.c.b16 %v406, %v405
      %v417 = vpack.c.b16 %v408, %v407
      %v418 = vpack.c.b16 %v410, %v409
      %v459 = vunpack.c.l.b16 %v347
      %v460 = vunpack.c.h.b16 %v347
      %v461 = vunpack.c.l.b16 %v348
      %v462 = vunpack.c.l.b16 %v349
      %v463 = vunpack.c.h.b16 %v349
      %v464 = vunpack.c.l.b16 %v350
      %v465 = vunpack.c.l.b16 %v351
      %v466 = vunpack.c.h.b16 %v351
      %v467 = vunpack.c.l.b16 %v352
      %v468 = vunpack.c.l.b16 %v353
      %v469 = vunpack.c.h.b16 %v353
      %v470 = vunpack.c.l.b16 %v354
      %v471 = vunpack.c.l.b16 %v355
      %v472 = vunpack.c.h.b16 %v355
      %v473 = vunpack.c.l.b16 %v356
      %v474 = vunpack.c.l.b16 %v357
      %v475 = vunpack.c.h.b16 %v357
      %v476 = vunpack.c.l.b16 %v358
      %v477 = vunpack.c.l.b16 %v359
      %v478 = vunpack.c.h.b16 %v359
      %v479 = vunpack.c.l.b16 %v360
      %v480 = vunpack.c.l.b16 %v361
      %v481 = vunpack.c.h.b16 %v361
      %v482 = vunpack.c.l.b16 %v362
      %v483 = vunpack.c.l.b16 %v363
      %v484 = vunpack.c.h.b16 %v363
      %v485 = vunpack.c.l.b16 %v364
      %v486 = vunpack.c.l.b16 %v365
      %v487 = vunpack.c.h.b16 %v365
      %v488 = vunpack.c.l.b16 %v366
      %v489 = vunpack.c.l.b16 %v367
      %v490 = vunpack.c.h.b16 %v367
      %v491 = vunpack.c.l.b16 %v368
      %v492 = vunpack.c.l.b16 %v369
      %v493 = vunpack.c.h.b16 %v369
      %v494 = vunpack.c.l.b16 %v370
      %v495 = vunpack.c.l.b16 %v371
      %v496 = vunpack.c.h.b16 %v371
      %v497 = vunpack.c.l.b16 %v372
      %v498 = vunpack.c.l.b16 %v373
      %v499 = vunpack.c.h.b16 %v373
      %v500 = vunpack.c.l.b16 %v374
      %v501 = vunpack.c.l.b16 %v375
      %v502 = vunpack.c.h.b16 %v375
      %v503 = vunpack.c.l.b16 %v376
      %v504 = vunpack.c.l.b16 %v377
      %v505 = vunpack.c.h.b16 %v377
      %v506 = vunpack.c.l.b16 %v378
      %v507 = vpack.c.b16 %v462, %v459
      %v508 = vpack.c.b16 %v463, %v460
      %v509 = vpack.c.b16 %v464, %v461
      %v510 = vpack.c.b16 %v468, %v465
      %v511 = vpack.c.b16 %v469, %v466
      %v512 = vpack.c.b16 %v470, %v467
      %v513 = vpack.c.b16 %v474, %v471
      %v514 = vpack.c.b16 %v475, %v472
      %v515 = vpack.c.b16 %v476, %v473
      %v516 = vpack.c.b16 %v480, %v477
      %v517 = vpack.c.b16 %v481, %v478
      %v518 = vpack.c.b16 %v482, %v479
      %v519 = vpack.c.b16 %v486, %v483
      %v520 = vpack.c.b16 %v487, %v484
      %v521 = vpack.c.b16 %v488, %v485
      %v522 = vpack.c.b16 %v492, %v489
      %v523 = vpack.c.b16 %v493, %v490
      %v524 = vpack.c.b16 %v494, %v491
      %v525 = vpack.c.b16 %v498, %v495
      %v526 = vpack.c.b16 %v499, %v496
      %v527 = vpack.c.b16 %v500, %v497
      %v528 = vpack.c.b16 %v504, %v501
      %v529 = vpack.c.b16 %v505, %v502
      %v530 = vpack.c.b16 %v506, %v503
      %555 = vmatprep.subr.bf16.mxu0 %v508
      %556 = vmatpush1.bf16.msra.mxu0 %v507
      %557 = vmatprep.subr.bf16.mxu0 %v511
      %558 = vmatpush1.bf16.msra.mxu0 %v510
      %559 = vmatprep.subr.bf16.mxu0 %v514
      %560 = vmatpush1.bf16.msra.mxu0 %v513
      %561 = vmatprep.subr.bf16.mxu0 %v517
      %562 = vmatpush1.bf16.msra.mxu0 %v516
      %563 = vmatprep.subr.bf16.mxu0 %v520
      %564 = vmatpush1.bf16.msra.mxu0 %v519
      %565 = vmatprep.subr.bf16.mxu0 %v523
      %566 = vmatpush1.bf16.msra.mxu0 %v522
      %567 = vmatprep.subr.bf16.mxu0 %v526
      %568 = vmatpush1.bf16.msra.mxu0 %v525
      %569 = vmatprep.subr.bf16.mxu0 %v529
      %570 = vmatpush1.bf16.msra.mxu0 %v528
      %571 = vmatprep.subr.bf16.mxu0 0
      %572 = vmatpush1.bf16.msra.mxu0 0
      %573 = vmatprep.subr.bf16.mxu0 0
      %574 = vmatpush1.bf16.msra.mxu0 0
      %575 = vmatprep.subr.bf16.mxu0 0
      %576 = vmatpush1.bf16.msra.mxu0 0
      %577 = vmatprep.subr.bf16.mxu0 0
      %578 = vmatpush1.bf16.msra.mxu0 0
      %579 = vmatprep.subr.bf16.mxu0 0
      %580 = vmatpush1.bf16.msra.mxu0 0
      %581 = vmatprep.subr.bf16.mxu0 0
      %582 = vmatpush1.bf16.msra.mxu0 0
      %583 = vmatprep.subr.bf16.mxu0 0
      %584 = vmatpush1.bf16.msra.mxu0 0
      %585 = vmatprep.subr.bf16.mxu0 0
      %586 = vmatpush1.bf16.msra.mxu0 0
      %587 = vmatprep.mubr.bf16.mxu0 0
      %588 = vmatmul.mubr.bf16.gmra.mrb[0].mxu0 %v411
      %v589 = vpop.f32.mrb[0].mxu0
      %v590 = vadd.f32 0.0, %v589
      %v591 = vpop.f32.mrb[0].mxu0
      %v592 = vadd.f32 0.0, %v591
      %v593 = vpop.f32.mrb[0].mxu0
      %v594 = vadd.f32 0.0, %v593
      %v595 = vpop.f32.mrb[0].mxu0
      %v596 = vadd.f32 0.0, %v595
      %597 = vmatprep.mubr.bf16.mxu0 0
      %598 = vmatmul.mubr.bf16.gmra.mrb[0].mxu0 %v412
      %v599 = vpop.f32.mrb[0].mxu0
      %v600 = vadd.f32 0.0, %v599
      %v601 = vpop.f32.mrb[0].mxu0
      %v602 = vadd.f32 0.0, %v601
      %v603 = vpop.f32.mrb[0].mxu0
      %v604 = vadd.f32 0.0, %v603
      %v605 = vpop.f32.mrb[0].mxu0
      %v606 = vadd.f32 0.0, %v605
      %607 = vmatprep.mubr.bf16.mxu0 0
      %608 = vmatmul.mubr.bf16.gmra.mrb[0].mxu0 %v413
      %v609 = vpop.f32.mrb[0].mxu0
      %v610 = vadd.f32 0.0, %v609
      %v611 = vpop.f32.mrb[0].mxu0
      %v612 = vadd.f32 0.0, %v611
      %v613 = vpop.f32.mrb[0].mxu0
      %v614 = vadd.f32 0.0, %v613
      %v615 = vpop.f32.mrb[0].mxu0
      %v616 = vadd.f32 0.0, %v615
      %617 = vmatprep.mubr.bf16.mxu0 0
      %618 = vmatmul.mubr.bf16.gmra.mrb[0].mxu0 %v414
      %v619 = vpop.f32.mrb[0].mxu0
      %v620 = vadd.f32 0.0, %v619
      %v621 = vpop.f32.mrb[0].mxu0
      %v622 = vadd.f32 0.0, %v621
      %v623 = vpop.f32.mrb[0].mxu0
      %v624 = vadd.f32 0.0, %v623
      %v625 = vpop.f32.mrb[0].mxu0
      %v626 = vadd.f32 0.0, %v625
      %627 = vmatprep.mubr.bf16.mxu0 0
      %628 = vmatmul.mubr.bf16.gmra.mrb[0].mxu0 %v415
      %v629 = vpop.f32.mrb[0].mxu0
      %v630 = vadd.f32 0.0, %v629
      %v631 = vpop.f32.mrb[0].mxu0
      %v632 = vadd.f32 0.0, %v631
      %v633 = vpop.f32.mrb[0].mxu0
      %v634 = vadd.f32 0.0, %v633
      %v635 = vpop.f32.mrb[0].mxu0
      %v636 = vadd.f32 0.0, %v635
      %637 = vmatprep.mubr.bf16.mxu0 0
      %638 = vmatmul.mubr.bf16.gmra.mrb[0].mxu0 %v416
      %v639 = vpop.f32.mrb[0].mxu0
      %v640 = vadd.f32 0.0, %v639
      %v641 = vpop.f32.mrb[0].mxu0
      %v642 = vadd.f32 0.0, %v641
      %v643 = vpop.f32.mrb[0].mxu0
      %v644 = vadd.f32 0.0, %v643
      %v645 = vpop.f32.mrb[0].mxu0
      %v646 = vadd.f32 0.0, %v645
      %647 = vmatprep.mubr.bf16.mxu0 0
      %648 = vmatmul.mubr.bf16.gmra.mrb[0].mxu0 %v417
      %v649 = vpop.f32.mrb[0].mxu0
      %v650 = vadd.f32 0.0, %v649
      %v651 = vpop.f32.mrb[0].mxu0
      %v652 = vadd.f32 0.0, %v651
      %v653 = vpop.f32.mrb[0].mxu0
      %v654 = vadd.f32 0.0, %v653
      %v655 = vpop.f32.mrb[0].mxu0
      %v656 = vadd.f32 0.0, %v655
      %657 = vmatprep.mubr.bf16.mxu0 0
      %658 = vmatmul.mubr.bf16.gmra.mrb[0].mxu0 %v418
      %v659 = vpop.f32.mrb[0].mxu0
      %v660 = vadd.f32 0.0, %v659
      %v661 = vpop.f32.mrb[0].mxu0
      %v662 = vadd.f32 0.0, %v661
      %v663 = vpop.f32.mrb[0].mxu0
      %v664 = vadd.f32 0.0, %v663
      %v665 = vpop.f32.mrb[0].mxu0
      %v666 = vadd.f32 0.0, %v665
      %667 = vdwg.mxu0
      %668 = vmatprep.subr.bf16.mxu0 0
      %669 = vmatpush1.bf16.msra.mxu0 %v509
      %670 = vmatprep.subr.bf16.mxu0 0
      %671 = vmatpush1.bf16.msra.mxu0 %v512
      %672 = vmatprep.subr.bf16.mxu0 0
      %673 = vmatpush1.bf16.msra.mxu0 %v515
      %674 = vmatprep.subr.bf16.mxu0 0
      %675 = vmatpush1.bf16.msra.mxu0 %v518
      %676 = vmatprep.subr.bf16.mxu0 0
      %677 = vmatpush1.bf16.msra.mxu0 %v521
      %678 = vmatprep.subr.bf16.mxu0 0
      %679 = vmatpush1.bf16.msra.mxu0 %v524
      %680 = vmatprep.subr.bf16.mxu0 0
      %681 = vmatpush1.bf16.msra.mxu0 %v527
      %682 = vmatprep.subr.bf16.mxu0 0
      %683 = vmatpush1.bf16.msra.mxu0 %v530
      %684 = vmatprep.subr.bf16.mxu0 0
      %685 = vmatpush1.bf16.msra.mxu0 0
      %686 = vmatprep.subr.bf16.mxu0 0
      %687 = vmatpush1.bf16.msra.mxu0 0
      %688 = vmatprep.subr.bf16.mxu0 0
      %689 = vmatpush1.bf16.msra.mxu0 0
      %690 = vmatprep.subr.bf16.mxu0 0
      %691 = vmatpush1.bf16.msra.mxu0 0
      %692 = vmatprep.subr.bf16.mxu0 0
      %693 = vmatpush1.bf16.msra.mxu0 0
      %694 = vmatprep.subr.bf16.mxu0 0
      %695 = vmatpush1.bf16.msra.mxu0 0
      %696 = vmatprep.subr.bf16.mxu0 0
      %697 = vmatpush1.bf16.msra.mxu0 0
      %698 = vmatprep.subr.bf16.mxu0 0
      %699 = vmatpush1.bf16.msra.mxu0 0
      %700 = vmatprep.mubr.bf16.mxu0 0
      %701 = vmatmul.mubr.bf16.gmra.mrb[0].mxu0 %v411
      %v702 = vpop.f32.mrb[0].mxu0
      %v703 = vadd.f32 0.0, %v702
      %v704 = vpop.f32.mrb[0].mxu0
      %v705 = vpop.f32.mrb[0].mxu0
      %v706 = vadd.f32 0.0, %v705
      %v707 = vpop.f32.mrb[0].mxu0
      %708 = vmatprep.mubr.bf16.mxu0 0
      %709 = vmatmul.mubr.bf16.gmra.mrb[0].mxu0 %v412
      %v710 = vpop.f32.mrb[0].mxu0
      %v711 = vadd.f32 0.0, %v710
      %v712 = vpop.f32.mrb[0].mxu0
      %v713 = vpop.f32.mrb[0].mxu0
      %v714 = vadd.f32 0.0, %v713
      %v715 = vpop.f32.mrb[0].mxu0
      %716 = vmatprep.mubr.bf16.mxu0 0
      %717 = vmatmul.mubr.bf16.gmra.mrb[0].mxu0 %v413
      %v718 = vpop.f32.mrb[0].mxu0
      %v719 = vadd.f32 0.0, %v718
      %v720 = vpop.f32.mrb[0].mxu0
      %v721 = vpop.f32.mrb[0].mxu0
      %v722 = vadd.f32 0.0, %v721
      %v723 = vpop.f32.mrb[0].mxu0
      %724 = vmatprep.mubr.bf16.mxu0 0
      %725 = vmatmul.mubr.bf16.gmra.mrb[0].mxu0 %v414
      %v726 = vpop.f32.mrb[0].mxu0
      %v727 = vadd.f32 0.0, %v726
      %v728 = vpop.f32.mrb[0].mxu0
      %v729 = vpop.f32.mrb[0].mxu0
      %v730 = vadd.f32 0.0, %v729
      %v731 = vpop.f32.mrb[0].mxu0
      %732 = vmatprep.mubr.bf16.mxu0 0
      %733 = vmatmul.mubr.bf16.gmra.mrb[0].mxu0 %v415
      %v734 = vpop.f32.mrb[0].mxu0
      %v735 = vadd.f32 0.0, %v734
      %v736 = vpop.f32.mrb[0].mxu0
      %v737 = vpop.f32.mrb[0].mxu0
      %v738 = vadd.f32 0.0, %v737
      %v739 = vpop.f32.mrb[0].mxu0
      %740 = vmatprep.mubr.bf16.mxu0 0
      %741 = vmatmul.mubr.bf16.gmra.mrb[0].mxu0 %v416
      %v742 = vpop.f32.mrb[0].mxu0
      %v743 = vadd.f32 0.0, %v742
      %v744 = vpop.f32.mrb[0].mxu0
      %v745 = vpop.f32.mrb[0].mxu0
      %v746 = vadd.f32 0.0, %v745
      %v747 = vpop.f32.mrb[0].mxu0
      %748 = vmatprep.mubr.bf16.mxu0 0
      %749 = vmatmul.mubr.bf16.gmra.mrb[0].mxu0 %v417
      %v750 = vpop.f32.mrb[0].mxu0
      %v751 = vadd.f32 0.0, %v750
      %v752 = vpop.f32.mrb[0].mxu0
      %v753 = vpop.f32.mrb[0].mxu0
      %v754 = vadd.f32 0.0, %v753
      %v755 = vpop.f32.mrb[0].mxu0
      %756 = vmatprep.mubr.bf16.mxu0 0
      %757 = vmatmul.mubr.bf16.gmra.mrb[0].mxu0 %v418
      %v758 = vpop.f32.mrb[0].mxu0
      %v759 = vadd.f32 0.0, %v758
      %v760 = vpop.f32.mrb[0].mxu0
      %v761 = vpop.f32.mrb[0].mxu0
      %v762 = vadd.f32 0.0, %v761
      %v763 = vpop.f32.mrb[0].mxu0
      %764 = vdwg.mxu0
      %v765 = vrot.slane %v590, 7
      %v766 = vrot.slane %v600, 7
      %v767 = vrot.slane %v610, 7
      %v768 = vrot.slane %v620, 7
      %v769 = vrot.slane %v630, 7
      %v770 = vrot.slane %v640, 7
      %v771 = vrot.slane %v650, 7
      %v772 = vrot.slane %v660, 7
      %v773 = vrot.slane %v594, 7
      %v774 = vrot.slane %v604, 7
      %v775 = vrot.slane %v614, 7
      %v776 = vrot.slane %v624, 7
      %v777 = vrot.slane %v634, 7
      %v778 = vrot.slane %v644, 7
      %v779 = vrot.slane %v654, 7
      %v780 = vrot.slane %v664, 7
      %vm781 = vcmp.lt.s32.totalorder %v263, 1
      %v782 = vsel %vm781, %v765, %v773
      %v783 = vsel %vm781, %v766, %v774
      %v784 = vsel %vm781, %v767, %v775
      %v785 = vsel %vm781, %v768, %v776
      %v786 = vsel %vm781, %v769, %v777
      %v787 = vsel %vm781, %v770, %v778
      %v788 = vsel %vm781, %v771, %v779
      %v789 = vsel %vm781, %v772, %v780
      %v790 = vsel %vm781, %v773, %v765
      %v791 = vsel %vm781, %v774, %v766
      %v792 = vsel %vm781, %v775, %v767
      %v793 = vsel %vm781, %v776, %v768
      %v794 = vsel %vm781, %v777, %v769
      %v795 = vsel %vm781, %v778, %v770
      %v796 = vsel %vm781, %v779, %v771
      %v797 = vsel %vm781, %v780, %v772
      %v798 = vsel %vm265, 1, 0
      %v799 = vsel %vm266, 1, 0
      %vm800 = vcmp.eq.s32.totalorder %v798, 1
      %vm801 = vcmp.eq.s32.totalorder %v799, 1
      %v802 = vsel %vm800, %v790, 0.0
      %v803 = vsel %vm801, %v782, 0.0
      %v804 = vsel %vm800, %v791, 0.0
      %v805 = vsel %vm801, %v783, 0.0
      %v806 = vsel %vm800, %v792, 0.0
      %v807 = vsel %vm801, %v784, 0.0
      %v808 = vsel %vm800, %v793, 0.0
      %v809 = vsel %vm801, %v785, 0.0
      %v810 = vsel %vm800, %v794, 0.0
      %v811 = vsel %vm801, %v786, 0.0
      %v812 = vsel %vm800, %v795, 0.0
      %v813 = vsel %vm801, %v787, 0.0
      %v814 = vsel %vm800, %v796, 0.0
      %v815 = vsel %vm801, %v788, 0.0
      %v816 = vsel %vm800, %v797, 0.0
      %v817 = vsel %vm801, %v789, 0.0
      %v818 = vadd.f32 %v592, %v802
      %v819 = vadd.f32 %v596, %v803
      %v820 = vadd.f32 %v602, %v804
      %v821 = vadd.f32 %v606, %v805
      %v822 = vadd.f32 %v612, %v806
      %v823 = vadd.f32 %v616, %v807
      %v824 = vadd.f32 %v622, %v808
      %v825 = vadd.f32 %v626, %v809
      %v826 = vadd.f32 %v632, %v810
      %v827 = vadd.f32 %v636, %v811
      %v828 = vadd.f32 %v642, %v812
      %v829 = vadd.f32 %v646, %v813
      %v830 = vadd.f32 %v652, %v814
      %v831 = vadd.f32 %v656, %v815
      %v832 = vadd.f32 %v662, %v816
      %v833 = vadd.f32 %v666, %v817
      %v834 = vrot.slane %v703, 1
      %v835 = vrot.slane %v711, 1
      %v836 = vrot.slane %v719, 1
      %v837 = vrot.slane %v727, 1
      %v838 = vrot.slane %v735, 1
      %v839 = vrot.slane %v743, 1
      %v840 = vrot.slane %v751, 1
      %v841 = vrot.slane %v759, 1
      %v842 = vrot.slane %v706, 1
      %v843 = vrot.slane %v714, 1
      %v844 = vrot.slane %v722, 1
      %v845 = vrot.slane %v730, 1
      %v846 = vrot.slane %v738, 1
      %v847 = vrot.slane %v746, 1
      %v848 = vrot.slane %v754, 1
      %v849 = vrot.slane %v762, 1
      %vm850 = vcmp.lt.s32.totalorder %v263, 7
      %v851 = vsel %vm850, %v834, %v842
      %v852 = vsel %vm850, %v835, %v843
      %v853 = vsel %vm850, %v836, %v844
      %v854 = vsel %vm850, %v837, %v845
      %v855 = vsel %vm850, %v838, %v846
      %v856 = vsel %vm850, %v839, %v847
      %v857 = vsel %vm850, %v840, %v848
      %v858 = vsel %vm850, %v841, %v849
      %v859 = vsel %vm850, %v842, %v834
      %v860 = vsel %vm850, %v843, %v835
      %v861 = vsel %vm850, %v844, %v836
      %v862 = vsel %vm850, %v845, %v837
      %v863 = vsel %vm850, %v846, %v838
      %v864 = vsel %vm850, %v847, %v839
      %v865 = vsel %vm850, %v848, %v840
      %v866 = vsel %vm850, %v849, %v841
      %v867 = vsel %vm267, 1, 0
      %v868 = vsel %vm268, 1, 0
      %vm869 = vcmp.eq.s32.totalorder %v867, 1
      %vm870 = vcmp.eq.s32.totalorder %v868, 1
      %v871 = vsel %vm869, %v851, 0.0
      %v872 = vsel %vm870, %v859, 0.0
      %v873 = vsel %vm869, %v852, 0.0
      %v874 = vsel %vm870, %v860, 0.0
      %v875 = vsel %vm869, %v853, 0.0
      %v876 = vsel %vm870, %v861, 0.0
      %v877 = vsel %vm869, %v854, 0.0
      %v878 = vsel %vm870, %v862, 0.0
      %v879 = vsel %vm869, %v855, 0.0
      %v880 = vsel %vm870, %v863, 0.0
      %v881 = vsel %vm869, %v856, 0.0
      %v882 = vsel %vm870, %v864, 0.0
      %v883 = vsel %vm869, %v857, 0.0
      %v884 = vsel %vm870, %v865, 0.0
      %v885 = vsel %vm869, %v858, 0.0
      %v886 = vsel %vm870, %v866, 0.0
      %v887 = vadd.f32 %v818, %v871
      %v888 = vadd.f32 %v819, %v872
      %v889 = vadd.f32 %v820, %v873
      %v890 = vadd.f32 %v821, %v874
      %v891 = vadd.f32 %v822, %v875
      %v892 = vadd.f32 %v823, %v876
      %v893 = vadd.f32 %v824, %v877
      %v894 = vadd.f32 %v825, %v878
      %v895 = vadd.f32 %v826, %v879
      %v896 = vadd.f32 %v827, %v880
      %v897 = vadd.f32 %v828, %v881
      %v898 = vadd.f32 %v829, %v882
      %v899 = vadd.f32 %v830, %v883
      %v900 = vadd.f32 %v831, %v884
      %v901 = vadd.f32 %v832, %v885
      %v902 = vadd.f32 %v833, %v886
      %s903 = scalar_lea.vmem [#allocation2], 32
      %v904 = vld [vmem:[%s903] sm:$0xff]
      %v905 = vld [vmem:[%s903 + $0x8] sm:$0xff]
      %v906 = vld [vmem:[%s903 + $0x10] sm:$0xff]
      %v907 = vld [vmem:[%s903 + $0x18] sm:$0xff]
      %v908 = vld [vmem:[%s903 + $0x20] sm:$0xff]
      %v909 = vld [vmem:[%s903 + $0x28] sm:$0xff]
      %v910 = vld [vmem:[%s903 + $0x30] sm:$0xff]
      %v911 = vld [vmem:[%s903 + $0x38] sm:$0xff]
      %v912 = vld [vmem:[%s903 + $0x40] sm:$0xff]
      %v913 = vld [vmem:[%s903 + $0x48] sm:$0xff]
      %v914 = vld [vmem:[%s903 + $0x50] sm:$0xff]
      %v915 = vld [vmem:[%s903 + $0x58] sm:$0xff]
      %v916 = vld [vmem:[%s903 + $0x60] sm:$0xff]
      %v917 = vld [vmem:[%s903 + $0x68] sm:$0xff]
      %v918 = vld [vmem:[%s903 + $0x70] sm:$0xff]
      %v919 = vld [vmem:[%s903 + $0x78] sm:$0xff]
      %v920 = vadd.f32 %v904, %v887
      %v921 = vadd.f32 %v905, %v888
      %v922 = vadd.f32 %v906, %v889
      %v923 = vadd.f32 %v907, %v890
      %v924 = vadd.f32 %v908, %v891
      %v925 = vadd.f32 %v909, %v892
      %v926 = vadd.f32 %v910, %v893
      %v927 = vadd.f32 %v911, %v894
      %v928 = vadd.f32 %v912, %v895
      %v929 = vadd.f32 %v913, %v896
      %v930 = vadd.f32 %v914, %v897
      %v931 = vadd.f32 %v915, %v898
      %v932 = vadd.f32 %v916, %v899
      %v933 = vadd.f32 %v917, %v900
      %v934 = vadd.f32 %v918, %v901
      %v935 = vadd.f32 %v919, %v902
      %936 = vst [vmem:[%s903] sm:$0xff] %v920
      %937 = vst [vmem:[%s903 + $0x8] sm:$0xff] %v921
      %938 = vst [vmem:[%s903 + $0x10] sm:$0xff] %v922
      %939 = vst [vmem:[%s903 + $0x18] sm:$0xff] %v923
      %940 = vst [vmem:[%s903 + $0x20] sm:$0xff] %v924
      %941 = vst [vmem:[%s903 + $0x28] sm:$0xff] %v925
      %942 = vst [vmem:[%s903 + $0x30] sm:$0xff] %v926
      %943 = vst [vmem:[%s903 + $0x38] sm:$0xff] %v927
      %944 = vst [vmem:[%s903 + $0x40] sm:$0xff] %v928
      %945 = vst [vmem:[%s903 + $0x48] sm:$0xff] %v929
      %946 = vst [vmem:[%s903 + $0x50] sm:$0xff] %v930
      %947 = vst [vmem:[%s903 + $0x58] sm:$0xff] %v931
      %948 = vst [vmem:[%s903 + $0x60] sm:$0xff] %v932
      %949 = vst [vmem:[%s903 + $0x68] sm:$0xff] %v933
      %950 = vst [vmem:[%s903 + $0x70] sm:$0xff] %v934
      %951 = vst [vmem:[%s903 + $0x78] sm:$0xff] %v935
      %s952 = scalar_lea.vmem %s1, 192
      %v953 = vld [vmem:[%s952] sm:$0xff]
      %v954 = vld [vmem:[%s952 + $0x8] sm:$0xf]
      %v955 = vld [vmem:[%s952 + $0xc] sm:$0xff]
      %v956 = vld [vmem:[%s952 + $0x14] sm:$0xf]
      %v957 = vld [vmem:[%s952 + $0x18] sm:$0xff]
      %v958 = vld [vmem:[%s952 + $0x20] sm:$0xf]
      %v959 = vld [vmem:[%s952 + $0x24] sm:$0xff]
      %v960 = vld [vmem:[%s952 + $0x2c] sm:$0xf]
      %v961 = vld [vmem:[%s952 + $0x30] sm:$0xff]
      %v962 = vld [vmem:[%s952 + $0x38] sm:$0xf]
      %v963 = vld [vmem:[%s952 + $0x3c] sm:$0xff]
      %v964 = vld [vmem:[%s952 + $0x44] sm:$0xf]
      %v965 = vld [vmem:[%s952 + $0x48] sm:$0xff]
      %v966 = vld [vmem:[%s952 + $0x50] sm:$0xf]
      %v967 = vld [vmem:[%s952 + $0x54] sm:$0xff]
      %v968 = vld [vmem:[%s952 + $0x5c] sm:$0xf]
      %v969 = vld [vmem:[%s952 + $0x60] sm:$0xff]
      %v970 = vld [vmem:[%s952 + $0x68] sm:$0xf]
      %v971 = vld [vmem:[%s952 + $0x6c] sm:$0xff]
      %v972 = vld [vmem:[%s952 + $0x74] sm:$0xf]
      %v973 = vld [vmem:[%s952 + $0x78] sm:$0xff]
      %v974 = vld [vmem:[%s952 + $0x80] sm:$0xf]
      %v975 = vld [vmem:[%s952 + $0x84] sm:$0xff]
      %v976 = vld [vmem:[%s952 + $0x8c] sm:$0xf]
      %v977 = vld [vmem:[%s952 + $0x90] sm:$0xff]
      %v978 = vld [vmem:[%s952 + $0x98] sm:$0xf]
      %v979 = vld [vmem:[%s952 + $0x9c] sm:$0xff]
      %v980 = vld [vmem:[%s952 + $0xa4] sm:$0xf]
      %v981 = vld [vmem:[%s952 + $0xa8] sm:$0xff]
      %v982 = vld [vmem:[%s952 + $0xb0] sm:$0xf]
      %v983 = vld [vmem:[%s952 + $0xb4] sm:$0xff]
      %v984 = vld [vmem:[%s952 + $0xbc] sm:$0xf]
      %v1017 = vunpack.c.l.b16 %v953
      %v1018 = vunpack.c.h.b16 %v953
      %v1019 = vunpack.c.l.b16 %v954
      %v1020 = vunpack.c.l.b16 %v955
      %v1021 = vunpack.c.h.b16 %v955
      %v1022 = vunpack.c.l.b16 %v956
      %v1023 = vunpack.c.l.b16 %v957
      %v1024 = vunpack.c.h.b16 %v957
      %v1025 = vunpack.c.l.b16 %v958
      %v1026 = vunpack.c.l.b16 %v959
      %v1027 = vunpack.c.h.b16 %v959
      %v1028 = vunpack.c.l.b16 %v960
      %v1029 = vunpack.c.l.b16 %v961
      %v1030 = vunpack.c.h.b16 %v961
      %v1031 = vunpack.c.l.b16 %v962
      %v1032 = vunpack.c.l.b16 %v963
      %v1033 = vunpack.c.h.b16 %v963
      %v1034 = vunpack.c.l.b16 %v964
      %v1035 = vunpack.c.l.b16 %v965
      %v1036 = vunpack.c.h.b16 %v965
      %v1037 = vunpack.c.l.b16 %v966
      %v1038 = vunpack.c.l.b16 %v967
      %v1039 = vunpack.c.h.b16 %v967
      %v1040 = vunpack.c.l.b16 %v968
      %v1041 = vunpack.c.l.b16 %v969
      %v1042 = vunpack.c.h.b16 %v969
      %v1043 = vunpack.c.l.b16 %v970
      %v1044 = vunpack.c.l.b16 %v971
      %v1045 = vunpack.c.h.b16 %v971
      %v1046 = vunpack.c.l.b16 %v972
      %v1047 = vunpack.c.l.b16 %v973
      %v1048 = vunpack.c.h.b16 %v973
      %v1049 = vunpack.c.l.b16 %v974
      %v1050 = vunpack.c.l.b16 %v975
      %v1051 = vunpack.c.h.b16 %v975
      %v1052 = vunpack.c.l.b16 %v976
      %v1053 = vunpack.c.l.b16 %v977
      %v1054 = vunpack.c.h.b16 %v977
      %v1055 = vunpack.c.l.b16 %v978
      %v1056 = vunpack.c.l.b16 %v979
      %v1057 = vunpack.c.h.b16 %v979
      %v1058 = vunpack.c.l.b16 %v980
      %v1059 = vunpack.c.l.b16 %v981
      %v1060 = vunpack.c.h.b16 %v981
      %v1061 = vunpack.c.l.b16 %v982
      %v1062 = vunpack.c.l.b16 %v983
      %v1063 = vunpack.c.h.b16 %v983
      %v1064 = vunpack.c.l.b16 %v984
      %v1065 = vpack.c.b16 %v1020, %v1017
      %v1066 = vpack.c.b16 %v1021, %v1018
      %v1067 = vpack.c.b16 %v1022, %v1019
      %v1068 = vpack.c.b16 %v1026, %v1023
      %v1069 = vpack.c.b16 %v1027, %v1024
      %v1070 = vpack.c.b16 %v1028, %v1025
      %v1071 = vpack.c.b16 %v1032, %v1029
      %v1072 = vpack.c.b16 %v1033, %v1030
      %v1073 = vpack.c.b16 %v1034, %v1031
      %v1074 = vpack.c.b16 %v1038, %v1035
      %v1075 = vpack.c.b16 %v1039, %v1036
      %v1076 = vpack.c.b16 %v1040, %v1037
      %v1077 = vpack.c.b16 %v1044, %v1041
      %v1078 = vpack.c.b16 %v1045, %v1042
      %v1079 = vpack.c.b16 %v1046, %v1043
      %v1080 = vpack.c.b16 %v1050, %v1047
      %v1081 = vpack.c.b16 %v1051, %v1048
      %v1082 = vpack.c.b16 %v1052, %v1049
      %v1083 = vpack.c.b16 %v1056, %v1053
      %v1084 = vpack.c.b16 %v1057, %v1054
      %v1085 = vpack.c.b16 %v1058, %v1055
      %v1086 = vpack.c.b16 %v1062, %v1059
      %v1087 = vpack.c.b16 %v1063, %v1060
      %v1088 = vpack.c.b16 %v1064, %v1061
      %1113 = vmatprep.subr.bf16.mxu0 %v1066
      %1114 = vmatpush1.bf16.msra.mxu0 %v1065
      %1115 = vmatprep.subr.bf16.mxu0 %v1069
      %1116 = vmatpush1.bf16.msra.mxu0 %v1068
      %1117 = vmatprep.subr.bf16.mxu0 %v1072
      %1118 = vmatpush1.bf16.msra.mxu0 %v1071
      %1119 = vmatprep.subr.bf16.mxu0 %v1075
      %1120 = vmatpush1.bf16.msra.mxu0 %v1074
      %1121 = vmatprep.subr.bf16.mxu0 %v1078
      %1122 = vmatpush1.bf16.msra.mxu0 %v1077
      %1123 = vmatprep.subr.bf16.mxu0 %v1081
      %1124 = vmatpush1.bf16.msra.mxu0 %v1080
      %1125 = vmatprep.subr.bf16.mxu0 %v1084
      %1126 = vmatpush1.bf16.msra.mxu0 %v1083
      %1127 = vmatprep.subr.bf16.mxu0 %v1087
      %1128 = vmatpush1.bf16.msra.mxu0 %v1086
      %1129 = vmatprep.subr.bf16.mxu0 0
      %1130 = vmatpush1.bf16.msra.mxu0 0
      %1131 = vmatprep.subr.bf16.mxu0 0
      %1132 = vmatpush1.bf16.msra.mxu0 0
      %1133 = vmatprep.subr.bf16.mxu0 0
      %1134 = vmatpush1.bf16.msra.mxu0 0
      %1135 = vmatprep.subr.bf16.mxu0 0
      %1136 = vmatpush1.bf16.msra.mxu0 0
      %1137 = vmatprep.subr.bf16.mxu0 0
      %1138 = vmatpush1.bf16.msra.mxu0 0
      %1139 = vmatprep.subr.bf16.mxu0 0
      %1140 = vmatpush1.bf16.msra.mxu0 0
      %1141 = vmatprep.subr.bf16.mxu0 0
      %1142 = vmatpush1.bf16.msra.mxu0 0
      %1143 = vmatprep.subr.bf16.mxu0 0
      %1144 = vmatpush1.bf16.msra.mxu0 0
      %1145 = vmatprep.mubr.bf16.mxu0 0
      %1146 = vmatmul.mubr.bf16.gmra.mrb[0].mxu0 %v411
      %v1147 = vpop.f32.mrb[0].mxu0
      %v1148 = vadd.f32 0.0, %v1147
      %v1149 = vpop.f32.mrb[0].mxu0
      %v1150 = vadd.f32 0.0, %v1149
      %v1151 = vpop.f32.mrb[0].mxu0
      %v1152 = vadd.f32 0.0, %v1151
      %v1153 = vpop.f32.mrb[0].mxu0
      %v1154 = vadd.f32 0.0, %v1153
      %1155 = vmatprep.mubr.bf16.mxu0 0
      %1156 = vmatmul.mubr.bf16.gmra.mrb[0].mxu0 %v412
      %v1157 = vpop.f32.mrb[0].mxu0
      %v1158 = vadd.f32 0.0, %v1157
      %v1159 = vpop.f32.mrb[0].mxu0
      %v1160 = vadd.f32 0.0, %v1159
      %v1161 = vpop.f32.mrb[0].mxu0
      %v1162 = vadd.f32 0.0, %v1161
      %v1163 = vpop.f32.mrb[0].mxu0
      %v1164 = vadd.f32 0.0, %v1163
      %1165 = vmatprep.mubr.bf16.mxu0 0
      %1166 = vmatmul.mubr.bf16.gmra.mrb[0].mxu0 %v413
      %v1167 = vpop.f32.mrb[0].mxu0
      %v1168 = vadd.f32 0.0, %v1167
      %v1169 = vpop.f32.mrb[0].mxu0
      %v1170 = vadd.f32 0.0, %v1169
      %v1171 = vpop.f32.mrb[0].mxu0
      %v1172 = vadd.f32 0.0, %v1171
      %v1173 = vpop.f32.mrb[0].mxu0
      %v1174 = vadd.f32 0.0, %v1173
      %1175 = vmatprep.mubr.bf16.mxu0 0
      %1176 = vmatmul.mubr.bf16.gmra.mrb[0].mxu0 %v414
      %v1177 = vpop.f32.mrb[0].mxu0
      %v1178 = vadd.f32 0.0, %v1177
      %v1179 = vpop.f32.mrb[0].mxu0
      %v1180 = vadd.f32 0.0, %v1179
      %v1181 = vpop.f32.mrb[0].mxu0
      %v1182 = vadd.f32 0.0, %v1181
      %v1183 = vpop.f32.mrb[0].mxu0
      %v1184 = vadd.f32 0.0, %v1183
      %1185 = vmatprep.mubr.bf16.mxu0 0
      %1186 = vmatmul.mubr.bf16.gmra.mrb[0].mxu0 %v415
      %v1187 = vpop.f32.mrb[0].mxu0
      %v1188 = vadd.f32 0.0, %v1187
      %v1189 = vpop.f32.mrb[0].mxu0
      %v1190 = vadd.f32 0.0, %v1189
      %v1191 = vpop.f32.mrb[0].mxu0
      %v1192 = vadd.f32 0.0, %v1191
      %v1193 = vpop.f32.mrb[0].mxu0
      %v1194 = vadd.f32 0.0, %v1193
      %1195 = vmatprep.mubr.bf16.mxu0 0
      %1196 = vmatmul.mubr.bf16.gmra.mrb[0].mxu0 %v416
      %v1197 = vpop.f32.mrb[0].mxu0
      %v1198 = vadd.f32 0.0, %v1197
      %v1199 = vpop.f32.mrb[0].mxu0
      %v1200 = vadd.f32 0.0, %v1199
      %v1201 = vpop.f32.mrb[0].mxu0
      %v1202 = vadd.f32 0.0, %v1201
      %v1203 = vpop.f32.mrb[0].mxu0
      %v1204 = vadd.f32 0.0, %v1203
      %1205 = vmatprep.mubr.bf16.mxu0 0
      %1206 = vmatmul.mubr.bf16.gmra.mrb[0].mxu0 %v417
      %v1207 = vpop.f32.mrb[0].mxu0
      %v1208 = vadd.f32 0.0, %v1207
      %v1209 = vpop.f32.mrb[0].mxu0
      %v1210 = vadd.f32 0.0, %v1209
      %v1211 = vpop.f32.mrb[0].mxu0
      %v1212 = vadd.f32 0.0, %v1211
      %v1213 = vpop.f32.mrb[0].mxu0
      %v1214 = vadd.f32 0.0, %v1213
      %1215 = vmatprep.mubr.bf16.mxu0 0
      %1216 = vmatmul.mubr.bf16.gmra.mrb[0].mxu0 %v418
      %v1217 = vpop.f32.mrb[0].mxu0
      %v1218 = vadd.f32 0.0, %v1217
      %v1219 = vpop.f32.mrb[0].mxu0
      %v1220 = vadd.f32 0.0, %v1219
      %v1221 = vpop.f32.mrb[0].mxu0
      %v1222 = vadd.f32 0.0, %v1221
      %v1223 = vpop.f32.mrb[0].mxu0
      %v1224 = vadd.f32 0.0, %v1223
      %1225 = vdwg.mxu0
      %1226 = vmatprep.subr.bf16.mxu0 0
      %1227 = vmatpush1.bf16.msra.mxu0 %v1067
      %1228 = vmatprep.subr.bf16.mxu0 0
      %1229 = vmatpush1.bf16.msra.mxu0 %v1070
      %1230 = vmatprep.subr.bf16.mxu0 0
      %1231 = vmatpush1.bf16.msra.mxu0 %v1073
      %1232 = vmatprep.subr.bf16.mxu0 0
      %1233 = vmatpush1.bf16.msra.mxu0 %v1076
      %1234 = vmatprep.subr.bf16.mxu0 0
      %1235 = vmatpush1.bf16.msra.mxu0 %v1079
      %1236 = vmatprep.subr.bf16.mxu0 0
      %1237 = vmatpush1.bf16.msra.mxu0 %v1082
      %1238 = vmatprep.subr.bf16.mxu0 0
      %1239 = vmatpush1.bf16.msra.mxu0 %v1085
      %1240 = vmatprep.subr.bf16.mxu0 0
      %1241 = vmatpush1.bf16.msra.mxu0 %v1088
      %1242 = vmatprep.subr.bf16.mxu0 0
      %1243 = vmatpush1.bf16.msra.mxu0 0
      %1244 = vmatprep.subr.bf16.mxu0 0
      %1245 = vmatpush1.bf16.msra.mxu0 0
      %1246 = vmatprep.subr.bf16.mxu0 0
      %1247 = vmatpush1.bf16.msra.mxu0 0
      %1248 = vmatprep.subr.bf16.mxu0 0
      %1249 = vmatpush1.bf16.msra.mxu0 0
      %1250 = vmatprep.subr.bf16.mxu0 0
      %1251 = vmatpush1.bf16.msra.mxu0 0
      %1252 = vmatprep.subr.bf16.mxu0 0
      %1253 = vmatpush1.bf16.msra.mxu0 0
      %1254 = vmatprep.subr.bf16.mxu0 0
      %1255 = vmatpush1.bf16.msra.mxu0 0
      %1256 = vmatprep.subr.bf16.mxu0 0
      %1257 = vmatpush1.bf16.msra.mxu0 0
      %1258 = vmatprep.mubr.bf16.mxu0 0
      %1259 = vmatmul.mubr.bf16.gmra.mrb[0].mxu0 %v411
      %v1260 = vpop.f32.mrb[0].mxu0
      %v1261 = vadd.f32 0.0, %v1260
      %v1262 = vpop.f32.mrb[0].mxu0
      %v1263 = vpop.f32.mrb[0].mxu0
      %v1264 = vadd.f32 0.0, %v1263
      %v1265 = vpop.f32.mrb[0].mxu0
      %1266 = vmatprep.mubr.bf16.mxu0 0
      %1267 = vmatmul.mubr.bf16.gmra.mrb[0].mxu0 %v412
      %v1268 = vpop.f32.mrb[0].mxu0
      %v1269 = vadd.f32 0.0, %v1268
      %v1270 = vpop.f32.mrb[0].mxu0
      %v1271 = vpop.f32.mrb[0].mxu0
      %v1272 = vadd.f32 0.0, %v1271
      %v1273 = vpop.f32.mrb[0].mxu0
      %1274 = vmatprep.mubr.bf16.mxu0 0
      %1275 = vmatmul.mubr.bf16.gmra.mrb[0].mxu0 %v413
      %v1276 = vpop.f32.mrb[0].mxu0
      %v1277 = vadd.f32 0.0, %v1276
      %v1278 = vpop.f32.mrb[0].mxu0
      %v1279 = vpop.f32.mrb[0].mxu0
      %v1280 = vadd.f32 0.0, %v1279
      %v1281 = vpop.f32.mrb[0].mxu0
      %1282 = vmatprep.mubr.bf16.mxu0 0
      %1283 = vmatmul.mubr.bf16.gmra.mrb[0].mxu0 %v414
      %v1284 = vpop.f32.mrb[0].mxu0
      %v1285 = vadd.f32 0.0, %v1284
      %v1286 = vpop.f32.mrb[0].mxu0
      %v1287 = vpop.f32.mrb[0].mxu0
      %v1288 = vadd.f32 0.0, %v1287
      %v1289 = vpop.f32.mrb[0].mxu0
      %1290 = vmatprep.mubr.bf16.mxu0 0
      %1291 = vmatmul.mubr.bf16.gmra.mrb[0].mxu0 %v415
      %v1292 = vpop.f32.mrb[0].mxu0
      %v1293 = vadd.f32 0.0, %v1292
      %v1294 = vpop.f32.mrb[0].mxu0
      %v1295 = vpop.f32.mrb[0].mxu0
      %v1296 = vadd.f32 0.0, %v1295
      %v1297 = vpop.f32.mrb[0].mxu0
      %1298 = vmatprep.mubr.bf16.mxu0 0
      %1299 = vmatmul.mubr.bf16.gmra.mrb[0].mxu0 %v416
      %v1300 = vpop.f32.mrb[0].mxu0
      %v1301 = vadd.f32 0.0, %v1300
      %v1302 = vpop.f32.mrb[0].mxu0
      %v1303 = vpop.f32.mrb[0].mxu0
      %v1304 = vadd.f32 0.0, %v1303
      %v1305 = vpop.f32.mrb[0].mxu0
      %1306 = vmatprep.mubr.bf16.mxu0 0
      %1307 = vmatmul.mubr.bf16.gmra.mrb[0].mxu0 %v417
      %v1308 = vpop.f32.mrb[0].mxu0
      %v1309 = vadd.f32 0.0, %v1308
      %v1310 = vpop.f32.mrb[0].mxu0
      %v1311 = vpop.f32.mrb[0].mxu0
      %v1312 = vadd.f32 0.0, %v1311
      %v1313 = vpop.f32.mrb[0].mxu0
      %1314 = vmatprep.mubr.bf16.mxu0 0
      %1315 = vmatmul.mubr.bf16.gmra.mrb[0].mxu0 %v418
      %v1316 = vpop.f32.mrb[0].mxu0
      %v1317 = vadd.f32 0.0, %v1316
      %v1318 = vpop.f32.mrb[0].mxu0
      %v1319 = vpop.f32.mrb[0].mxu0
      %v1320 = vadd.f32 0.0, %v1319
      %v1321 = vpop.f32.mrb[0].mxu0
      %1322 = vdwg.mxu0
      %v1323 = vrot.slane %v1148, 7
      %v1324 = vrot.slane %v1158, 7
      %v1325 = vrot.slane %v1168, 7
      %v1326 = vrot.slane %v1178, 7
      %v1327 = vrot.slane %v1188, 7
      %v1328 = vrot.slane %v1198, 7
      %v1329 = vrot.slane %v1208, 7
      %v1330 = vrot.slane %v1218, 7
      %v1331 = vrot.slane %v1152, 7
      %v1332 = vrot.slane %v1162, 7
      %v1333 = vrot.slane %v1172, 7
      %v1334 = vrot.slane %v1182, 7
      %v1335 = vrot.slane %v1192, 7
      %v1336 = vrot.slane %v1202, 7
      %v1337 = vrot.slane %v1212, 7
      %v1338 = vrot.slane %v1222, 7
      %v1339 = vsel %vm781, %v1323, %v1331
      %v1340 = vsel %vm781, %v1324, %v1332
      %v1341 = vsel %vm781, %v1325, %v1333
      %v1342 = vsel %vm781, %v1326, %v1334
      %v1343 = vsel %vm781, %v1327, %v1335
      %v1344 = vsel %vm781, %v1328, %v1336
      %v1345 = vsel %vm781, %v1329, %v1337
      %v1346 = vsel %vm781, %v1330, %v1338
      %v1347 = vsel %vm781, %v1331, %v1323
      %v1348 = vsel %vm781, %v1332, %v1324
      %v1349 = vsel %vm781, %v1333, %v1325
      %v1350 = vsel %vm781, %v1334, %v1326
      %v1351 = vsel %vm781, %v1335, %v1327
      %v1352 = vsel %vm781, %v1336, %v1328
      %v1353 = vsel %vm781, %v1337, %v1329
      %v1354 = vsel %vm781, %v1338, %v1330
      %v1355 = vsel %vm800, %v1347, 0.0
      %v1356 = vsel %vm801, %v1339, 0.0
      %v1357 = vsel %vm800, %v1348, 0.0
      %v1358 = vsel %vm801, %v1340, 0.0
      %v1359 = vsel %vm800, %v1349, 0.0
      %v1360 = vsel %vm801, %v1341, 0.0
      %v1361 = vsel %vm800, %v1350, 0.0
      %v1362 = vsel %vm801, %v1342, 0.0
      %v1363 = vsel %vm800, %v1351, 0.0
      %v1364 = vsel %vm801, %v1343, 0.0
      %v1365 = vsel %vm800, %v1352, 0.0
      %v1366 = vsel %vm801, %v1344, 0.0
      %v1367 = vsel %vm800, %v1353, 0.0
      %v1368 = vsel %vm801, %v1345, 0.0
      %v1369 = vsel %vm800, %v1354, 0.0
      %v1370 = vsel %vm801, %v1346, 0.0
      %v1371 = vadd.f32 %v1150, %v1355
      %v1372 = vadd.f32 %v1154, %v1356
      %v1373 = vadd.f32 %v1160, %v1357
      %v1374 = vadd.f32 %v1164, %v1358
      %v1375 = vadd.f32 %v1170, %v1359
      %v1376 = vadd.f32 %v1174, %v1360
      %v1377 = vadd.f32 %v1180, %v1361
      %v1378 = vadd.f32 %v1184, %v1362
      %v1379 = vadd.f32 %v1190, %v1363
      %v1380 = vadd.f32 %v1194, %v1364
      %v1381 = vadd.f32 %v1200, %v1365
      %v1382 = vadd.f32 %v1204, %v1366
      %v1383 = vadd.f32 %v1210, %v1367
      %v1384 = vadd.f32 %v1214, %v1368
      %v1385 = vadd.f32 %v1220, %v1369
      %v1386 = vadd.f32 %v1224, %v1370
      %v1387 = vrot.slane %v1261, 1
      %v1388 = vrot.slane %v1269, 1
      %v1389 = vrot.slane %v1277, 1
      %v1390 = vrot.slane %v1285, 1
      %v1391 = vrot.slane %v1293, 1
      %v1392 = vrot.slane %v1301, 1
      %v1393 = vrot.slane %v1309, 1
      %v1394 = vrot.slane %v1317, 1
      %v1395 = vrot.slane %v1264, 1
      %v1396 = vrot.slane %v1272, 1
      %v1397 = vrot.slane %v1280, 1
      %v1398 = vrot.slane %v1288, 1
      %v1399 = vrot.slane %v1296, 1
      %v1400 = vrot.slane %v1304, 1
      %v1401 = vrot.slane %v1312, 1
      %v1402 = vrot.slane %v1320, 1
      %v1403 = vsel %vm850, %v1387, %v1395
      %v1404 = vsel %vm850, %v1388, %v1396
      %v1405 = vsel %vm850, %v1389, %v1397
      %v1406 = vsel %vm850, %v1390, %v1398
      %v1407 = vsel %vm850, %v1391, %v1399
      %v1408 = vsel %vm850, %v1392, %v1400
      %v1409 = vsel %vm850, %v1393, %v1401
      %v1410 = vsel %vm850, %v1394, %v1402
      %v1411 = vsel %vm850, %v1395, %v1387
      %v1412 = vsel %vm850, %v1396, %v1388
      %v1413 = vsel %vm850, %v1397, %v1389
      %v1414 = vsel %vm850, %v1398, %v1390
      %v1415 = vsel %vm850, %v1399, %v1391
      %v1416 = vsel %vm850, %v1400, %v1392
      %v1417 = vsel %vm850, %v1401, %v1393
      %v1418 = vsel %vm850, %v1402, %v1394
      %v1419 = vsel %vm869, %v1403, 0.0
      %v1420 = vsel %vm870, %v1411, 0.0
      %v1421 = vsel %vm869, %v1404, 0.0
      %v1422 = vsel %vm870, %v1412, 0.0
      %v1423 = vsel %vm869, %v1405, 0.0
      %v1424 = vsel %vm870, %v1413, 0.0
      %v1425 = vsel %vm869, %v1406, 0.0
      %v1426 = vsel %vm870, %v1414, 0.0
      %v1427 = vsel %vm869, %v1407, 0.0
      %v1428 = vsel %vm870, %v1415, 0.0
      %v1429 = vsel %vm869, %v1408, 0.0
      %v1430 = vsel %vm870, %v1416, 0.0
      %v1431 = vsel %vm869, %v1409, 0.0
      %v1432 = vsel %vm870, %v1417, 0.0
      %v1433 = vsel %vm869, %v1410, 0.0
      %v1434 = vsel %vm870, %v1418, 0.0
      %v1435 = vadd.f32 %v1371, %v1419
      %v1436 = vadd.f32 %v1372, %v1420
      %v1437 = vadd.f32 %v1373, %v1421
      %v1438 = vadd.f32 %v1374, %v1422
      %v1439 = vadd.f32 %v1375, %v1423
      %v1440 = vadd.f32 %v1376, %v1424
      %v1441 = vadd.f32 %v1377, %v1425
      %v1442 = vadd.f32 %v1378, %v1426
      %v1443 = vadd.f32 %v1379, %v1427
      %v1444 = vadd.f32 %v1380, %v1428
      %v1445 = vadd.f32 %v1381, %v1429
      %v1446 = vadd.f32 %v1382, %v1430
      %v1447 = vadd.f32 %v1383, %v1431
      %v1448 = vadd.f32 %v1384, %v1432
      %v1449 = vadd.f32 %v1385, %v1433
      %v1450 = vadd.f32 %v1386, %v1434
      %s1451 = scalar_lea.vmem [#allocation2], 16
      %v1452 = vld [vmem:[%s1451] sm:$0xff]
      %v1453 = vld [vmem:[%s1451 + $0x8] sm:$0xff]
      %v1454 = vld [vmem:[%s1451 + $0x10] sm:$0xff]
      %v1455 = vld [vmem:[%s1451 + $0x18] sm:$0xff]
      %v1456 = vld [vmem:[%s1451 + $0x20] sm:$0xff]
      %v1457 = vld [vmem:[%s1451 + $0x28] sm:$0xff]
      %v1458 = vld [vmem:[%s1451 + $0x30] sm:$0xff]
      %v1459 = vld [vmem:[%s1451 + $0x38] sm:$0xff]
      %v1460 = vld [vmem:[%s1451 + $0x40] sm:$0xff]
      %v1461 = vld [vmem:[%s1451 + $0x48] sm:$0xff]
      %v1462 = vld [vmem:[%s1451 + $0x50] sm:$0xff]
      %v1463 = vld [vmem:[%s1451 + $0x58] sm:$0xff]
      %v1464 = vld [vmem:[%s1451 + $0x60] sm:$0xff]
      %v1465 = vld [vmem:[%s1451 + $0x68] sm:$0xff]
      %v1466 = vld [vmem:[%s1451 + $0x70] sm:$0xff]
      %v1467 = vld [vmem:[%s1451 + $0x78] sm:$0xff]
      %v1468 = vadd.f32 %v1452, %v1435
      %v1469 = vadd.f32 %v1453, %v1436
      %v1470 = vadd.f32 %v1454, %v1437
      %v1471 = vadd.f32 %v1455, %v1438
      %v1472 = vadd.f32 %v1456, %v1439
      %v1473 = vadd.f32 %v1457, %v1440
      %v1474 = vadd.f32 %v1458, %v1441
      %v1475 = vadd.f32 %v1459, %v1442
      %v1476 = vadd.f32 %v1460, %v1443
      %v1477 = vadd.f32 %v1461, %v1444
      %v1478 = vadd.f32 %v1462, %v1445
      %v1479 = vadd.f32 %v1463, %v1446
      %v1480 = vadd.f32 %v1464, %v1447
      %v1481 = vadd.f32 %v1465, %v1448
      %v1482 = vadd.f32 %v1466, %v1449
      %v1483 = vadd.f32 %v1467, %v1450
      %1484 = vst [vmem:[%s1451] sm:$0xff] %v1468
      %1485 = vst [vmem:[%s1451 + $0x8] sm:$0xff] %v1469
      %1486 = vst [vmem:[%s1451 + $0x10] sm:$0xff] %v1470
      %1487 = vst [vmem:[%s1451 + $0x18] sm:$0xff] %v1471
      %1488 = vst [vmem:[%s1451 + $0x20] sm:$0xff] %v1472
      %1489 = vst [vmem:[%s1451 + $0x28] sm:$0xff] %v1473
      %1490 = vst [vmem:[%s1451 + $0x30] sm:$0xff] %v1474
      %1491 = vst [vmem:[%s1451 + $0x38] sm:$0xff] %v1475
      %1492 = vst [vmem:[%s1451 + $0x40] sm:$0xff] %v1476
      %1493 = vst [vmem:[%s1451 + $0x48] sm:$0xff] %v1477
      %1494 = vst [vmem:[%s1451 + $0x50] sm:$0xff] %v1478
      %1495 = vst [vmem:[%s1451 + $0x58] sm:$0xff] %v1479
      %1496 = vst [vmem:[%s1451 + $0x60] sm:$0xff] %v1480
      %1497 = vst [vmem:[%s1451 + $0x68] sm:$0xff] %v1481
      %1498 = vst [vmem:[%s1451 + $0x70] sm:$0xff] %v1482
      %1499 = vst [vmem:[%s1451 + $0x78] sm:$0xff] %v1483
      %s1500 = scalar_lea.vmem %s1, 384
      %v1501 = vld [vmem:[%s1500] sm:$0xff]
      %v1502 = vld [vmem:[%s1500 + $0x8] sm:$0xf]
      %v1503 = vld [vmem:[%s1500 + $0xc] sm:$0xff]
      %v1504 = vld [vmem:[%s1500 + $0x14] sm:$0xf]
      %v1505 = vld [vmem:[%s1500 + $0x18] sm:$0xff]
      %v1506 = vld [vmem:[%s1500 + $0x20] sm:$0xf]
      %v1507 = vld [vmem:[%s1500 + $0x24] sm:$0xff]
      %v1508 = vld [vmem:[%s1500 + $0x2c] sm:$0xf]
      %v1509 = vld [vmem:[%s1500 + $0x30] sm:$0xff]
      %v1510 = vld [vmem:[%s1500 + $0x38] sm:$0xf]
      %v1511 = vld [vmem:[%s1500 + $0x3c] sm:$0xff]
      %v1512 = vld [vmem:[%s1500 + $0x44] sm:$0xf]
      %v1513 = vld [vmem:[%s1500 + $0x48] sm:$0xff]
      %v1514 = vld [vmem:[%s1500 + $0x50] sm:$0xf]
      %v1515 = vld [vmem:[%s1500 + $0x54] sm:$0xff]
      %v1516 = vld [vmem:[%s1500 + $0x5c] sm:$0xf]
      %v1517 = vld [vmem:[%s1500 + $0x60] sm:$0xff]
      %v1518 = vld [vmem:[%s1500 + $0x68] sm:$0xf]
      %v1519 = vld [vmem:[%s1500 + $0x6c] sm:$0xff]
      %v1520 = vld [vmem:[%s1500 + $0x74] sm:$0xf]
      %v1521 = vld [vmem:[%s1500 + $0x78] sm:$0xff]
      %v1522 = vld [vmem:[%s1500 + $0x80] sm:$0xf]
      %v1523 = vld [vmem:[%s1500 + $0x84] sm:$0xff]
      %v1524 = vld [vmem:[%s1500 + $0x8c] sm:$0xf]
      %v1525 = vld [vmem:[%s1500 + $0x90] sm:$0xff]
      %v1526 = vld [vmem:[%s1500 + $0x98] sm:$0xf]
      %v1527 = vld [vmem:[%s1500 + $0x9c] sm:$0xff]
      %v1528 = vld [vmem:[%s1500 + $0xa4] sm:$0xf]
      %v1529 = vld [vmem:[%s1500 + $0xa8] sm:$0xff]
      %v1530 = vld [vmem:[%s1500 + $0xb0] sm:$0xf]
      %v1531 = vld [vmem:[%s1500 + $0xb4] sm:$0xff]
      %v1532 = vld [vmem:[%s1500 + $0xbc] sm:$0xf]
      %v1565 = vunpack.c.l.b16 %v1501
      %v1566 = vunpack.c.h.b16 %v1501
      %v1567 = vunpack.c.l.b16 %v1502
      %v1568 = vunpack.c.l.b16 %v1503
      %v1569 = vunpack.c.h.b16 %v1503
      %v1570 = vunpack.c.l.b16 %v1504
      %v1571 = vunpack.c.l.b16 %v1505
      %v1572 = vunpack.c.h.b16 %v1505
      %v1573 = vunpack.c.l.b16 %v1506
      %v1574 = vunpack.c.l.b16 %v1507
      %v1575 = vunpack.c.h.b16 %v1507
      %v1576 = vunpack.c.l.b16 %v1508
      %v1577 = vunpack.c.l.b16 %v1509
      %v1578 = vunpack.c.h.b16 %v1509
      %v1579 = vunpack.c.l.b16 %v1510
      %v1580 = vunpack.c.l.b16 %v1511
      %v1581 = vunpack.c.h.b16 %v1511
      %v1582 = vunpack.c.l.b16 %v1512
      %v1583 = vunpack.c.l.b16 %v1513
      %v1584 = vunpack.c.h.b16 %v1513
      %v1585 = vunpack.c.l.b16 %v1514
      %v1586 = vunpack.c.l.b16 %v1515
      %v1587 = vunpack.c.h.b16 %v1515
      %v1588 = vunpack.c.l.b16 %v1516
      %v1589 = vunpack.c.l.b16 %v1517
      %v1590 = vunpack.c.h.b16 %v1517
      %v1591 = vunpack.c.l.b16 %v1518
      %v1592 = vunpack.c.l.b16 %v1519
      %v1593 = vunpack.c.h.b16 %v1519
      %v1594 = vunpack.c.l.b16 %v1520
      %v1595 = vunpack.c.l.b16 %v1521
      %v1596 = vunpack.c.h.b16 %v1521
      %v1597 = vunpack.c.l.b16 %v1522
      %v1598 = vunpack.c.l.b16 %v1523
      %v1599 = vunpack.c.h.b16 %v1523
      %v1600 = vunpack.c.l.b16 %v1524
      %v1601 = vunpack.c.l.b16 %v1525
      %v1602 = vunpack.c.h.b16 %v1525
      %v1603 = vunpack.c.l.b16 %v1526
      %v1604 = vunpack.c.l.b16 %v1527
      %v1605 = vunpack.c.h.b16 %v1527
      %v1606 = vunpack.c.l.b16 %v1528
      %v1607 = vunpack.c.l.b16 %v1529
      %v1608 = vunpack.c.h.b16 %v1529
      %v1609 = vunpack.c.l.b16 %v1530
      %v1610 = vunpack.c.l.b16 %v1531
      %v1611 = vunpack.c.h.b16 %v1531
      %v1612 = vunpack.c.l.b16 %v1532
      %v1613 = vpack.c.b16 %v1568, %v1565
      %v1614 = vpack.c.b16 %v1569, %v1566
      %v1615 = vpack.c.b16 %v1570, %v1567
      %v1616 = vpack.c.b16 %v1574, %v1571
      %v1617 = vpack.c.b16 %v1575, %v1572
      %v1618 = vpack.c.b16 %v1576, %v1573
      %v1619 = vpack.c.b16 %v1580, %v1577
      %v1620 = vpack.c.b16 %v1581, %v1578
      %v1621 = vpack.c.b16 %v1582, %v1579
      %v1622 = vpack.c.b16 %v1586, %v1583
      %v1623 = vpack.c.b16 %v1587, %v1584
      %v1624 = vpack.c.b16 %v1588, %v1585
      %v1625 = vpack.c.b16 %v1592, %v1589
      %v1626 = vpack.c.b16 %v1593, %v1590
      %v1627 = vpack.c.b16 %v1594, %v1591
      %v1628 = vpack.c.b16 %v1598, %v1595
      %v1629 = vpack.c.b16 %v1599, %v1596
      %v1630 = vpack.c.b16 %v1600, %v1597
      %v1631 = vpack.c.b16 %v1604, %v1601
      %v1632 = vpack.c.b16 %v1605, %v1602
      %v1633 = vpack.c.b16 %v1606, %v1603
      %v1634 = vpack.c.b16 %v1610, %v1607
      %v1635 = vpack.c.b16 %v1611, %v1608
      %v1636 = vpack.c.b16 %v1612, %v1609
      %1661 = vmatprep.subr.bf16.mxu0 %v1614
      %1662 = vmatpush1.bf16.msra.mxu0 %v1613
      %1663 = vmatprep.subr.bf16.mxu0 %v1617
      %1664 = vmatpush1.bf16.msra.mxu0 %v1616
      %1665 = vmatprep.subr.bf16.mxu0 %v1620
      %1666 = vmatpush1.bf16.msra.mxu0 %v1619
      %1667 = vmatprep.subr.bf16.mxu0 %v1623
      %1668 = vmatpush1.bf16.msra.mxu0 %v1622
      %1669 = vmatprep.subr.bf16.mxu0 %v1626
      %1670 = vmatpush1.bf16.msra.mxu0 %v1625
      %1671 = vmatprep.subr.bf16.mxu0 %v1629
      %1672 = vmatpush1.bf16.msra.mxu0 %v1628
      %1673 = vmatprep.subr.bf16.mxu0 %v1632
      %1674 = vmatpush1.bf16.msra.mxu0 %v1631
      %1675 = vmatprep.subr.bf16.mxu0 %v1635
      %1676 = vmatpush1.bf16.msra.mxu0 %v1634
      %1677 = vmatprep.subr.bf16.mxu0 0
      %1678 = vmatpush1.bf16.msra.mxu0 0
      %1679 = vmatprep.subr.bf16.mxu0 0
      %1680 = vmatpush1.bf16.msra.mxu0 0
      %1681 = vmatprep.subr.bf16.mxu0 0
      %1682 = vmatpush1.bf16.msra.mxu0 0
      %1683 = vmatprep.subr.bf16.mxu0 0
      %1684 = vmatpush1.bf16.msra.mxu0 0
      %1685 = vmatprep.subr.bf16.mxu0 0
      %1686 = vmatpush1.bf16.msra.mxu0 0
      %1687 = vmatprep.subr.bf16.mxu0 0
      %1688 = vmatpush1.bf16.msra.mxu0 0
      %1689 = vmatprep.subr.bf16.mxu0 0
      %1690 = vmatpush1.bf16.msra.mxu0 0
      %1691 = vmatprep.subr.bf16.mxu0 0
      %1692 = vmatpush1.bf16.msra.mxu0 0
      %1693 = vmatprep.mubr.bf16.mxu0 0
      %1694 = vmatmul.mubr.bf16.gmra.mrb[0].mxu0 %v411
      %v1695 = vpop.f32.mrb[0].mxu0
      %v1696 = vadd.f32 0.0, %v1695
      %v1697 = vpop.f32.mrb[0].mxu0
      %v1698 = vadd.f32 0.0, %v1697
      %v1699 = vpop.f32.mrb[0].mxu0
      %v1700 = vadd.f32 0.0, %v1699
      %v1701 = vpop.f32.mrb[0].mxu0
      %v1702 = vadd.f32 0.0, %v1701
      %1703 = vmatprep.mubr.bf16.mxu0 0
      %1704 = vmatmul.mubr.bf16.gmra.mrb[0].mxu0 %v412
      %v1705 = vpop.f32.mrb[0].mxu0
      %v1706 = vadd.f32 0.0, %v1705
      %v1707 = vpop.f32.mrb[0].mxu0
      %v1708 = vadd.f32 0.0, %v1707
      %v1709 = vpop.f32.mrb[0].mxu0
      %v1710 = vadd.f32 0.0, %v1709
      %v1711 = vpop.f32.mrb[0].mxu0
      %v1712 = vadd.f32 0.0, %v1711
      %1713 = vmatprep.mubr.bf16.mxu0 0
      %1714 = vmatmul.mubr.bf16.gmra.mrb[0].mxu0 %v413
      %v1715 = vpop.f32.mrb[0].mxu0
      %v1716 = vadd.f32 0.0, %v1715
      %v1717 = vpop.f32.mrb[0].mxu0
      %v1718 = vadd.f32 0.0, %v1717
      %v1719 = vpop.f32.mrb[0].mxu0
      %v1720 = vadd.f32 0.0, %v1719
      %v1721 = vpop.f32.mrb[0].mxu0
      %v1722 = vadd.f32 0.0, %v1721
      %1723 = vmatprep.mubr.bf16.mxu0 0
      %1724 = vmatmul.mubr.bf16.gmra.mrb[0].mxu0 %v414
      %v1725 = vpop.f32.mrb[0].mxu0
      %v1726 = vadd.f32 0.0, %v1725
      %v1727 = vpop.f32.mrb[0].mxu0
      %v1728 = vadd.f32 0.0, %v1727
      %v1729 = vpop.f32.mrb[0].mxu0
      %v1730 = vadd.f32 0.0, %v1729
      %v1731 = vpop.f32.mrb[0].mxu0
      %v1732 = vadd.f32 0.0, %v1731
      %1733 = vmatprep.mubr.bf16.mxu0 0
      %1734 = vmatmul.mubr.bf16.gmra.mrb[0].mxu0 %v415
      %v1735 = vpop.f32.mrb[0].mxu0
      %v1736 = vadd.f32 0.0, %v1735
      %v1737 = vpop.f32.mrb[0].mxu0
      %v1738 = vadd.f32 0.0, %v1737
      %v1739 = vpop.f32.mrb[0].mxu0
      %v1740 = vadd.f32 0.0, %v1739
      %v1741 = vpop.f32.mrb[0].mxu0
      %v1742 = vadd.f32 0.0, %v1741
      %1743 = vmatprep.mubr.bf16.mxu0 0
      %1744 = vmatmul.mubr.bf16.gmra.mrb[0].mxu0 %v416
      %v1745 = vpop.f32.mrb[0].mxu0
      %v1746 = vadd.f32 0.0, %v1745
      %v1747 = vpop.f32.mrb[0].mxu0
      %v1748 = vadd.f32 0.0, %v1747
      %v1749 = vpop.f32.mrb[0].mxu0
      %v1750 = vadd.f32 0.0, %v1749
      %v1751 = vpop.f32.mrb[0].mxu0
      %v1752 = vadd.f32 0.0, %v1751
      %1753 = vmatprep.mubr.bf16.mxu0 0
      %1754 = vmatmul.mubr.bf16.gmra.mrb[0].mxu0 %v417
      %v1755 = vpop.f32.mrb[0].mxu0
      %v1756 = vadd.f32 0.0, %v1755
      %v1757 = vpop.f32.mrb[0].mxu0
      %v1758 = vadd.f32 0.0, %v1757
      %v1759 = vpop.f32.mrb[0].mxu0
      %v1760 = vadd.f32 0.0, %v1759
      %v1761 = vpop.f32.mrb[0].mxu0
      %v1762 = vadd.f32 0.0, %v1761
      %1763 = vmatprep.mubr.bf16.mxu0 0
      %1764 = vmatmul.mubr.bf16.gmra.mrb[0].mxu0 %v418
      %v1765 = vpop.f32.mrb[0].mxu0
      %v1766 = vadd.f32 0.0, %v1765
      %v1767 = vpop.f32.mrb[0].mxu0
      %v1768 = vadd.f32 0.0, %v1767
      %v1769 = vpop.f32.mrb[0].mxu0
      %v1770 = vadd.f32 0.0, %v1769
      %v1771 = vpop.f32.mrb[0].mxu0
      %v1772 = vadd.f32 0.0, %v1771
      %1773 = vdwg.mxu0
      %1774 = vmatprep.subr.bf16.mxu0 0
      %1775 = vmatpush1.bf16.msra.mxu0 %v1615
      %1776 = vmatprep.subr.bf16.mxu0 0
      %1777 = vmatpush1.bf16.msra.mxu0 %v1618
      %1778 = vmatprep.subr.bf16.mxu0 0
      %1779 = vmatpush1.bf16.msra.mxu0 %v1621
      %1780 = vmatprep.subr.bf16.mxu0 0
      %1781 = vmatpush1.bf16.msra.mxu0 %v1624
      %1782 = vmatprep.subr.bf16.mxu0 0
      %1783 = vmatpush1.bf16.msra.mxu0 %v1627
      %1784 = vmatprep.subr.bf16.mxu0 0
      %1785 = vmatpush1.bf16.msra.mxu0 %v1630
      %1786 = vmatprep.subr.bf16.mxu0 0
      %1787 = vmatpush1.bf16.msra.mxu0 %v1633
      %1788 = vmatprep.subr.bf16.mxu0 0
      %1789 = vmatpush1.bf16.msra.mxu0 %v1636
      %1790 = vmatprep.subr.bf16.mxu0 0
      %1791 = vmatpush1.bf16.msra.mxu0 0
      %1792 = vmatprep.subr.bf16.mxu0 0
      %1793 = vmatpush1.bf16.msra.mxu0 0
      %1794 = vmatprep.subr.bf16.mxu0 0
      %1795 = vmatpush1.bf16.msra.mxu0 0
      %1796 = vmatprep.subr.bf16.mxu0 0
      %1797 = vmatpush1.bf16.msra.mxu0 0
      %1798 = vmatprep.subr.bf16.mxu0 0
      %1799 = vmatpush1.bf16.msra.mxu0 0
      %1800 = vmatprep.subr.bf16.mxu0 0
      %1801 = vmatpush1.bf16.msra.mxu0 0
      %1802 = vmatprep.subr.bf16.mxu0 0
      %1803 = vmatpush1.bf16.msra.mxu0 0
      %1804 = vmatprep.subr.bf16.mxu0 0
      %1805 = vmatpush1.bf16.msra.mxu0 0
      %1806 = vmatprep.mubr.bf16.mxu0 0
      %1807 = vmatmul.mubr.bf16.gmra.mrb[0].mxu0 %v411
      %v1808 = vpop.f32.mrb[0].mxu0
      %v1809 = vadd.f32 0.0, %v1808
      %v1810 = vpop.f32.mrb[0].mxu0
      %v1811 = vpop.f32.mrb[0].mxu0
      %v1812 = vadd.f32 0.0, %v1811
      %v1813 = vpop.f32.mrb[0].mxu0
      %1814 = vmatprep.mubr.bf16.mxu0 0
      %1815 = vmatmul.mubr.bf16.gmra.mrb[0].mxu0 %v412
      %v1816 = vpop.f32.mrb[0].mxu0
      %v1817 = vadd.f32 0.0, %v1816
      %v1818 = vpop.f32.mrb[0].mxu0
      %v1819 = vpop.f32.mrb[0].mxu0
      %v1820 = vadd.f32 0.0, %v1819
      %v1821 = vpop.f32.mrb[0].mxu0
      %1822 = vmatprep.mubr.bf16.mxu0 0
      %1823 = vmatmul.mubr.bf16.gmra.mrb[0].mxu0 %v413
      %v1824 = vpop.f32.mrb[0].mxu0
      %v1825 = vadd.f32 0.0, %v1824
      %v1826 = vpop.f32.mrb[0].mxu0
      %v1827 = vpop.f32.mrb[0].mxu0
      %v1828 = vadd.f32 0.0, %v1827
      %v1829 = vpop.f32.mrb[0].mxu0
      %1830 = vmatprep.mubr.bf16.mxu0 0
      %1831 = vmatmul.mubr.bf16.gmra.mrb[0].mxu0 %v414
      %v1832 = vpop.f32.mrb[0].mxu0
      %v1833 = vadd.f32 0.0, %v1832
      %v1834 = vpop.f32.mrb[0].mxu0
      %v1835 = vpop.f32.mrb[0].mxu0
      %v1836 = vadd.f32 0.0, %v1835
      %v1837 = vpop.f32.mrb[0].mxu0
      %1838 = vmatprep.mubr.bf16.mxu0 0
      %1839 = vmatmul.mubr.bf16.gmra.mrb[0].mxu0 %v415
      %v1840 = vpop.f32.mrb[0].mxu0
      %v1841 = vadd.f32 0.0, %v1840
      %v1842 = vpop.f32.mrb[0].mxu0
      %v1843 = vpop.f32.mrb[0].mxu0
      %v1844 = vadd.f32 0.0, %v1843
      %v1845 = vpop.f32.mrb[0].mxu0
      %1846 = vmatprep.mubr.bf16.mxu0 0
      %1847 = vmatmul.mubr.bf16.gmra.mrb[0].mxu0 %v416
      %v1848 = vpop.f32.mrb[0].mxu0
      %v1849 = vadd.f32 0.0, %v1848
      %v1850 = vpop.f32.mrb[0].mxu0
      %v1851 = vpop.f32.mrb[0].mxu0
      %v1852 = vadd.f32 0.0, %v1851
      %v1853 = vpop.f32.mrb[0].mxu0
      %1854 = vmatprep.mubr.bf16.mxu0 0
      %1855 = vmatmul.mubr.bf16.gmra.mrb[0].mxu0 %v417
      %v1856 = vpop.f32.mrb[0].mxu0
      %v1857 = vadd.f32 0.0, %v1856
      %v1858 = vpop.f32.mrb[0].mxu0
      %v1859 = vpop.f32.mrb[0].mxu0
      %v1860 = vadd.f32 0.0, %v1859
      %v1861 = vpop.f32.mrb[0].mxu0
      %1862 = vmatprep.mubr.bf16.mxu0 0
      %1863 = vmatmul.mubr.bf16.gmra.mrb[0].mxu0 %v418
      %v1864 = vpop.f32.mrb[0].mxu0
      %v1865 = vadd.f32 0.0, %v1864
      %v1866 = vpop.f32.mrb[0].mxu0
      %v1867 = vpop.f32.mrb[0].mxu0
      %v1868 = vadd.f32 0.0, %v1867
      %v1869 = vpop.f32.mrb[0].mxu0
      %1870 = vdwg.mxu0
      %v1871 = vrot.slane %v1696, 7
      %v1872 = vrot.slane %v1706, 7
      %v1873 = vrot.slane %v1716, 7
      %v1874 = vrot.slane %v1726, 7
      %v1875 = vrot.slane %v1736, 7
      %v1876 = vrot.slane %v1746, 7
      %v1877 = vrot.slane %v1756, 7
      %v1878 = vrot.slane %v1766, 7
      %v1879 = vrot.slane %v1700, 7
      %v1880 = vrot.slane %v1710, 7
      %v1881 = vrot.slane %v1720, 7
      %v1882 = vrot.slane %v1730, 7
      %v1883 = vrot.slane %v1740, 7
      %v1884 = vrot.slane %v1750, 7
      %v1885 = vrot.slane %v1760, 7
      %v1886 = vrot.slane %v1770, 7
      %v1887 = vsel %vm781, %v1871, %v1879
      %v1888 = vsel %vm781, %v1872, %v1880
      %v1889 = vsel %vm781, %v1873, %v1881
      %v1890 = vsel %vm781, %v1874, %v1882
      %v1891 = vsel %vm781, %v1875, %v1883
      %v1892 = vsel %vm781, %v1876, %v1884
      %v1893 = vsel %vm781, %v1877, %v1885
      %v1894 = vsel %vm781, %v1878, %v1886
      %v1895 = vsel %vm781, %v1879, %v1871
      %v1896 = vsel %vm781, %v1880, %v1872
      %v1897 = vsel %vm781, %v1881, %v1873
      %v1898 = vsel %vm781, %v1882, %v1874
      %v1899 = vsel %vm781, %v1883, %v1875
      %v1900 = vsel %vm781, %v1884, %v1876
      %v1901 = vsel %vm781, %v1885, %v1877
      %v1902 = vsel %vm781, %v1886, %v1878
      %v1903 = vsel %vm800, %v1895, 0.0
      %v1904 = vsel %vm801, %v1887, 0.0
      %v1905 = vsel %vm800, %v1896, 0.0
      %v1906 = vsel %vm801, %v1888, 0.0
      %v1907 = vsel %vm800, %v1897, 0.0
      %v1908 = vsel %vm801, %v1889, 0.0
      %v1909 = vsel %vm800, %v1898, 0.0
      %v1910 = vsel %vm801, %v1890, 0.0
      %v1911 = vsel %vm800, %v1899, 0.0
      %v1912 = vsel %vm801, %v1891, 0.0
      %v1913 = vsel %vm800, %v1900, 0.0
      %v1914 = vsel %vm801, %v1892, 0.0
      %v1915 = vsel %vm800, %v1901, 0.0
      %v1916 = vsel %vm801, %v1893, 0.0
      %v1917 = vsel %vm800, %v1902, 0.0
      %v1918 = vsel %vm801, %v1894, 0.0
      %v1919 = vadd.f32 %v1698, %v1903
      %v1920 = vadd.f32 %v1702, %v1904
      %v1921 = vadd.f32 %v1708, %v1905
      %v1922 = vadd.f32 %v1712, %v1906
      %v1923 = vadd.f32 %v1718, %v1907
      %v1924 = vadd.f32 %v1722, %v1908
      %v1925 = vadd.f32 %v1728, %v1909
      %v1926 = vadd.f32 %v1732, %v1910
      %v1927 = vadd.f32 %v1738, %v1911
      %v1928 = vadd.f32 %v1742, %v1912
      %v1929 = vadd.f32 %v1748, %v1913
      %v1930 = vadd.f32 %v1752, %v1914
      %v1931 = vadd.f32 %v1758, %v1915
      %v1932 = vadd.f32 %v1762, %v1916
      %v1933 = vadd.f32 %v1768, %v1917
      %v1934 = vadd.f32 %v1772, %v1918
      %v1935 = vrot.slane %v1809, 1
      %v1936 = vrot.slane %v1817, 1
      %v1937 = vrot.slane %v1825, 1
      %v1938 = vrot.slane %v1833, 1
      %v1939 = vrot.slane %v1841, 1
      %v1940 = vrot.slane %v1849, 1
      %v1941 = vrot.slane %v1857, 1
      %v1942 = vrot.slane %v1865, 1
      %v1943 = vrot.slane %v1812, 1
      %v1944 = vrot.slane %v1820, 1
      %v1945 = vrot.slane %v1828, 1
      %v1946 = vrot.slane %v1836, 1
      %v1947 = vrot.slane %v1844, 1
      %v1948 = vrot.slane %v1852, 1
      %v1949 = vrot.slane %v1860, 1
      %v1950 = vrot.slane %v1868, 1
      %v1951 = vsel %vm850, %v1935, %v1943
      %v1952 = vsel %vm850, %v1936, %v1944
      %v1953 = vsel %vm850, %v1937, %v1945
      %v1954 = vsel %vm850, %v1938, %v1946
      %v1955 = vsel %vm850, %v1939, %v1947
      %v1956 = vsel %vm850, %v1940, %v1948
      %v1957 = vsel %vm850, %v1941, %v1949
      %v1958 = vsel %vm850, %v1942, %v1950
      %v1959 = vsel %vm850, %v1943, %v1935
      %v1960 = vsel %vm850, %v1944, %v1936
      %v1961 = vsel %vm850, %v1945, %v1937
      %v1962 = vsel %vm850, %v1946, %v1938
      %v1963 = vsel %vm850, %v1947, %v1939
      %v1964 = vsel %vm850, %v1948, %v1940
      %v1965 = vsel %vm850, %v1949, %v1941
      %v1966 = vsel %vm850, %v1950, %v1942
      %v1967 = vsel %vm869, %v1951, 0.0
      %v1968 = vsel %vm870, %v1959, 0.0
      %v1969 = vsel %vm869, %v1952, 0.0
      %v1970 = vsel %vm870, %v1960, 0.0
      %v1971 = vsel %vm869, %v1953, 0.0
      %v1972 = vsel %vm870, %v1961, 0.0
      %v1973 = vsel %vm869, %v1954, 0.0
      %v1974 = vsel %vm870, %v1962, 0.0
      %v1975 = vsel %vm869, %v1955, 0.0
      %v1976 = vsel %vm870, %v1963, 0.0
      %v1977 = vsel %vm869, %v1956, 0.0
      %v1978 = vsel %vm870, %v1964, 0.0
      %v1979 = vsel %vm869, %v1957, 0.0
      %v1980 = vsel %vm870, %v1965, 0.0
      %v1981 = vsel %vm869, %v1958, 0.0
      %v1982 = vsel %vm870, %v1966, 0.0
      %v1983 = vadd.f32 %v1919, %v1967
      %v1984 = vadd.f32 %v1920, %v1968
      %v1985 = vadd.f32 %v1921, %v1969
      %v1986 = vadd.f32 %v1922, %v1970
      %v1987 = vadd.f32 %v1923, %v1971
      %v1988 = vadd.f32 %v1924, %v1972
      %v1989 = vadd.f32 %v1925, %v1973
      %v1990 = vadd.f32 %v1926, %v1974
      %v1991 = vadd.f32 %v1927, %v1975
      %v1992 = vadd.f32 %v1928, %v1976
      %v1993 = vadd.f32 %v1929, %v1977
      %v1994 = vadd.f32 %v1930, %v1978
      %v1995 = vadd.f32 %v1931, %v1979
      %v1996 = vadd.f32 %v1932, %v1980
      %v1997 = vadd.f32 %v1933, %v1981
      %v1998 = vadd.f32 %v1934, %v1982
      %v1999 = vld [vmem:[#allocation2] sm:$0xff]
      %v2000 = vld [vmem:[#allocation2 + $0x8] sm:$0xff]
      %v2001 = vld [vmem:[#allocation2 + $0x10] sm:$0xff]
      %v2002 = vld [vmem:[#allocation2 + $0x18] sm:$0xff]
      %v2003 = vld [vmem:[#allocation2 + $0x20] sm:$0xff]
      %v2004 = vld [vmem:[#allocation2 + $0x28] sm:$0xff]
      %v2005 = vld [vmem:[#allocation2 + $0x30] sm:$0xff]
      %v2006 = vld [vmem:[#allocation2 + $0x38] sm:$0xff]
      %v2007 = vld [vmem:[#allocation2 + $0x40] sm:$0xff]
      %v2008 = vld [vmem:[#allocation2 + $0x48] sm:$0xff]
      %v2009 = vld [vmem:[#allocation2 + $0x50] sm:$0xff]
      %v2010 = vld [vmem:[#allocation2 + $0x58] sm:$0xff]
      %v2011 = vld [vmem:[#allocation2 + $0x60] sm:$0xff]
      %v2012 = vld [vmem:[#allocation2 + $0x68] sm:$0xff]
      %v2013 = vld [vmem:[#allocation2 + $0x70] sm:$0xff]
      %v2014 = vld [vmem:[#allocation2 + $0x78] sm:$0xff]
      %v2015 = vadd.f32 %v1999, %v1983
      %v2016 = vadd.f32 %v2000, %v1984
      %v2017 = vadd.f32 %v2001, %v1985
      %v2018 = vadd.f32 %v2002, %v1986
      %v2019 = vadd.f32 %v2003, %v1987
      %v2020 = vadd.f32 %v2004, %v1988
      %v2021 = vadd.f32 %v2005, %v1989
      %v2022 = vadd.f32 %v2006, %v1990
      %v2023 = vadd.f32 %v2007, %v1991
      %v2024 = vadd.f32 %v2008, %v1992
      %v2025 = vadd.f32 %v2009, %v1993
      %v2026 = vadd.f32 %v2010, %v1994
      %v2027 = vadd.f32 %v2011, %v1995
      %v2028 = vadd.f32 %v2012, %v1996
      %v2029 = vadd.f32 %v2013, %v1997
      %v2030 = vadd.f32 %v2014, %v1998
      %2031 = vst [vmem:[#allocation2] sm:$0xff] %v2015
      %2032 = vst [vmem:[#allocation2 + $0x8] sm:$0xff] %v2016
      %2033 = vst [vmem:[#allocation2 + $0x10] sm:$0xff] %v2017
      %2034 = vst [vmem:[#allocation2 + $0x18] sm:$0xff] %v2018
      %2035 = vst [vmem:[#allocation2 + $0x20] sm:$0xff] %v2019
      %2036 = vst [vmem:[#allocation2 + $0x28] sm:$0xff] %v2020
      %2037 = vst [vmem:[#allocation2 + $0x30] sm:$0xff] %v2021
      %2038 = vst [vmem:[#allocation2 + $0x38] sm:$0xff] %v2022
      %2039 = vst [vmem:[#allocation2 + $0x40] sm:$0xff] %v2023
      %2040 = vst [vmem:[#allocation2 + $0x48] sm:$0xff] %v2024
      %2041 = vst [vmem:[#allocation2 + $0x50] sm:$0xff] %v2025
      %2042 = vst [vmem:[#allocation2 + $0x58] sm:$0xff] %v2026
      %2043 = vst [vmem:[#allocation2 + $0x60] sm:$0xff] %v2027
      %2044 = vst [vmem:[#allocation2 + $0x68] sm:$0xff] %v2028
      %2045 = vst [vmem:[#allocation2 + $0x70] sm:$0xff] %v2029
      %2046 = vst [vmem:[#allocation2 + $0x78] sm:$0xff] %v2030
      %s2047 = scalar_lea.vmem %s242, 64
      %v2048 = vld [vmem:[%s2047] sm:$0xf]
      %v2049 = vld [vmem:[%s2047 + $0x4] sm:$0xf]
      %v2050 = vld [vmem:[%s2047 + $0x8] sm:$0xf]
      %v2051 = vld [vmem:[%s2047 + $0xc] sm:$0xf]
      %v2052 = vld [vmem:[%s2047 + $0x10] sm:$0xf]
      %v2053 = vld [vmem:[%s2047 + $0x14] sm:$0xf]
      %v2054 = vld [vmem:[%s2047 + $0x18] sm:$0xf]
      %v2055 = vld [vmem:[%s2047 + $0x1c] sm:$0xf]
      %v2056 = vld [vmem:[%s2047 + $0x20] sm:$0xf]
      %v2057 = vld [vmem:[%s2047 + $0x24] sm:$0xf]
      %v2058 = vld [vmem:[%s2047 + $0x28] sm:$0xf]
      %v2059 = vld [vmem:[%s2047 + $0x2c] sm:$0xf]
      %v2060 = vld [vmem:[%s2047 + $0x30] sm:$0xf]
      %v2061 = vld [vmem:[%s2047 + $0x34] sm:$0xf]
      %v2062 = vld [vmem:[%s2047 + $0x38] sm:$0xf]
      %v2063 = vld [vmem:[%s2047 + $0x3c] sm:$0xf]
      %v2064 = vsel %vm330, %v2048, 0
      %v2065 = vsel %vm330, %v2049, 0
      %v2066 = vsel %vm330, %v2050, 0
      %v2067 = vsel %vm330, %v2051, 0
      %v2068 = vsel %vm330, %v2052, 0
      %v2069 = vsel %vm330, %v2053, 0
      %v2070 = vsel %vm330, %v2054, 0
      %v2071 = vsel %vm330, %v2055, 0
      %v2072 = vsel %vm330, %v2056, 0
      %v2073 = vsel %vm330, %v2057, 0
      %v2074 = vsel %vm330, %v2058, 0
      %v2075 = vsel %vm330, %v2059, 0
      %v2076 = vsel %vm330, %v2060, 0
      %v2077 = vsel %vm330, %v2061, 0
      %v2078 = vsel %vm330, %v2062, 0
      %v2079 = vsel %vm330, %v2063, 0
      %v2080 = vld [vmem:[%s1] sm:$0xff]
      %v2081 = vld [vmem:[%s1 + $0x8] sm:$0xf]
      %v2082 = vld [vmem:[%s1 + $0xc] sm:$0xff]
      %v2083 = vld [vmem:[%s1 + $0x14] sm:$0xf]
      %v2084 = vld [vmem:[%s1 + $0x18] sm:$0xff]
      %v2085 = vld [vmem:[%s1 + $0x20] sm:$0xf]
      %v2086 = vld [vmem:[%s1 + $0x24] sm:$0xff]
      %v2087 = vld [vmem:[%s1 + $0x2c] sm:$0xf]
      %v2088 = vld [vmem:[%s1 + $0x30] sm:$0xff]
      %v2089 = vld [vmem:[%s1 + $0x38] sm:$0xf]
      %v2090 = vld [vmem:[%s1 + $0x3c] sm:$0xff]
      %v2091 = vld [vmem:[%s1 + $0x44] sm:$0xf]
      %v2092 = vld [vmem:[%s1 + $0x48] sm:$0xff]
      %v2093 = vld [vmem:[%s1 + $0x50] sm:$0xf]
      %v2094 = vld [vmem:[%s1 + $0x54] sm:$0xff]
      %v2095 = vld [vmem:[%s1 + $0x5c] sm:$0xf]
      %v2096 = vld [vmem:[%s1 + $0x60] sm:$0xff]
      %v2097 = vld [vmem:[%s1 + $0x68] sm:$0xf]
      %v2098 = vld [vmem:[%s1 + $0x6c] sm:$0xff]
      %v2099 = vld [vmem:[%s1 + $0x74] sm:$0xf]
      %v2100 = vld [vmem:[%s1 + $0x78] sm:$0xff]
      %v2101 = vld [vmem:[%s1 + $0x80] sm:$0xf]
      %v2102 = vld [vmem:[%s1 + $0x84] sm:$0xff]
      %v2103 = vld [vmem:[%s1 + $0x8c] sm:$0xf]
      %v2104 = vld [vmem:[%s1 + $0x90] sm:$0xff]
      %v2105 = vld [vmem:[%s1 + $0x98] sm:$0xf]
      %v2106 = vld [vmem:[%s1 + $0x9c] sm:$0xff]
      %v2107 = vld [vmem:[%s1 + $0xa4] sm:$0xf]
      %v2108 = vld [vmem:[%s1 + $0xa8] sm:$0xff]
      %v2109 = vld [vmem:[%s1 + $0xb0] sm:$0xf]
      %v2110 = vld [vmem:[%s1 + $0xb4] sm:$0xff]
      %v2111 = vld [vmem:[%s1 + $0xbc] sm:$0xf]
      %v2128 = vunpack.c.l.b16 %v2064
      %v2129 = vunpack.c.l.b16 %v2065
      %v2130 = vunpack.c.l.b16 %v2066
      %v2131 = vunpack.c.l.b16 %v2067
      %v2132 = vunpack.c.l.b16 %v2068
      %v2133 = vunpack.c.l.b16 %v2069
      %v2134 = vunpack.c.l.b16 %v2070
      %v2135 = vunpack.c.l.b16 %v2071
      %v2136 = vunpack.c.l.b16 %v2072
      %v2137 = vunpack.c.l.b16 %v2073
      %v2138 = vunpack.c.l.b16 %v2074
      %v2139 = vunpack.c.l.b16 %v2075
      %v2140 = vunpack.c.l.b16 %v2076
      %v2141 = vunpack.c.l.b16 %v2077
      %v2142 = vunpack.c.l.b16 %v2078
      %v2143 = vunpack.c.l.b16 %v2079
      %v2144 = vpack.c.b16 %v2129, %v2128
      %v2145 = vpack.c.b16 %v2131, %v2130
      %v2146 = vpack.c.b16 %v2133, %v2132
      %v2147 = vpack.c.b16 %v2135, %v2134
      %v2148 = vpack.c.b16 %v2137, %v2136
      %v2149 = vpack.c.b16 %v2139, %v2138
      %v2150 = vpack.c.b16 %v2141, %v2140
      %v2151 = vpack.c.b16 %v2143, %v2142
      %v2192 = vunpack.c.l.b16 %v2080
      %v2193 = vunpack.c.h.b16 %v2080
      %v2194 = vunpack.c.l.b16 %v2081
      %v2195 = vunpack.c.l.b16 %v2082
      %v2196 = vunpack.c.h.b16 %v2082
      %v2197 = vunpack.c.l.b16 %v2083
      %v2198 = vunpack.c.l.b16 %v2084
      %v2199 = vunpack.c.h.b16 %v2084
      %v2200 = vunpack.c.l.b16 %v2085
      %v2201 = vunpack.c.l.b16 %v2086
      %v2202 = vunpack.c.h.b16 %v2086
      %v2203 = vunpack.c.l.b16 %v2087
      %v2204 = vunpack.c.l.b16 %v2088
      %v2205 = vunpack.c.h.b16 %v2088
      %v2206 = vunpack.c.l.b16 %v2089
      %v2207 = vunpack.c.l.b16 %v2090
      %v2208 = vunpack.c.h.b16 %v2090
      %v2209 = vunpack.c.l.b16 %v2091
      %v2210 = vunpack.c.l.b16 %v2092
      %v2211 = vunpack.c.h.b16 %v2092
      %v2212 = vunpack.c.l.b16 %v2093
      %v2213 = vunpack.c.l.b16 %v2094
      %v2214 = vunpack.c.h.b16 %v2094
      %v2215 = vunpack.c.l.b16 %v2095
      %v2216 = vunpack.c.l.b16 %v2096
      %v2217 = vunpack.c.h.b16 %v2096
      %v2218 = vunpack.c.l.b16 %v2097
      %v2219 = vunpack.c.l.b16 %v2098
      %v2220 = vunpack.c.h.b16 %v2098
      %v2221 = vunpack.c.l.b16 %v2099
      %v2222 = vunpack.c.l.b16 %v2100
      %v2223 = vunpack.c.h.b16 %v2100
      %v2224 = vunpack.c.l.b16 %v2101
      %v2225 = vunpack.c.l.b16 %v2102
      %v2226 = vunpack.c.h.b16 %v2102
      %v2227 = vunpack.c.l.b16 %v2103
      %v2228 = vunpack.c.l.b16 %v2104
      %v2229 = vunpack.c.h.b16 %v2104
      %v2230 = vunpack.c.l.b16 %v2105
      %v2231 = vunpack.c.l.b16 %v2106
      %v2232 = vunpack.c.h.b16 %v2106
      %v2233 = vunpack.c.l.b16 %v2107
      %v2234 = vunpack.c.l.b16 %v2108
      %v2235 = vunpack.c.h.b16 %v2108
      %v2236 = vunpack.c.l.b16 %v2109
      %v2237 = vunpack.c.l.b16 %v2110
      %v2238 = vunpack.c.h.b16 %v2110
      %v2239 = vunpack.c.l.b16 %v2111
      %v2240 = vpack.c.b16 %v2195, %v2192
      %v2241 = vpack.c.b16 %v2196, %v2193
      %v2242 = vpack.c.b16 %v2197, %v2194
      %v2243 = vpack.c.b16 %v2201, %v2198
      %v2244 = vpack.c.b16 %v2202, %v2199
      %v2245 = vpack.c.b16 %v2203, %v2200
      %v2246 = vpack.c.b16 %v2207, %v2204
      %v2247 = vpack.c.b16 %v2208, %v2205
      %v2248 = vpack.c.b16 %v2209, %v2206
      %v2249 = vpack.c.b16 %v2213, %v2210
      %v2250 = vpack.c.b16 %v2214, %v2211
      %v2251 = vpack.c.b16 %v2215, %v2212
      %v2252 = vpack.c.b16 %v2219, %v2216
      %v2253 = vpack.c.b16 %v2220, %v2217
      %v2254 = vpack.c.b16 %v2221, %v2218
      %v2255 = vpack.c.b16 %v2225, %v2222
      %v2256 = vpack.c.b16 %v2226, %v2223
      %v2257 = vpack.c.b16 %v2227, %v2224
      %v2258 = vpack.c.b16 %v2231, %v2228
      %v2259 = vpack.c.b16 %v2232, %v2229
      %v2260 = vpack.c.b16 %v2233, %v2230
      %v2261 = vpack.c.b16 %v2237, %v2234
      %v2262 = vpack.c.b16 %v2238, %v2235
      %v2263 = vpack.c.b16 %v2239, %v2236
      %2288 = vmatprep.subr.bf16.mxu0 %v2241
      %2289 = vmatpush1.bf16.msra.mxu0 %v2240
      %2290 = vmatprep.subr.bf16.mxu0 %v2244
      %2291 = vmatpush1.bf16.msra.mxu0 %v2243
      %2292 = vmatprep.subr.bf16.mxu0 %v2247
      %2293 = vmatpush1.bf16.msra.mxu0 %v2246
      %2294 = vmatprep.subr.bf16.mxu0 %v2250
      %2295 = vmatpush1.bf16.msra.mxu0 %v2249
      %2296 = vmatprep.subr.bf16.mxu0 %v2253
      %2297 = vmatpush1.bf16.msra.mxu0 %v2252
      %2298 = vmatprep.subr.bf16.mxu0 %v2256
      %2299 = vmatpush1.bf16.msra.mxu0 %v2255
      %2300 = vmatprep.subr.bf16.mxu0 %v2259
      %2301 = vmatpush1.bf16.msra.mxu0 %v2258
      %2302 = vmatprep.subr.bf16.mxu0 %v2262
      %2303 = vmatpush1.bf16.msra.mxu0 %v2261
      %2304 = vmatprep.subr.bf16.mxu0 0
      %2305 = vmatpush1.bf16.msra.mxu0 0
      %2306 = vmatprep.subr.bf16.mxu0 0
      %2307 = vmatpush1.bf16.msra.mxu0 0
      %2308 = vmatprep.subr.bf16.mxu0 0
      %2309 = vmatpush1.bf16.msra.mxu0 0
      %2310 = vmatprep.subr.bf16.mxu0 0
      %2311 = vmatpush1.bf16.msra.mxu0 0
      %2312 = vmatprep.subr.bf16.mxu0 0
      %2313 = vmatpush1.bf16.msra.mxu0 0
      %2314 = vmatprep.subr.bf16.mxu0 0
      %2315 = vmatpush1.bf16.msra.mxu0 0
      %2316 = vmatprep.subr.bf16.mxu0 0
      %2317 = vmatpush1.bf16.msra.mxu0 0
      %2318 = vmatprep.subr.bf16.mxu0 0
      %2319 = vmatpush1.bf16.msra.mxu0 0
      %2320 = vmatprep.mubr.bf16.mxu0 0
      %2321 = vmatmul.mubr.bf16.gmra.mrb[0].mxu0 %v2144
      %v2322 = vpop.f32.mrb[0].mxu0
      %v2323 = vadd.f32 0.0, %v2322
      %v2324 = vpop.f32.mrb[0].mxu0
      %v2325 = vadd.f32 0.0, %v2324
      %v2326 = vpop.f32.mrb[0].mxu0
      %v2327 = vadd.f32 0.0, %v2326
      %v2328 = vpop.f32.mrb[0].mxu0
      %v2329 = vadd.f32 0.0, %v2328
      %2330 = vmatprep.mubr.bf16.mxu0 0
      %2331 = vmatmul.mubr.bf16.gmra.mrb[0].mxu0 %v2145
      %v2332 = vpop.f32.mrb[0].mxu0
      %v2333 = vadd.f32 0.0, %v2332
      %v2334 = vpop.f32.mrb[0].mxu0
      %v2335 = vadd.f32 0.0, %v2334
      %v2336 = vpop.f32.mrb[0].mxu0
      %v2337 = vadd.f32 0.0, %v2336
      %v2338 = vpop.f32.mrb[0].mxu0
      %v2339 = vadd.f32 0.0, %v2338
      %2340 = vmatprep.mubr.bf16.mxu0 0
      %2341 = vmatmul.mubr.bf16.gmra.mrb[0].mxu0 %v2146
      %v2342 = vpop.f32.mrb[0].mxu0
      %v2343 = vadd.f32 0.0, %v2342
      %v2344 = vpop.f32.mrb[0].mxu0
      %v2345 = vadd.f32 0.0, %v2344
      %v2346 = vpop.f32.mrb[0].mxu0
      %v2347 = vadd.f32 0.0, %v2346
      %v2348 = vpop.f32.mrb[0].mxu0
      %v2349 = vadd.f32 0.0, %v2348
      %2350 = vmatprep.mubr.bf16.mxu0 0
      %2351 = vmatmul.mubr.bf16.gmra.mrb[0].mxu0 %v2147
      %v2352 = vpop.f32.mrb[0].mxu0
      %v2353 = vadd.f32 0.0, %v2352
      %v2354 = vpop.f32.mrb[0].mxu0
      %v2355 = vadd.f32 0.0, %v2354
      %v2356 = vpop.f32.mrb[0].mxu0
      %v2357 = vadd.f32 0.0, %v2356
      %v2358 = vpop.f32.mrb[0].mxu0
      %v2359 = vadd.f32 0.0, %v2358
      %2360 = vmatprep.mubr.bf16.mxu0 0
      %2361 = vmatmul.mubr.bf16.gmra.mrb[0].mxu0 %v2148
      %v2362 = vpop.f32.mrb[0].mxu0
      %v2363 = vadd.f32 0.0, %v2362
      %v2364 = vpop.f32.mrb[0].mxu0
      %v2365 = vadd.f32 0.0, %v2364
      %v2366 = vpop.f32.mrb[0].mxu0
      %v2367 = vadd.f32 0.0, %v2366
      %v2368 = vpop.f32.mrb[0].mxu0
      %v2369 = vadd.f32 0.0, %v2368
      %2370 = vmatprep.mubr.bf16.mxu0 0
      %2371 = vmatmul.mubr.bf16.gmra.mrb[0].mxu0 %v2149
      %v2372 = vpop.f32.mrb[0].mxu0
      %v2373 = vadd.f32 0.0, %v2372
      %v2374 = vpop.f32.mrb[0].mxu0
      %v2375 = vadd.f32 0.0, %v2374
      %v2376 = vpop.f32.mrb[0].mxu0
      %v2377 = vadd.f32 0.0, %v2376
      %v2378 = vpop.f32.mrb[0].mxu0
      %v2379 = vadd.f32 0.0, %v2378
      %2380 = vmatprep.mubr.bf16.mxu0 0
      %2381 = vmatmul.mubr.bf16.gmra.mrb[0].mxu0 %v2150
      %v2382 = vpop.f32.mrb[0].mxu0
      %v2383 = vadd.f32 0.0, %v2382
      %v2384 = vpop.f32.mrb[0].mxu0
      %v2385 = vadd.f32 0.0, %v2384
      %v2386 = vpop.f32.mrb[0].mxu0
      %v2387 = vadd.f32 0.0, %v2386
      %v2388 = vpop.f32.mrb[0].mxu0
      %v2389 = vadd.f32 0.0, %v2388
      %2390 = vmatprep.mubr.bf16.mxu0 0
      %2391 = vmatmul.mubr.bf16.gmra.mrb[0].mxu0 %v2151
      %v2392 = vpop.f32.mrb[0].mxu0
      %v2393 = vadd.f32 0.0, %v2392
      %v2394 = vpop.f32.mrb[0].mxu0
      %v2395 = vadd.f32 0.0, %v2394
      %v2396 = vpop.f32.mrb[0].mxu0
      %v2397 = vadd.f32 0.0, %v2396
      %v2398 = vpop.f32.mrb[0].mxu0
      %v2399 = vadd.f32 0.0, %v2398
      %2400 = vdwg.mxu0
      %2401 = vmatprep.subr.bf16.mxu0 0
      %2402 = vmatpush1.bf16.msra.mxu0 %v2242
      %2403 = vmatprep.subr.bf16.mxu0 0
      %2404 = vmatpush1.bf16.msra.mxu0 %v2245
      %2405 = vmatprep.subr.bf16.mxu0 0
      %2406 = vmatpush1.bf16.msra.mxu0 %v2248
      %2407 = vmatprep.subr.bf16.mxu0 0
      %2408 = vmatpush1.bf16.msra.mxu0 %v2251
      %2409 = vmatprep.subr.bf16.mxu0 0
      %2410 = vmatpush1.bf16.msra.mxu0 %v2254
      %2411 = vmatprep.subr.bf16.mxu0 0
      %2412 = vmatpush1.bf16.msra.mxu0 %v2257
      %2413 = vmatprep.subr.bf16.mxu0 0
      %2414 = vmatpush1.bf16.msra.mxu0 %v2260
      %2415 = vmatprep.subr.bf16.mxu0 0
      %2416 = vmatpush1.bf16.msra.mxu0 %v2263
      %2417 = vmatprep.subr.bf16.mxu0 0
      %2418 = vmatpush1.bf16.msra.mxu0 0
      %2419 = vmatprep.subr.bf16.mxu0 0
      %2420 = vmatpush1.bf16.msra.mxu0 0
      %2421 = vmatprep.subr.bf16.mxu0 0
      %2422 = vmatpush1.bf16.msra.mxu0 0
      %2423 = vmatprep.subr.bf16.mxu0 0
      %2424 = vmatpush1.bf16.msra.mxu0 0
      %2425 = vmatprep.subr.bf16.mxu0 0
      %2426 = vmatpush1.bf16.msra.mxu0 0
      %2427 = vmatprep.subr.bf16.mxu0 0
      %2428 = vmatpush1.bf16.msra.mxu0 0
      %2429 = vmatprep.subr.bf16.mxu0 0
      %2430 = vmatpush1.bf16.msra.mxu0 0
      %2431 = vmatprep.subr.bf16.mxu0 0
      %2432 = vmatpush1.bf16.msra.mxu0 0
      %2433 = vmatprep.mubr.bf16.mxu0 0
      %2434 = vmatmul.mubr.bf16.gmra.mrb[0].mxu0 %v2144
      %v2435 = vpop.f32.mrb[0].mxu0
      %v2436 = vadd.f32 0.0, %v2435
      %v2437 = vpop.f32.mrb[0].mxu0
      %v2438 = vpop.f32.mrb[0].mxu0
      %v2439 = vadd.f32 0.0, %v2438
      %v2440 = vpop.f32.mrb[0].mxu0
      %2441 = vmatprep.mubr.bf16.mxu0 0
      %2442 = vmatmul.mubr.bf16.gmra.mrb[0].mxu0 %v2145
      %v2443 = vpop.f32.mrb[0].mxu0
      %v2444 = vadd.f32 0.0, %v2443
      %v2445 = vpop.f32.mrb[0].mxu0
      %v2446 = vpop.f32.mrb[0].mxu0
      %v2447 = vadd.f32 0.0, %v2446
      %v2448 = vpop.f32.mrb[0].mxu0
      %2449 = vmatprep.mubr.bf16.mxu0 0
      %2450 = vmatmul.mubr.bf16.gmra.mrb[0].mxu0 %v2146
      %v2451 = vpop.f32.mrb[0].mxu0
      %v2452 = vadd.f32 0.0, %v2451
      %v2453 = vpop.f32.mrb[0].mxu0
      %v2454 = vpop.f32.mrb[0].mxu0
      %v2455 = vadd.f32 0.0, %v2454
      %v2456 = vpop.f32.mrb[0].mxu0
      %2457 = vmatprep.mubr.bf16.mxu0 0
      %2458 = vmatmul.mubr.bf16.gmra.mrb[0].mxu0 %v2147
      %v2459 = vpop.f32.mrb[0].mxu0
      %v2460 = vadd.f32 0.0, %v2459
      %v2461 = vpop.f32.mrb[0].mxu0
      %v2462 = vpop.f32.mrb[0].mxu0
      %v2463 = vadd.f32 0.0, %v2462
      %v2464 = vpop.f32.mrb[0].mxu0
      %2465 = vmatprep.mubr.bf16.mxu0 0
      %2466 = vmatmul.mubr.bf16.gmra.mrb[0].mxu0 %v2148
      %v2467 = vpop.f32.mrb[0].mxu0
      %v2468 = vadd.f32 0.0, %v2467
      %v2469 = vpop.f32.mrb[0].mxu0
      %v2470 = vpop.f32.mrb[0].mxu0
      %v2471 = vadd.f32 0.0, %v2470
      %v2472 = vpop.f32.mrb[0].mxu0
      %2473 = vmatprep.mubr.bf16.mxu0 0
      %2474 = vmatmul.mubr.bf16.gmra.mrb[0].mxu0 %v2149
      %v2475 = vpop.f32.mrb[0].mxu0
      %v2476 = vadd.f32 0.0, %v2475
      %v2477 = vpop.f32.mrb[0].mxu0
      %v2478 = vpop.f32.mrb[0].mxu0
      %v2479 = vadd.f32 0.0, %v2478
      %v2480 = vpop.f32.mrb[0].mxu0
      %2481 = vmatprep.mubr.bf16.mxu0 0
      %2482 = vmatmul.mubr.bf16.gmra.mrb[0].mxu0 %v2150
      %v2483 = vpop.f32.mrb[0].mxu0
      %v2484 = vadd.f32 0.0, %v2483
      %v2485 = vpop.f32.mrb[0].mxu0
      %v2486 = vpop.f32.mrb[0].mxu0
      %v2487 = vadd.f32 0.0, %v2486
      %v2488 = vpop.f32.mrb[0].mxu0
      %2489 = vmatprep.mubr.bf16.mxu0 0
      %2490 = vmatmul.mubr.bf16.gmra.mrb[0].mxu0 %v2151
      %v2491 = vpop.f32.mrb[0].mxu0
      %v2492 = vadd.f32 0.0, %v2491
      %v2493 = vpop.f32.mrb[0].mxu0
      %v2494 = vpop.f32.mrb[0].mxu0
      %v2495 = vadd.f32 0.0, %v2494
      %v2496 = vpop.f32.mrb[0].mxu0
      %2497 = vdwg.mxu0
      %v2498 = vrot.slane %v2323, 7
      %v2499 = vrot.slane %v2333, 7
      %v2500 = vrot.slane %v2343, 7
      %v2501 = vrot.slane %v2353, 7
      %v2502 = vrot.slane %v2363, 7
      %v2503 = vrot.slane %v2373, 7
      %v2504 = vrot.slane %v2383, 7
      %v2505 = vrot.slane %v2393, 7
      %v2506 = vrot.slane %v2327, 7
      %v2507 = vrot.slane %v2337, 7
      %v2508 = vrot.slane %v2347, 7
      %v2509 = vrot.slane %v2357, 7
      %v2510 = vrot.slane %v2367, 7
      %v2511 = vrot.slane %v2377, 7
      %v2512 = vrot.slane %v2387, 7
      %v2513 = vrot.slane %v2397, 7
      %v2514 = vsel %vm781, %v2498, %v2506
      %v2515 = vsel %vm781, %v2499, %v2507
      %v2516 = vsel %vm781, %v2500, %v2508
      %v2517 = vsel %vm781, %v2501, %v2509
      %v2518 = vsel %vm781, %v2502, %v2510
      %v2519 = vsel %vm781, %v2503, %v2511
      %v2520 = vsel %vm781, %v2504, %v2512
      %v2521 = vsel %vm781, %v2505, %v2513
      %v2522 = vsel %vm781, %v2506, %v2498
      %v2523 = vsel %vm781, %v2507, %v2499
      %v2524 = vsel %vm781, %v2508, %v2500
      %v2525 = vsel %vm781, %v2509, %v2501
      %v2526 = vsel %vm781, %v2510, %v2502
      %v2527 = vsel %vm781, %v2511, %v2503
      %v2528 = vsel %vm781, %v2512, %v2504
      %v2529 = vsel %vm781, %v2513, %v2505
      %v2530 = vsel %vm800, %v2522, 0.0
      %v2531 = vsel %vm801, %v2514, 0.0
      %v2532 = vsel %vm800, %v2523, 0.0
      %v2533 = vsel %vm801, %v2515, 0.0
      %v2534 = vsel %vm800, %v2524, 0.0
      %v2535 = vsel %vm801, %v2516, 0.0
      %v2536 = vsel %vm800, %v2525, 0.0
      %v2537 = vsel %vm801, %v2517, 0.0
      %v2538 = vsel %vm800, %v2526, 0.0
      %v2539 = vsel %vm801, %v2518, 0.0
      %v2540 = vsel %vm800, %v2527, 0.0
      %v2541 = vsel %vm801, %v2519, 0.0
      %v2542 = vsel %vm800, %v2528, 0.0
      %v2543 = vsel %vm801, %v2520, 0.0
      %v2544 = vsel %vm800, %v2529, 0.0
      %v2545 = vsel %vm801, %v2521, 0.0
      %v2546 = vadd.f32 %v2325, %v2530
      %v2547 = vadd.f32 %v2329, %v2531
      %v2548 = vadd.f32 %v2335, %v2532
      %v2549 = vadd.f32 %v2339, %v2533
      %v2550 = vadd.f32 %v2345, %v2534
      %v2551 = vadd.f32 %v2349, %v2535
      %v2552 = vadd.f32 %v2355, %v2536
      %v2553 = vadd.f32 %v2359, %v2537
      %v2554 = vadd.f32 %v2365, %v2538
      %v2555 = vadd.f32 %v2369, %v2539
      %v2556 = vadd.f32 %v2375, %v2540
      %v2557 = vadd.f32 %v2379, %v2541
      %v2558 = vadd.f32 %v2385, %v2542
      %v2559 = vadd.f32 %v2389, %v2543
      %v2560 = vadd.f32 %v2395, %v2544
      %v2561 = vadd.f32 %v2399, %v2545
      %v2562 = vrot.slane %v2436, 1
      %v2563 = vrot.slane %v2444, 1
      %v2564 = vrot.slane %v2452, 1
      %v2565 = vrot.slane %v2460, 1
      %v2566 = vrot.slane %v2468, 1
      %v2567 = vrot.slane %v2476, 1
      %v2568 = vrot.slane %v2484, 1
      %v2569 = vrot.slane %v2492, 1
      %v2570 = vrot.slane %v2439, 1
      %v2571 = vrot.slane %v2447, 1
      %v2572 = vrot.slane %v2455, 1
      %v2573 = vrot.slane %v2463, 1
      %v2574 = vrot.slane %v2471, 1
      %v2575 = vrot.slane %v2479, 1
      %v2576 = vrot.slane %v2487, 1
      %v2577 = vrot.slane %v2495, 1
      %v2578 = vsel %vm850, %v2562, %v2570
      %v2579 = vsel %vm850, %v2563, %v2571
      %v2580 = vsel %vm850, %v2564, %v2572
      %v2581 = vsel %vm850, %v2565, %v2573
      %v2582 = vsel %vm850, %v2566, %v2574
      %v2583 = vsel %vm850, %v2567, %v2575
      %v2584 = vsel %vm850, %v2568, %v2576
      %v2585 = vsel %vm850, %v2569, %v2577
      %v2586 = vsel %vm850, %v2570, %v2562
      %v2587 = vsel %vm850, %v2571, %v2563
      %v2588 = vsel %vm850, %v2572, %v2564
      %v2589 = vsel %vm850, %v2573, %v2565
      %v2590 = vsel %vm850, %v2574, %v2566
      %v2591 = vsel %vm850, %v2575, %v2567
      %v2592 = vsel %vm850, %v2576, %v2568
      %v2593 = vsel %vm850, %v2577, %v2569
      %v2594 = vsel %vm869, %v2578, 0.0
      %v2595 = vsel %vm870, %v2586, 0.0
      %v2596 = vsel %vm869, %v2579, 0.0
      %v2597 = vsel %vm870, %v2587, 0.0
      %v2598 = vsel %vm869, %v2580, 0.0
      %v2599 = vsel %vm870, %v2588, 0.0
      %v2600 = vsel %vm869, %v2581, 0.0
      %v2601 = vsel %vm870, %v2589, 0.0
      %v2602 = vsel %vm869, %v2582, 0.0
      %v2603 = vsel %vm870, %v2590, 0.0
      %v2604 = vsel %vm869, %v2583, 0.0
      %v2605 = vsel %vm870, %v2591, 0.0
      %v2606 = vsel %vm869, %v2584, 0.0
      %v2607 = vsel %vm870, %v2592, 0.0
      %v2608 = vsel %vm869, %v2585, 0.0
      %v2609 = vsel %vm870, %v2593, 0.0
      %v2610 = vadd.f32 %v2546, %v2594
      %v2611 = vadd.f32 %v2547, %v2595
      %v2612 = vadd.f32 %v2548, %v2596
      %v2613 = vadd.f32 %v2549, %v2597
      %v2614 = vadd.f32 %v2550, %v2598
      %v2615 = vadd.f32 %v2551, %v2599
      %v2616 = vadd.f32 %v2552, %v2600
      %v2617 = vadd.f32 %v2553, %v2601
      %v2618 = vadd.f32 %v2554, %v2602
      %v2619 = vadd.f32 %v2555, %v2603
      %v2620 = vadd.f32 %v2556, %v2604
      %v2621 = vadd.f32 %v2557, %v2605
      %v2622 = vadd.f32 %v2558, %v2606
      %v2623 = vadd.f32 %v2559, %v2607
      %v2624 = vadd.f32 %v2560, %v2608
      %v2625 = vadd.f32 %v2561, %v2609
      %s2626 = scalar_lea.vmem [#allocation2], 160
      %v2627 = vld [vmem:[%s2626] sm:$0xff]
      %v2628 = vld [vmem:[%s2626 + $0x8] sm:$0xff]
      %v2629 = vld [vmem:[%s2626 + $0x10] sm:$0xff]
      %v2630 = vld [vmem:[%s2626 + $0x18] sm:$0xff]
      %v2631 = vld [vmem:[%s2626 + $0x20] sm:$0xff]
      %v2632 = vld [vmem:[%s2626 + $0x28] sm:$0xff]
      %v2633 = vld [vmem:[%s2626 + $0x30] sm:$0xff]
      %v2634 = vld [vmem:[%s2626 + $0x38] sm:$0xff]
      %v2635 = vld [vmem:[%s2626 + $0x40] sm:$0xff]
      %v2636 = vld [vmem:[%s2626 + $0x48] sm:$0xff]
      %v2637 = vld [vmem:[%s2626 + $0x50] sm:$0xff]
      %v2638 = vld [vmem:[%s2626 + $0x58] sm:$0xff]
      %v2639 = vld [vmem:[%s2626 + $0x60] sm:$0xff]
      %v2640 = vld [vmem:[%s2626 + $0x68] sm:$0xff]
      %v2641 = vld [vmem:[%s2626 + $0x70] sm:$0xff]
      %v2642 = vld [vmem:[%s2626 + $0x78] sm:$0xff]
      %v2643 = vadd.f32 %v2627, %v2610
      %v2644 = vadd.f32 %v2628, %v2611
      %v2645 = vadd.f32 %v2629, %v2612
      %v2646 = vadd.f32 %v2630, %v2613
      %v2647 = vadd.f32 %v2631, %v2614
      %v2648 = vadd.f32 %v2632, %v2615
      %v2649 = vadd.f32 %v2633, %v2616
      %v2650 = vadd.f32 %v2634, %v2617
      %v2651 = vadd.f32 %v2635, %v2618
      %v2652 = vadd.f32 %v2636, %v2619
      %v2653 = vadd.f32 %v2637, %v2620
      %v2654 = vadd.f32 %v2638, %v2621
      %v2655 = vadd.f32 %v2639, %v2622
      %v2656 = vadd.f32 %v2640, %v2623
      %v2657 = vadd.f32 %v2641, %v2624
      %v2658 = vadd.f32 %v2642, %v2625
      %2659 = vst [vmem:[%s2626] sm:$0xff] %v2643
      %2660 = vst [vmem:[%s2626 + $0x8] sm:$0xff] %v2644
      %2661 = vst [vmem:[%s2626 + $0x10] sm:$0xff] %v2645
      %2662 = vst [vmem:[%s2626 + $0x18] sm:$0xff] %v2646
      %2663 = vst [vmem:[%s2626 + $0x20] sm:$0xff] %v2647
      %2664 = vst [vmem:[%s2626 + $0x28] sm:$0xff] %v2648
      %2665 = vst [vmem:[%s2626 + $0x30] sm:$0xff] %v2649
      %2666 = vst [vmem:[%s2626 + $0x38] sm:$0xff] %v2650
      %2667 = vst [vmem:[%s2626 + $0x40] sm:$0xff] %v2651
      %2668 = vst [vmem:[%s2626 + $0x48] sm:$0xff] %v2652
      %2669 = vst [vmem:[%s2626 + $0x50] sm:$0xff] %v2653
      %2670 = vst [vmem:[%s2626 + $0x58] sm:$0xff] %v2654
      %2671 = vst [vmem:[%s2626 + $0x60] sm:$0xff] %v2655
      %2672 = vst [vmem:[%s2626 + $0x68] sm:$0xff] %v2656
      %2673 = vst [vmem:[%s2626 + $0x70] sm:$0xff] %v2657
      %2674 = vst [vmem:[%s2626 + $0x78] sm:$0xff] %v2658
      %v2675 = vld [vmem:[%s952] sm:$0xff]
      %v2676 = vld [vmem:[%s952 + $0x8] sm:$0xf]
      %v2677 = vld [vmem:[%s952 + $0xc] sm:$0xff]
      %v2678 = vld [vmem:[%s952 + $0x14] sm:$0xf]
      %v2679 = vld [vmem:[%s952 + $0x18] sm:$0xff]
      %v2680 = vld [vmem:[%s952 + $0x20] sm:$0xf]
      %v2681 = vld [vmem:[%s952 + $0x24] sm:$0xff]
      %v2682 = vld [vmem:[%s952 + $0x2c] sm:$0xf]
      %v2683 = vld [vmem:[%s952 + $0x30] sm:$0xff]
      %v2684 = vld [vmem:[%s952 + $0x38] sm:$0xf]
      %v2685 = vld [vmem:[%s952 + $0x3c] sm:$0xff]
      %v2686 = vld [vmem:[%s952 + $0x44] sm:$0xf]
      %v2687 = vld [vmem:[%s952 + $0x48] sm:$0xff]
      %v2688 = vld [vmem:[%s952 + $0x50] sm:$0xf]
      %v2689 = vld [vmem:[%s952 + $0x54] sm:$0xff]
      %v2690 = vld [vmem:[%s952 + $0x5c] sm:$0xf]
      %v2691 = vld [vmem:[%s952 + $0x60] sm:$0xff]
      %v2692 = vld [vmem:[%s952 + $0x68] sm:$0xf]
      %v2693 = vld [vmem:[%s952 + $0x6c] sm:$0xff]
      %v2694 = vld [vmem:[%s952 + $0x74] sm:$0xf]
      %v2695 = vld [vmem:[%s952 + $0x78] sm:$0xff]
      %v2696 = vld [vmem:[%s952 + $0x80] sm:$0xf]
      %v2697 = vld [vmem:[%s952 + $0x84] sm:$0xff]
      %v2698 = vld [vmem:[%s952 + $0x8c] sm:$0xf]
      %v2699 = vld [vmem:[%s952 + $0x90] sm:$0xff]
      %v2700 = vld [vmem:[%s952 + $0x98] sm:$0xf]
      %v2701 = vld [vmem:[%s952 + $0x9c] sm:$0xff]
      %v2702 = vld [vmem:[%s952 + $0xa4] sm:$0xf]
      %v2703 = vld [vmem:[%s952 + $0xa8] sm:$0xff]
      %v2704 = vld [vmem:[%s952 + $0xb0] sm:$0xf]
      %v2705 = vld [vmem:[%s952 + $0xb4] sm:$0xff]
      %v2706 = vld [vmem:[%s952 + $0xbc] sm:$0xf]
      %v2739 = vunpack.c.l.b16 %v2675
      %v2740 = vunpack.c.h.b16 %v2675
      %v2741 = vunpack.c.l.b16 %v2676
      %v2742 = vunpack.c.l.b16 %v2677
      %v2743 = vunpack.c.h.b16 %v2677
      %v2744 = vunpack.c.l.b16 %v2678
      %v2745 = vunpack.c.l.b16 %v2679
      %v2746 = vunpack.c.h.b16 %v2679
      %v2747 = vunpack.c.l.b16 %v2680
      %v2748 = vunpack.c.l.b16 %v2681
      %v2749 = vunpack.c.h.b16 %v2681
      %v2750 = vunpack.c.l.b16 %v2682
      %v2751 = vunpack.c.l.b16 %v2683
      %v2752 = vunpack.c.h.b16 %v2683
      %v2753 = vunpack.c.l.b16 %v2684
      %v2754 = vunpack.c.l.b16 %v2685
      %v2755 = vunpack.c.h.b16 %v2685
      %v2756 = vunpack.c.l.b16 %v2686
      %v2757 = vunpack.c.l.b16 %v2687
      %v2758 = vunpack.c.h.b16 %v2687
      %v2759 = vunpack.c.l.b16 %v2688
      %v2760 = vunpack.c.l.b16 %v2689
      %v2761 = vunpack.c.h.b16 %v2689
      %v2762 = vunpack.c.l.b16 %v2690
      %v2763 = vunpack.c.l.b16 %v2691
      %v2764 = vunpack.c.h.b16 %v2691
      %v2765 = vunpack.c.l.b16 %v2692
      %v2766 = vunpack.c.l.b16 %v2693
      %v2767 = vunpack.c.h.b16 %v2693
      %v2768 = vunpack.c.l.b16 %v2694
      %v2769 = vunpack.c.l.b16 %v2695
      %v2770 = vunpack.c.h.b16 %v2695
      %v2771 = vunpack.c.l.b16 %v2696
      %v2772 = vunpack.c.l.b16 %v2697
      %v2773 = vunpack.c.h.b16 %v2697
      %v2774 = vunpack.c.l.b16 %v2698
      %v2775 = vunpack.c.l.b16 %v2699
      %v2776 = vunpack.c.h.b16 %v2699
      %v2777 = vunpack.c.l.b16 %v2700
      %v2778 = vunpack.c.l.b16 %v2701
      %v2779 = vunpack.c.h.b16 %v2701
      %v2780 = vunpack.c.l.b16 %v2702
      %v2781 = vunpack.c.l.b16 %v2703
      %v2782 = vunpack.c.h.b16 %v2703
      %v2783 = vunpack.c.l.b16 %v2704
      %v2784 = vunpack.c.l.b16 %v2705
      %v2785 = vunpack.c.h.b16 %v2705
      %v2786 = vunpack.c.l.b16 %v2706
      %v2787 = vpack.c.b16 %v2742, %v2739
      %v2788 = vpack.c.b16 %v2743, %v2740
      %v2789 = vpack.c.b16 %v2744, %v2741
      %v2790 = vpack.c.b16 %v2748, %v2745
      %v2791 = vpack.c.b16 %v2749, %v2746
      %v2792 = vpack.c.b16 %v2750, %v2747
      %v2793 = vpack.c.b16 %v2754, %v2751
      %v2794 = vpack.c.b16 %v2755, %v2752
      %v2795 = vpack.c.b16 %v2756, %v2753
      %v2796 = vpack.c.b16 %v2760, %v2757
      %v2797 = vpack.c.b16 %v2761, %v2758
      %v2798 = vpack.c.b16 %v2762, %v2759
      %v2799 = vpack.c.b16 %v2766, %v2763
      %v2800 = vpack.c.b16 %v2767, %v2764
      %v2801 = vpack.c.b16 %v2768, %v2765
      %v2802 = vpack.c.b16 %v2772, %v2769
      %v2803 = vpack.c.b16 %v2773, %v2770
      %v2804 = vpack.c.b16 %v2774, %v2771
      %v2805 = vpack.c.b16 %v2778, %v2775
      %v2806 = vpack.c.b16 %v2779, %v2776
      %v2807 = vpack.c.b16 %v2780, %v2777
      %v2808 = vpack.c.b16 %v2784, %v2781
      %v2809 = vpack.c.b16 %v2785, %v2782
      %v2810 = vpack.c.b16 %v2786, %v2783
      %2835 = vmatprep.subr.bf16.mxu0 %v2788
      %2836 = vmatpush1.bf16.msra.mxu0 %v2787
      %2837 = vmatprep.subr.bf16.mxu0 %v2791
      %2838 = vmatpush1.bf16.msra.mxu0 %v2790
      %2839 = vmatprep.subr.bf16.mxu0 %v2794
      %2840 = vmatpush1.bf16.msra.mxu0 %v2793
      %2841 = vmatprep.subr.bf16.mxu0 %v2797
      %2842 = vmatpush1.bf16.msra.mxu0 %v2796
      %2843 = vmatprep.subr.bf16.mxu0 %v2800
      %2844 = vmatpush1.bf16.msra.mxu0 %v2799
      %2845 = vmatprep.subr.bf16.mxu0 %v2803
      %2846 = vmatpush1.bf16.msra.mxu0 %v2802
      %2847 = vmatprep.subr.bf16.mxu0 %v2806
      %2848 = vmatpush1.bf16.msra.mxu0 %v2805
      %2849 = vmatprep.subr.bf16.mxu0 %v2809
      %2850 = vmatpush1.bf16.msra.mxu0 %v2808
      %2851 = vmatprep.subr.bf16.mxu0 0
      %2852 = vmatpush1.bf16.msra.mxu0 0
      %2853 = vmatprep.subr.bf16.mxu0 0
      %2854 = vmatpush1.bf16.msra.mxu0 0
      %2855 = vmatprep.subr.bf16.mxu0 0
      %2856 = vmatpush1.bf16.msra.mxu0 0
      %2857 = vmatprep.subr.bf16.mxu0 0
      %2858 = vmatpush1.bf16.msra.mxu0 0
      %2859 = vmatprep.subr.bf16.mxu0 0
      %2860 = vmatpush1.bf16.msra.mxu0 0
      %2861 = vmatprep.subr.bf16.mxu0 0
      %2862 = vmatpush1.bf16.msra.mxu0 0
      %2863 = vmatprep.subr.bf16.mxu0 0
      %2864 = vmatpush1.bf16.msra.mxu0 0
      %2865 = vmatprep.subr.bf16.mxu0 0
      %2866 = vmatpush1.bf16.msra.mxu0 0
      %2867 = vmatprep.mubr.bf16.mxu0 0
      %2868 = vmatmul.mubr.bf16.gmra.mrb[0].mxu0 %v2144
      %v2869 = vpop.f32.mrb[0].mxu0
      %v2870 = vadd.f32 0.0, %v2869
      %v2871 = vpop.f32.mrb[0].mxu0
      %v2872 = vadd.f32 0.0, %v2871
      %v2873 = vpop.f32.mrb[0].mxu0
      %v2874 = vadd.f32 0.0, %v2873
      %v2875 = vpop.f32.mrb[0].mxu0
      %v2876 = vadd.f32 0.0, %v2875
      %2877 = vmatprep.mubr.bf16.mxu0 0
      %2878 = vmatmul.mubr.bf16.gmra.mrb[0].mxu0 %v2145
      %v2879 = vpop.f32.mrb[0].mxu0
      %v2880 = vadd.f32 0.0, %v2879
      %v2881 = vpop.f32.mrb[0].mxu0
      %v2882 = vadd.f32 0.0, %v2881
      %v2883 = vpop.f32.mrb[0].mxu0
      %v2884 = vadd.f32 0.0, %v2883
      %v2885 = vpop.f32.mrb[0].mxu0
      %v2886 = vadd.f32 0.0, %v2885
      %2887 = vmatprep.mubr.bf16.mxu0 0
      %2888 = vmatmul.mubr.bf16.gmra.mrb[0].mxu0 %v2146
      %v2889 = vpop.f32.mrb[0].mxu0
      %v2890 = vadd.f32 0.0, %v2889
      %v2891 = vpop.f32.mrb[0].mxu0
      %v2892 = vadd.f32 0.0, %v2891
      %v2893 = vpop.f32.mrb[0].mxu0
      %v2894 = vadd.f32 0.0, %v2893
      %v2895 = vpop.f32.mrb[0].mxu0
      %v2896 = vadd.f32 0.0, %v2895
      %2897 = vmatprep.mubr.bf16.mxu0 0
      %2898 = vmatmul.mubr.bf16.gmra.mrb[0].mxu0 %v2147
      %v2899 = vpop.f32.mrb[0].mxu0
      %v2900 = vadd.f32 0.0, %v2899
      %v2901 = vpop.f32.mrb[0].mxu0
      %v2902 = vadd.f32 0.0, %v2901
      %v2903 = vpop.f32.mrb[0].mxu0
      %v2904 = vadd.f32 0.0, %v2903
      %v2905 = vpop.f32.mrb[0].mxu0
      %v2906 = vadd.f32 0.0, %v2905
      %2907 = vmatprep.mubr.bf16.mxu0 0
      %2908 = vmatmul.mubr.bf16.gmra.mrb[0].mxu0 %v2148
      %v2909 = vpop.f32.mrb[0].mxu0
      %v2910 = vadd.f32 0.0, %v2909
      %v2911 = vpop.f32.mrb[0].mxu0
      %v2912 = vadd.f32 0.0, %v2911
      %v2913 = vpop.f32.mrb[0].mxu0
      %v2914 = vadd.f32 0.0, %v2913
      %v2915 = vpop.f32.mrb[0].mxu0
      %v2916 = vadd.f32 0.0, %v2915
      %2917 = vmatprep.mubr.bf16.mxu0 0
      %2918 = vmatmul.mubr.bf16.gmra.mrb[0].mxu0 %v2149
      %v2919 = vpop.f32.mrb[0].mxu0
      %v2920 = vadd.f32 0.0, %v2919
      %v2921 = vpop.f32.mrb[0].mxu0
      %v2922 = vadd.f32 0.0, %v2921
      %v2923 = vpop.f32.mrb[0].mxu0
      %v2924 = vadd.f32 0.0, %v2923
      %v2925 = vpop.f32.mrb[0].mxu0
      %v2926 = vadd.f32 0.0, %v2925
      %2927 = vmatprep.mubr.bf16.mxu0 0
      %2928 = vmatmul.mubr.bf16.gmra.mrb[0].mxu0 %v2150
      %v2929 = vpop.f32.mrb[0].mxu0
      %v2930 = vadd.f32 0.0, %v2929
      %v2931 = vpop.f32.mrb[0].mxu0
      %v2932 = vadd.f32 0.0, %v2931
      %v2933 = vpop.f32.mrb[0].mxu0
      %v2934 = vadd.f32 0.0, %v2933
      %v2935 = vpop.f32.mrb[0].mxu0
      %v2936 = vadd.f32 0.0, %v2935
      %2937 = vmatprep.mubr.bf16.mxu0 0
      %2938 = vmatmul.mubr.bf16.gmra.mrb[0].mxu0 %v2151
      %v2939 = vpop.f32.mrb[0].mxu0
      %v2940 = vadd.f32 0.0, %v2939
      %v2941 = vpop.f32.mrb[0].mxu0
      %v2942 = vadd.f32 0.0, %v2941
      %v2943 = vpop.f32.mrb[0].mxu0
      %v2944 = vadd.f32 0.0, %v2943
      %v2945 = vpop.f32.mrb[0].mxu0
      %v2946 = vadd.f32 0.0, %v2945
      %2947 = vdwg.mxu0
      %2948 = vmatprep.subr.bf16.mxu0 0
      %2949 = vmatpush1.bf16.msra.mxu0 %v2789
      %2950 = vmatprep.subr.bf16.mxu0 0
      %2951 = vmatpush1.bf16.msra.mxu0 %v2792
      %2952 = vmatprep.subr.bf16.mxu0 0
      %2953 = vmatpush1.bf16.msra.mxu0 %v2795
      %2954 = vmatprep.subr.bf16.mxu0 0
      %2955 = vmatpush1.bf16.msra.mxu0 %v2798
      %2956 = vmatprep.subr.bf16.mxu0 0
      %2957 = vmatpush1.bf16.msra.mxu0 %v2801
      %2958 = vmatprep.subr.bf16.mxu0 0
      %2959 = vmatpush1.bf16.msra.mxu0 %v2804
      %2960 = vmatprep.subr.bf16.mxu0 0
      %2961 = vmatpush1.bf16.msra.mxu0 %v2807
      %2962 = vmatprep.subr.bf16.mxu0 0
      %2963 = vmatpush1.bf16.msra.mxu0 %v2810
      %2964 = vmatprep.subr.bf16.mxu0 0
      %2965 = vmatpush1.bf16.msra.mxu0 0
      %2966 = vmatprep.subr.bf16.mxu0 0
      %2967 = vmatpush1.bf16.msra.mxu0 0
      %2968 = vmatprep.subr.bf16.mxu0 0
      %2969 = vmatpush1.bf16.msra.mxu0 0
      %2970 = vmatprep.subr.bf16.mxu0 0
      %2971 = vmatpush1.bf16.msra.mxu0 0
      %2972 = vmatprep.subr.bf16.mxu0 0
      %2973 = vmatpush1.bf16.msra.mxu0 0
      %2974 = vmatprep.subr.bf16.mxu0 0
      %2975 = vmatpush1.bf16.msra.mxu0 0
      %2976 = vmatprep.subr.bf16.mxu0 0
      %2977 = vmatpush1.bf16.msra.mxu0 0
      %2978 = vmatprep.subr.bf16.mxu0 0
      %2979 = vmatpush1.bf16.msra.mxu0 0
      %2980 = vmatprep.mubr.bf16.mxu0 0
      %2981 = vmatmul.mubr.bf16.gmra.mrb[0].mxu0 %v2144
      %v2982 = vpop.f32.mrb[0].mxu0
      %v2983 = vadd.f32 0.0, %v2982
      %v2984 = vpop.f32.mrb[0].mxu0
      %v2985 = vpop.f32.mrb[0].mxu0
      %v2986 = vadd.f32 0.0, %v2985
      %v2987 = vpop.f32.mrb[0].mxu0
      %2988 = vmatprep.mubr.bf16.mxu0 0
      %2989 = vmatmul.mubr.bf16.gmra.mrb[0].mxu0 %v2145
      %v2990 = vpop.f32.mrb[0].mxu0
      %v2991 = vadd.f32 0.0, %v2990
      %v2992 = vpop.f32.mrb[0].mxu0
      %v2993 = vpop.f32.mrb[0].mxu0
      %v2994 = vadd.f32 0.0, %v2993
      %v2995 = vpop.f32.mrb[0].mxu0
      %2996 = vmatprep.mubr.bf16.mxu0 0
      %2997 = vmatmul.mubr.bf16.gmra.mrb[0].mxu0 %v2146
      %v2998 = vpop.f32.mrb[0].mxu0
      %v2999 = vadd.f32 0.0, %v2998
      %v3000 = vpop.f32.mrb[0].mxu0
      %v3001 = vpop.f32.mrb[0].mxu0
      %v3002 = vadd.f32 0.0, %v3001
      %v3003 = vpop.f32.mrb[0].mxu0
      %3004 = vmatprep.mubr.bf16.mxu0 0
      %3005 = vmatmul.mubr.bf16.gmra.mrb[0].mxu0 %v2147
      %v3006 = vpop.f32.mrb[0].mxu0
      %v3007 = vadd.f32 0.0, %v3006
      %v3008 = vpop.f32.mrb[0].mxu0
      %v3009 = vpop.f32.mrb[0].mxu0
      %v3010 = vadd.f32 0.0, %v3009
      %v3011 = vpop.f32.mrb[0].mxu0
      %3012 = vmatprep.mubr.bf16.mxu0 0
      %3013 = vmatmul.mubr.bf16.gmra.mrb[0].mxu0 %v2148
      %v3014 = vpop.f32.mrb[0].mxu0
      %v3015 = vadd.f32 0.0, %v3014
      %v3016 = vpop.f32.mrb[0].mxu0
      %v3017 = vpop.f32.mrb[0].mxu0
      %v3018 = vadd.f32 0.0, %v3017
      %v3019 = vpop.f32.mrb[0].mxu0
      %3020 = vmatprep.mubr.bf16.mxu0 0
      %3021 = vmatmul.mubr.bf16.gmra.mrb[0].mxu0 %v2149
      %v3022 = vpop.f32.mrb[0].mxu0
      %v3023 = vadd.f32 0.0, %v3022
      %v3024 = vpop.f32.mrb[0].mxu0
      %v3025 = vpop.f32.mrb[0].mxu0
      %v3026 = vadd.f32 0.0, %v3025
      %v3027 = vpop.f32.mrb[0].mxu0
      %3028 = vmatprep.mubr.bf16.mxu0 0
      %3029 = vmatmul.mubr.bf16.gmra.mrb[0].mxu0 %v2150
      %v3030 = vpop.f32.mrb[0].mxu0
      %v3031 = vadd.f32 0.0, %v3030
      %v3032 = vpop.f32.mrb[0].mxu0
      %v3033 = vpop.f32.mrb[0].mxu0
      %v3034 = vadd.f32 0.0, %v3033
      %v3035 = vpop.f32.mrb[0].mxu0
      %3036 = vmatprep.mubr.bf16.mxu0 0
      %3037 = vmatmul.mubr.bf16.gmra.mrb[0].mxu0 %v2151
      %v3038 = vpop.f32.mrb[0].mxu0
      %v3039 = vadd.f32 0.0, %v3038
      %v3040 = vpop.f32.mrb[0].mxu0
      %v3041 = vpop.f32.mrb[0].mxu0
      %v3042 = vadd.f32 0.0, %v3041
      %v3043 = vpop.f32.mrb[0].mxu0
      %3044 = vdwg.mxu0
      %v3045 = vrot.slane %v2870, 7
      %v3046 = vrot.slane %v2880, 7
      %v3047 = vrot.slane %v2890, 7
      %v3048 = vrot.slane %v2900, 7
      %v3049 = vrot.slane %v2910, 7
      %v3050 = vrot.slane %v2920, 7
      %v3051 = vrot.slane %v2930, 7
      %v3052 = vrot.slane %v2940, 7
      %v3053 = vrot.slane %v2874, 7
      %v3054 = vrot.slane %v2884, 7
      %v3055 = vrot.slane %v2894, 7
      %v3056 = vrot.slane %v2904, 7
      %v3057 = vrot.slane %v2914, 7
      %v3058 = vrot.slane %v2924, 7
      %v3059 = vrot.slane %v2934, 7
      %v3060 = vrot.slane %v2944, 7
      %v3061 = vsel %vm781, %v3045, %v3053
      %v3062 = vsel %vm781, %v3046, %v3054
      %v3063 = vsel %vm781, %v3047, %v3055
      %v3064 = vsel %vm781, %v3048, %v3056
      %v3065 = vsel %vm781, %v3049, %v3057
      %v3066 = vsel %vm781, %v3050, %v3058
      %v3067 = vsel %vm781, %v3051, %v3059
      %v3068 = vsel %vm781, %v3052, %v3060
      %v3069 = vsel %vm781, %v3053, %v3045
      %v3070 = vsel %vm781, %v3054, %v3046
      %v3071 = vsel %vm781, %v3055, %v3047
      %v3072 = vsel %vm781, %v3056, %v3048
      %v3073 = vsel %vm781, %v3057, %v3049
      %v3074 = vsel %vm781, %v3058, %v3050
      %v3075 = vsel %vm781, %v3059, %v3051
      %v3076 = vsel %vm781, %v3060, %v3052
      %v3077 = vsel %vm800, %v3069, 0.0
      %v3078 = vsel %vm801, %v3061, 0.0
      %v3079 = vsel %vm800, %v3070, 0.0
      %v3080 = vsel %vm801, %v3062, 0.0
      %v3081 = vsel %vm800, %v3071, 0.0
      %v3082 = vsel %vm801, %v3063, 0.0
      %v3083 = vsel %vm800, %v3072, 0.0
      %v3084 = vsel %vm801, %v3064, 0.0
      %v3085 = vsel %vm800, %v3073, 0.0
      %v3086 = vsel %vm801, %v3065, 0.0
      %v3087 = vsel %vm800, %v3074, 0.0
      %v3088 = vsel %vm801, %v3066, 0.0
      %v3089 = vsel %vm800, %v3075, 0.0
      %v3090 = vsel %vm801, %v3067, 0.0
      %v3091 = vsel %vm800, %v3076, 0.0
      %v3092 = vsel %vm801, %v3068, 0.0
      %v3093 = vadd.f32 %v2872, %v3077
      %v3094 = vadd.f32 %v2876, %v3078
      %v3095 = vadd.f32 %v2882, %v3079
      %v3096 = vadd.f32 %v2886, %v3080
      %v3097 = vadd.f32 %v2892, %v3081
      %v3098 = vadd.f32 %v2896, %v3082
      %v3099 = vadd.f32 %v2902, %v3083
      %v3100 = vadd.f32 %v2906, %v3084
      %v3101 = vadd.f32 %v2912, %v3085
      %v3102 = vadd.f32 %v2916, %v3086
      %v3103 = vadd.f32 %v2922, %v3087
      %v3104 = vadd.f32 %v2926, %v3088
      %v3105 = vadd.f32 %v2932, %v3089
      %v3106 = vadd.f32 %v2936, %v3090
      %v3107 = vadd.f32 %v2942, %v3091
      %v3108 = vadd.f32 %v2946, %v3092
      %v3109 = vrot.slane %v2983, 1
      %v3110 = vrot.slane %v2991, 1
      %v3111 = vrot.slane %v2999, 1
      %v3112 = vrot.slane %v3007, 1
      %v3113 = vrot.slane %v3015, 1
      %v3114 = vrot.slane %v3023, 1
      %v3115 = vrot.slane %v3031, 1
      %v3116 = vrot.slane %v3039, 1
      %v3117 = vrot.slane %v2986, 1
      %v3118 = vrot.slane %v2994, 1
      %v3119 = vrot.slane %v3002, 1
      %v3120 = vrot.slane %v3010, 1
      %v3121 = vrot.slane %v3018, 1
      %v3122 = vrot.slane %v3026, 1
      %v3123 = vrot.slane %v3034, 1
      %v3124 = vrot.slane %v3042, 1
      %v3125 = vsel %vm850, %v3109, %v3117
      %v3126 = vsel %vm850, %v3110, %v3118
      %v3127 = vsel %vm850, %v3111, %v3119
      %v3128 = vsel %vm850, %v3112, %v3120
      %v3129 = vsel %vm850, %v3113, %v3121
      %v3130 = vsel %vm850, %v3114, %v3122
      %v3131 = vsel %vm850, %v3115, %v3123
      %v3132 = vsel %vm850, %v3116, %v3124
      %v3133 = vsel %vm850, %v3117, %v3109
      %v3134 = vsel %vm850, %v3118, %v3110
      %v3135 = vsel %vm850, %v3119, %v3111
      %v3136 = vsel %vm850, %v3120, %v3112
      %v3137 = vsel %vm850, %v3121, %v3113
      %v3138 = vsel %vm850, %v3122, %v3114
      %v3139 = vsel %vm850, %v3123, %v3115
      %v3140 = vsel %vm850, %v3124, %v3116
      %v3141 = vsel %vm869, %v3125, 0.0
      %v3142 = vsel %vm870, %v3133, 0.0
      %v3143 = vsel %vm869, %v3126, 0.0
      %v3144 = vsel %vm870, %v3134, 0.0
      %v3145 = vsel %vm869, %v3127, 0.0
      %v3146 = vsel %vm870, %v3135, 0.0
      %v3147 = vsel %vm869, %v3128, 0.0
      %v3148 = vsel %vm870, %v3136, 0.0
      %v3149 = vsel %vm869, %v3129, 0.0
      %v3150 = vsel %vm870, %v3137, 0.0
      %v3151 = vsel %vm869, %v3130, 0.0
      %v3152 = vsel %vm870, %v3138, 0.0
      %v3153 = vsel %vm869, %v3131, 0.0
      %v3154 = vsel %vm870, %v3139, 0.0
      %v3155 = vsel %vm869, %v3132, 0.0
      %v3156 = vsel %vm870, %v3140, 0.0
      %v3157 = vadd.f32 %v3093, %v3141
      %v3158 = vadd.f32 %v3094, %v3142
      %v3159 = vadd.f32 %v3095, %v3143
      %v3160 = vadd.f32 %v3096, %v3144
      %v3161 = vadd.f32 %v3097, %v3145
      %v3162 = vadd.f32 %v3098, %v3146
      %v3163 = vadd.f32 %v3099, %v3147
      %v3164 = vadd.f32 %v3100, %v3148
      %v3165 = vadd.f32 %v3101, %v3149
      %v3166 = vadd.f32 %v3102, %v3150
      %v3167 = vadd.f32 %v3103, %v3151
      %v3168 = vadd.f32 %v3104, %v3152
      %v3169 = vadd.f32 %v3105, %v3153
      %v3170 = vadd.f32 %v3106, %v3154
      %v3171 = vadd.f32 %v3107, %v3155
      %v3172 = vadd.f32 %v3108, %v3156
      %s3173 = scalar_lea.vmem [#allocation2], 144
      %v3174 = vld [vmem:[%s3173] sm:$0xff]
      %v3175 = vld [vmem:[%s3173 + $0x8] sm:$0xff]
      %v3176 = vld [vmem:[%s3173 + $0x10] sm:$0xff]
      %v3177 = vld [vmem:[%s3173 + $0x18] sm:$0xff]
      %v3178 = vld [vmem:[%s3173 + $0x20] sm:$0xff]
      %v3179 = vld [vmem:[%s3173 + $0x28] sm:$0xff]
      %v3180 = vld [vmem:[%s3173 + $0x30] sm:$0xff]
      %v3181 = vld [vmem:[%s3173 + $0x38] sm:$0xff]
      %v3182 = vld [vmem:[%s3173 + $0x40] sm:$0xff]
      %v3183 = vld [vmem:[%s3173 + $0x48] sm:$0xff]
      %v3184 = vld [vmem:[%s3173 + $0x50] sm:$0xff]
      %v3185 = vld [vmem:[%s3173 + $0x58] sm:$0xff]
      %v3186 = vld [vmem:[%s3173 + $0x60] sm:$0xff]
      %v3187 = vld [vmem:[%s3173 + $0x68] sm:$0xff]
      %v3188 = vld [vmem:[%s3173 + $0x70] sm:$0xff]
      %v3189 = vld [vmem:[%s3173 + $0x78] sm:$0xff]
      %v3190 = vadd.f32 %v3174, %v3157
      %v3191 = vadd.f32 %v3175, %v3158
      %v3192 = vadd.f32 %v3176, %v3159
      %v3193 = vadd.f32 %v3177, %v3160
      %v3194 = vadd.f32 %v3178, %v3161
      %v3195 = vadd.f32 %v3179, %v3162
      %v3196 = vadd.f32 %v3180, %v3163
      %v3197 = vadd.f32 %v3181, %v3164
      %v3198 = vadd.f32 %v3182, %v3165
      %v3199 = vadd.f32 %v3183, %v3166
      %v3200 = vadd.f32 %v3184, %v3167
      %v3201 = vadd.f32 %v3185, %v3168
      %v3202 = vadd.f32 %v3186, %v3169
      %v3203 = vadd.f32 %v3187, %v3170
      %v3204 = vadd.f32 %v3188, %v3171
      %v3205 = vadd.f32 %v3189, %v3172
      %3206 = vst [vmem:[%s3173] sm:$0xff] %v3190
      %3207 = vst [vmem:[%s3173 + $0x8] sm:$0xff] %v3191
      %3208 = vst [vmem:[%s3173 + $0x10] sm:$0xff] %v3192
      %3209 = vst [vmem:[%s3173 + $0x18] sm:$0xff] %v3193
      %3210 = vst [vmem:[%s3173 + $0x20] sm:$0xff] %v3194
      %3211 = vst [vmem:[%s3173 + $0x28] sm:$0xff] %v3195
      %3212 = vst [vmem:[%s3173 + $0x30] sm:$0xff] %v3196
      %3213 = vst [vmem:[%s3173 + $0x38] sm:$0xff] %v3197
      %3214 = vst [vmem:[%s3173 + $0x40] sm:$0xff] %v3198
      %3215 = vst [vmem:[%s3173 + $0x48] sm:$0xff] %v3199
      %3216 = vst [vmem:[%s3173 + $0x50] sm:$0xff] %v3200
      %3217 = vst [vmem:[%s3173 + $0x58] sm:$0xff] %v3201
      %3218 = vst [vmem:[%s3173 + $0x60] sm:$0xff] %v3202
      %3219 = vst [vmem:[%s3173 + $0x68] sm:$0xff] %v3203
      %3220 = vst [vmem:[%s3173 + $0x70] sm:$0xff] %v3204
      %3221 = vst [vmem:[%s3173 + $0x78] sm:$0xff] %v3205
      %v3222 = vld [vmem:[%s1500] sm:$0xff]
      %v3223 = vld [vmem:[%s1500 + $0x8] sm:$0xf]
      %v3224 = vld [vmem:[%s1500 + $0xc] sm:$0xff]
      %v3225 = vld [vmem:[%s1500 + $0x14] sm:$0xf]
      %v3226 = vld [vmem:[%s1500 + $0x18] sm:$0xff]
      %v3227 = vld [vmem:[%s1500 + $0x20] sm:$0xf]
      %v3228 = vld [vmem:[%s1500 + $0x24] sm:$0xff]
      %v3229 = vld [vmem:[%s1500 + $0x2c] sm:$0xf]
      %v3230 = vld [vmem:[%s1500 + $0x30] sm:$0xff]
      %v3231 = vld [vmem:[%s1500 + $0x38] sm:$0xf]
      %v3232 = vld [vmem:[%s1500 + $0x3c] sm:$0xff]
      %v3233 = vld [vmem:[%s1500 + $0x44] sm:$0xf]
      %v3234 = vld [vmem:[%s1500 + $0x48] sm:$0xff]
      %v3235 = vld [vmem:[%s1500 + $0x50] sm:$0xf]
      %v3236 = vld [vmem:[%s1500 + $0x54] sm:$0xff]
      %v3237 = vld [vmem:[%s1500 + $0x5c] sm:$0xf]
      %v3238 = vld [vmem:[%s1500 + $0x60] sm:$0xff]
      %v3239 = vld [vmem:[%s1500 + $0x68] sm:$0xf]
      %v3240 = vld [vmem:[%s1500 + $0x6c] sm:$0xff]
      %v3241 = vld [vmem:[%s1500 + $0x74] sm:$0xf]
      %v3242 = vld [vmem:[%s1500 + $0x78] sm:$0xff]
      %v3243 = vld [vmem:[%s1500 + $0x80] sm:$0xf]
      %v3244 = vld [vmem:[%s1500 + $0x84] sm:$0xff]
      %v3245 = vld [vmem:[%s1500 + $0x8c] sm:$0xf]
      %v3246 = vld [vmem:[%s1500 + $0x90] sm:$0xff]
      %v3247 = vld [vmem:[%s1500 + $0x98] sm:$0xf]
      %v3248 = vld [vmem:[%s1500 + $0x9c] sm:$0xff]
      %v3249 = vld [vmem:[%s1500 + $0xa4] sm:$0xf]
      %v3250 = vld [vmem:[%s1500 + $0xa8] sm:$0xff]
      %v3251 = vld [vmem:[%s1500 + $0xb0] sm:$0xf]
      %v3252 = vld [vmem:[%s1500 + $0xb4] sm:$0xff]
      %v3253 = vld [vmem:[%s1500 + $0xbc] sm:$0xf]
      %v3286 = vunpack.c.l.b16 %v3222
      %v3287 = vunpack.c.h.b16 %v3222
      %v3288 = vunpack.c.l.b16 %v3223
      %v3289 = vunpack.c.l.b16 %v3224
      %v3290 = vunpack.c.h.b16 %v3224
      %v3291 = vunpack.c.l.b16 %v3225
      %v3292 = vunpack.c.l.b16 %v3226
      %v3293 = vunpack.c.h.b16 %v3226
      %v3294 = vunpack.c.l.b16 %v3227
      %v3295 = vunpack.c.l.b16 %v3228
      %v3296 = vunpack.c.h.b16 %v3228
      %v3297 = vunpack.c.l.b16 %v3229
      %v3298 = vunpack.c.l.b16 %v3230
      %v3299 = vunpack.c.h.b16 %v3230
      %v3300 = vunpack.c.l.b16 %v3231
      %v3301 = vunpack.c.l.b16 %v3232
      %v3302 = vunpack.c.h.b16 %v3232
      %v3303 = vunpack.c.l.b16 %v3233
      %v3304 = vunpack.c.l.b16 %v3234
      %v3305 = vunpack.c.h.b16 %v3234
      %v3306 = vunpack.c.l.b16 %v3235
      %v3307 = vunpack.c.l.b16 %v3236
      %v3308 = vunpack.c.h.b16 %v3236
      %v3309 = vunpack.c.l.b16 %v3237
      %v3310 = vunpack.c.l.b16 %v3238
      %v3311 = vunpack.c.h.b16 %v3238
      %v3312 = vunpack.c.l.b16 %v3239
      %v3313 = vunpack.c.l.b16 %v3240
      %v3314 = vunpack.c.h.b16 %v3240
      %v3315 = vunpack.c.l.b16 %v3241
      %v3316 = vunpack.c.l.b16 %v3242
      %v3317 = vunpack.c.h.b16 %v3242
      %v3318 = vunpack.c.l.b16 %v3243
      %v3319 = vunpack.c.l.b16 %v3244
      %v3320 = vunpack.c.h.b16 %v3244
      %v3321 = vunpack.c.l.b16 %v3245
      %v3322 = vunpack.c.l.b16 %v3246
      %v3323 = vunpack.c.h.b16 %v3246
      %v3324 = vunpack.c.l.b16 %v3247
      %v3325 = vunpack.c.l.b16 %v3248
      %v3326 = vunpack.c.h.b16 %v3248
      %v3327 = vunpack.c.l.b16 %v3249
      %v3328 = vunpack.c.l.b16 %v3250
      %v3329 = vunpack.c.h.b16 %v3250
      %v3330 = vunpack.c.l.b16 %v3251
      %v3331 = vunpack.c.l.b16 %v3252
      %v3332 = vunpack.c.h.b16 %v3252
      %v3333 = vunpack.c.l.b16 %v3253
      %v3334 = vpack.c.b16 %v3289, %v3286
      %v3335 = vpack.c.b16 %v3290, %v3287
      %v3336 = vpack.c.b16 %v3291, %v3288
      %v3337 = vpack.c.b16 %v3295, %v3292
      %v3338 = vpack.c.b16 %v3296, %v3293
      %v3339 = vpack.c.b16 %v3297, %v3294
      %v3340 = vpack.c.b16 %v3301, %v3298
      %v3341 = vpack.c.b16 %v3302, %v3299
      %v3342 = vpack.c.b16 %v3303, %v3300
      %v3343 = vpack.c.b16 %v3307, %v3304
      %v3344 = vpack.c.b16 %v3308, %v3305
      %v3345 = vpack.c.b16 %v3309, %v3306
      %v3346 = vpack.c.b16 %v3313, %v3310
      %v3347 = vpack.c.b16 %v3314, %v3311
      %v3348 = vpack.c.b16 %v3315, %v3312
      %v3349 = vpack.c.b16 %v3319, %v3316
      %v3350 = vpack.c.b16 %v3320, %v3317
      %v3351 = vpack.c.b16 %v3321, %v3318
      %v3352 = vpack.c.b16 %v3325, %v3322
      %v3353 = vpack.c.b16 %v3326, %v3323
      %v3354 = vpack.c.b16 %v3327, %v3324
      %v3355 = vpack.c.b16 %v3331, %v3328
      %v3356 = vpack.c.b16 %v3332, %v3329
      %v3357 = vpack.c.b16 %v3333, %v3330
      %3382 = vmatprep.subr.bf16.mxu0 %v3335
      %3383 = vmatpush1.bf16.msra.mxu0 %v3334
      %3384 = vmatprep.subr.bf16.mxu0 %v3338
      %3385 = vmatpush1.bf16.msra.mxu0 %v3337
      %3386 = vmatprep.subr.bf16.mxu0 %v3341
      %3387 = vmatpush1.bf16.msra.mxu0 %v3340
      %3388 = vmatprep.subr.bf16.mxu0 %v3344
      %3389 = vmatpush1.bf16.msra.mxu0 %v3343
      %3390 = vmatprep.subr.bf16.mxu0 %v3347
      %3391 = vmatpush1.bf16.msra.mxu0 %v3346
      %3392 = vmatprep.subr.bf16.mxu0 %v3350
      %3393 = vmatpush1.bf16.msra.mxu0 %v3349
      %3394 = vmatprep.subr.bf16.mxu0 %v3353
      %3395 = vmatpush1.bf16.msra.mxu0 %v3352
      %3396 = vmatprep.subr.bf16.mxu0 %v3356
      %3397 = vmatpush1.bf16.msra.mxu0 %v3355
      %3398 = vmatprep.subr.bf16.mxu0 0
      %3399 = vmatpush1.bf16.msra.mxu0 0
      %3400 = vmatprep.subr.bf16.mxu0 0
      %3401 = vmatpush1.bf16.msra.mxu0 0
      %3402 = vmatprep.subr.bf16.mxu0 0
      %3403 = vmatpush1.bf16.msra.mxu0 0
      %3404 = vmatprep.subr.bf16.mxu0 0
      %3405 = vmatpush1.bf16.msra.mxu0 0
      %3406 = vmatprep.subr.bf16.mxu0 0
      %3407 = vmatpush1.bf16.msra.mxu0 0
      %3408 = vmatprep.subr.bf16.mxu0 0
      %3409 = vmatpush1.bf16.msra.mxu0 0
      %3410 = vmatprep.subr.bf16.mxu0 0
      %3411 = vmatpush1.bf16.msra.mxu0 0
      %3412 = vmatprep.subr.bf16.mxu0 0
      %3413 = vmatpush1.bf16.msra.mxu0 0
      %3414 = vmatprep.mubr.bf16.mxu0 0
      %3415 = vmatmul.mubr.bf16.gmra.mrb[0].mxu0 %v2144
      %v3416 = vpop.f32.mrb[0].mxu0
      %v3417 = vadd.f32 0.0, %v3416
      %v3418 = vpop.f32.mrb[0].mxu0
      %v3419 = vadd.f32 0.0, %v3418
      %v3420 = vpop.f32.mrb[0].mxu0
      %v3421 = vadd.f32 0.0, %v3420
      %v3422 = vpop.f32.mrb[0].mxu0
      %v3423 = vadd.f32 0.0, %v3422
      %3424 = vmatprep.mubr.bf16.mxu0 0
      %3425 = vmatmul.mubr.bf16.gmra.mrb[0].mxu0 %v2145
      %v3426 = vpop.f32.mrb[0].mxu0
      %v3427 = vadd.f32 0.0, %v3426
      %v3428 = vpop.f32.mrb[0].mxu0
      %v3429 = vadd.f32 0.0, %v3428
      %v3430 = vpop.f32.mrb[0].mxu0
      %v3431 = vadd.f32 0.0, %v3430
      %v3432 = vpop.f32.mrb[0].mxu0
      %v3433 = vadd.f32 0.0, %v3432
      %3434 = vmatprep.mubr.bf16.mxu0 0
      %3435 = vmatmul.mubr.bf16.gmra.mrb[0].mxu0 %v2146
      %v3436 = vpop.f32.mrb[0].mxu0
      %v3437 = vadd.f32 0.0, %v3436
      %v3438 = vpop.f32.mrb[0].mxu0
      %v3439 = vadd.f32 0.0, %v3438
      %v3440 = vpop.f32.mrb[0].mxu0
      %v3441 = vadd.f32 0.0, %v3440
      %v3442 = vpop.f32.mrb[0].mxu0
      %v3443 = vadd.f32 0.0, %v3442
      %3444 = vmatprep.mubr.bf16.mxu0 0
      %3445 = vmatmul.mubr.bf16.gmra.mrb[0].mxu0 %v2147
      %v3446 = vpop.f32.mrb[0].mxu0
      %v3447 = vadd.f32 0.0, %v3446
      %v3448 = vpop.f32.mrb[0].mxu0
      %v3449 = vadd.f32 0.0, %v3448
      %v3450 = vpop.f32.mrb[0].mxu0
      %v3451 = vadd.f32 0.0, %v3450
      %v3452 = vpop.f32.mrb[0].mxu0
      %v3453 = vadd.f32 0.0, %v3452
      %3454 = vmatprep.mubr.bf16.mxu0 0
      %3455 = vmatmul.mubr.bf16.gmra.mrb[0].mxu0 %v2148
      %v3456 = vpop.f32.mrb[0].mxu0
      %v3457 = vadd.f32 0.0, %v3456
      %v3458 = vpop.f32.mrb[0].mxu0
      %v3459 = vadd.f32 0.0, %v3458
      %v3460 = vpop.f32.mrb[0].mxu0
      %v3461 = vadd.f32 0.0, %v3460
      %v3462 = vpop.f32.mrb[0].mxu0
      %v3463 = vadd.f32 0.0, %v3462
      %3464 = vmatprep.mubr.bf16.mxu0 0
      %3465 = vmatmul.mubr.bf16.gmra.mrb[0].mxu0 %v2149
      %v3466 = vpop.f32.mrb[0].mxu0
      %v3467 = vadd.f32 0.0, %v3466
      %v3468 = vpop.f32.mrb[0].mxu0
      %v3469 = vadd.f32 0.0, %v3468
      %v3470 = vpop.f32.mrb[0].mxu0
      %v3471 = vadd.f32 0.0, %v3470
      %v3472 = vpop.f32.mrb[0].mxu0
      %v3473 = vadd.f32 0.0, %v3472
      %3474 = vmatprep.mubr.bf16.mxu0 0
      %3475 = vmatmul.mubr.bf16.gmra.mrb[0].mxu0 %v2150
      %v3476 = vpop.f32.mrb[0].mxu0
      %v3477 = vadd.f32 0.0, %v3476
      %v3478 = vpop.f32.mrb[0].mxu0
      %v3479 = vadd.f32 0.0, %v3478
      %v3480 = vpop.f32.mrb[0].mxu0
      %v3481 = vadd.f32 0.0, %v3480
      %v3482 = vpop.f32.mrb[0].mxu0
      %v3483 = vadd.f32 0.0, %v3482
      %3484 = vmatprep.mubr.bf16.mxu0 0
      %3485 = vmatmul.mubr.bf16.gmra.mrb[0].mxu0 %v2151
      %v3486 = vpop.f32.mrb[0].mxu0
      %v3487 = vadd.f32 0.0, %v3486
      %v3488 = vpop.f32.mrb[0].mxu0
      %v3489 = vadd.f32 0.0, %v3488
      %v3490 = vpop.f32.mrb[0].mxu0
      %v3491 = vadd.f32 0.0, %v3490
      %v3492 = vpop.f32.mrb[0].mxu0
      %v3493 = vadd.f32 0.0, %v3492
      %3494 = vdwg.mxu0
      %3495 = vmatprep.subr.bf16.mxu0 0
      %3496 = vmatpush1.bf16.msra.mxu0 %v3336
      %3497 = vmatprep.subr.bf16.mxu0 0
      %3498 = vmatpush1.bf16.msra.mxu0 %v3339
      %3499 = vmatprep.subr.bf16.mxu0 0
      %3500 = vmatpush1.bf16.msra.mxu0 %v3342
      %3501 = vmatprep.subr.bf16.mxu0 0
      %3502 = vmatpush1.bf16.msra.mxu0 %v3345
      %3503 = vmatprep.subr.bf16.mxu0 0
      %3504 = vmatpush1.bf16.msra.mxu0 %v3348
      %3505 = vmatprep.subr.bf16.mxu0 0
      %3506 = vmatpush1.bf16.msra.mxu0 %v3351
      %3507 = vmatprep.subr.bf16.mxu0 0
      %3508 = vmatpush1.bf16.msra.mxu0 %v3354
      %3509 = vmatprep.subr.bf16.mxu0 0
      %3510 = vmatpush1.bf16.msra.mxu0 %v3357
      %3511 = vmatprep.subr.bf16.mxu0 0
      %3512 = vmatpush1.bf16.msra.mxu0 0
      %3513 = vmatprep.subr.bf16.mxu0 0
      %3514 = vmatpush1.bf16.msra.mxu0 0
      %3515 = vmatprep.subr.bf16.mxu0 0
      %3516 = vmatpush1.bf16.msra.mxu0 0
      %3517 = vmatprep.subr.bf16.mxu0 0
      %3518 = vmatpush1.bf16.msra.mxu0 0
      %3519 = vmatprep.subr.bf16.mxu0 0
      %3520 = vmatpush1.bf16.msra.mxu0 0
      %3521 = vmatprep.subr.bf16.mxu0 0
      %3522 = vmatpush1.bf16.msra.mxu0 0
      %3523 = vmatprep.subr.bf16.mxu0 0
      %3524 = vmatpush1.bf16.msra.mxu0 0
      %3525 = vmatprep.subr.bf16.mxu0 0
      %3526 = vmatpush1.bf16.msra.mxu0 0
      %3527 = vmatprep.mubr.bf16.mxu0 0
      %3528 = vmatmul.mubr.bf16.gmra.mrb[0].mxu0 %v2144
      %v3529 = vpop.f32.mrb[0].mxu0
      %v3530 = vadd.f32 0.0, %v3529
      %v3531 = vpop.f32.mrb[0].mxu0
      %v3532 = vpop.f32.mrb[0].mxu0
      %v3533 = vadd.f32 0.0, %v3532
      %v3534 = vpop.f32.mrb[0].mxu0
      %3535 = vmatprep.mubr.bf16.mxu0 0
      %3536 = vmatmul.mubr.bf16.gmra.mrb[0].mxu0 %v2145
      %v3537 = vpop.f32.mrb[0].mxu0
      %v3538 = vadd.f32 0.0, %v3537
      %v3539 = vpop.f32.mrb[0].mxu0
      %v3540 = vpop.f32.mrb[0].mxu0
      %v3541 = vadd.f32 0.0, %v3540
      %v3542 = vpop.f32.mrb[0].mxu0
      %3543 = vmatprep.mubr.bf16.mxu0 0
      %3544 = vmatmul.mubr.bf16.gmra.mrb[0].mxu0 %v2146
      %v3545 = vpop.f32.mrb[0].mxu0
      %v3546 = vadd.f32 0.0, %v3545
      %v3547 = vpop.f32.mrb[0].mxu0
      %v3548 = vpop.f32.mrb[0].mxu0
      %v3549 = vadd.f32 0.0, %v3548
      %v3550 = vpop.f32.mrb[0].mxu0
      %3551 = vmatprep.mubr.bf16.mxu0 0
      %3552 = vmatmul.mubr.bf16.gmra.mrb[0].mxu0 %v2147
      %v3553 = vpop.f32.mrb[0].mxu0
      %v3554 = vadd.f32 0.0, %v3553
      %v3555 = vpop.f32.mrb[0].mxu0
      %v3556 = vpop.f32.mrb[0].mxu0
      %v3557 = vadd.f32 0.0, %v3556
      %v3558 = vpop.f32.mrb[0].mxu0
      %3559 = vmatprep.mubr.bf16.mxu0 0
      %3560 = vmatmul.mubr.bf16.gmra.mrb[0].mxu0 %v2148
      %v3561 = vpop.f32.mrb[0].mxu0
      %v3562 = vadd.f32 0.0, %v3561
      %v3563 = vpop.f32.mrb[0].mxu0
      %v3564 = vpop.f32.mrb[0].mxu0
      %v3565 = vadd.f32 0.0, %v3564
      %v3566 = vpop.f32.mrb[0].mxu0
      %3567 = vmatprep.mubr.bf16.mxu0 0
      %3568 = vmatmul.mubr.bf16.gmra.mrb[0].mxu0 %v2149
      %v3569 = vpop.f32.mrb[0].mxu0
      %v3570 = vadd.f32 0.0, %v3569
      %v3571 = vpop.f32.mrb[0].mxu0
      %v3572 = vpop.f32.mrb[0].mxu0
      %v3573 = vadd.f32 0.0, %v3572
      %v3574 = vpop.f32.mrb[0].mxu0
      %3575 = vmatprep.mubr.bf16.mxu0 0
      %3576 = vmatmul.mubr.bf16.gmra.mrb[0].mxu0 %v2150
      %v3577 = vpop.f32.mrb[0].mxu0
      %v3578 = vadd.f32 0.0, %v3577
      %v3579 = vpop.f32.mrb[0].mxu0
      %v3580 = vpop.f32.mrb[0].mxu0
      %v3581 = vadd.f32 0.0, %v3580
      %v3582 = vpop.f32.mrb[0].mxu0
      %3583 = vmatprep.mubr.bf16.mxu0 0
      %3584 = vmatmul.mubr.bf16.gmra.mrb[0].mxu0 %v2151
      %v3585 = vpop.f32.mrb[0].mxu0
      %v3586 = vadd.f32 0.0, %v3585
      %v3587 = vpop.f32.mrb[0].mxu0
      %v3588 = vpop.f32.mrb[0].mxu0
      %v3589 = vadd.f32 0.0, %v3588
      %v3590 = vpop.f32.mrb[0].mxu0
      %3591 = vdwg.mxu0
      %v3592 = vrot.slane %v3417, 7
      %v3593 = vrot.slane %v3427, 7
      %v3594 = vrot.slane %v3437, 7
      %v3595 = vrot.slane %v3447, 7
      %v3596 = vrot.slane %v3457, 7
      %v3597 = vrot.slane %v3467, 7
      %v3598 = vrot.slane %v3477, 7
      %v3599 = vrot.slane %v3487, 7
      %v3600 = vrot.slane %v3421, 7
      %v3601 = vrot.slane %v3431, 7
      %v3602 = vrot.slane %v3441, 7
      %v3603 = vrot.slane %v3451, 7
      %v3604 = vrot.slane %v3461, 7
      %v3605 = vrot.slane %v3471, 7
      %v3606 = vrot.slane %v3481, 7
      %v3607 = vrot.slane %v3491, 7
      %v3608 = vsel %vm781, %v3592, %v3600
      %v3609 = vsel %vm781, %v3593, %v3601
      %v3610 = vsel %vm781, %v3594, %v3602
      %v3611 = vsel %vm781, %v3595, %v3603
      %v3612 = vsel %vm781, %v3596, %v3604
      %v3613 = vsel %vm781, %v3597, %v3605
      %v3614 = vsel %vm781, %v3598, %v3606
      %v3615 = vsel %vm781, %v3599, %v3607
      %v3616 = vsel %vm781, %v3600, %v3592
      %v3617 = vsel %vm781, %v3601, %v3593
      %v3618 = vsel %vm781, %v3602, %v3594
      %v3619 = vsel %vm781, %v3603, %v3595
      %v3620 = vsel %vm781, %v3604, %v3596
      %v3621 = vsel %vm781, %v3605, %v3597
      %v3622 = vsel %vm781, %v3606, %v3598
      %v3623 = vsel %vm781, %v3607, %v3599
      %v3624 = vsel %vm800, %v3616, 0.0
      %v3625 = vsel %vm801, %v3608, 0.0
      %v3626 = vsel %vm800, %v3617, 0.0
      %v3627 = vsel %vm801, %v3609, 0.0
      %v3628 = vsel %vm800, %v3618, 0.0
      %v3629 = vsel %vm801, %v3610, 0.0
      %v3630 = vsel %vm800, %v3619, 0.0
      %v3631 = vsel %vm801, %v3611, 0.0
      %v3632 = vsel %vm800, %v3620, 0.0
      %v3633 = vsel %vm801, %v3612, 0.0
      %v3634 = vsel %vm800, %v3621, 0.0
      %v3635 = vsel %vm801, %v3613, 0.0
      %v3636 = vsel %vm800, %v3622, 0.0
      %v3637 = vsel %vm801, %v3614, 0.0
      %v3638 = vsel %vm800, %v3623, 0.0
      %v3639 = vsel %vm801, %v3615, 0.0
      %v3640 = vadd.f32 %v3419, %v3624
      %v3641 = vadd.f32 %v3423, %v3625
      %v3642 = vadd.f32 %v3429, %v3626
      %v3643 = vadd.f32 %v3433, %v3627
      %v3644 = vadd.f32 %v3439, %v3628
      %v3645 = vadd.f32 %v3443, %v3629
      %v3646 = vadd.f32 %v3449, %v3630
      %v3647 = vadd.f32 %v3453, %v3631
      %v3648 = vadd.f32 %v3459, %v3632
      %v3649 = vadd.f32 %v3463, %v3633
      %v3650 = vadd.f32 %v3469, %v3634
      %v3651 = vadd.f32 %v3473, %v3635
      %v3652 = vadd.f32 %v3479, %v3636
      %v3653 = vadd.f32 %v3483, %v3637
      %v3654 = vadd.f32 %v3489, %v3638
      %v3655 = vadd.f32 %v3493, %v3639
      %v3656 = vrot.slane %v3530, 1
      %v3657 = vrot.slane %v3538, 1
      %v3658 = vrot.slane %v3546, 1
      %v3659 = vrot.slane %v3554, 1
      %v3660 = vrot.slane %v3562, 1
      %v3661 = vrot.slane %v3570, 1
      %v3662 = vrot.slane %v3578, 1
      %v3663 = vrot.slane %v3586, 1
      %v3664 = vrot.slane %v3533, 1
      %v3665 = vrot.slane %v3541, 1
      %v3666 = vrot.slane %v3549, 1
      %v3667 = vrot.slane %v3557, 1
      %v3668 = vrot.slane %v3565, 1
      %v3669 = vrot.slane %v3573, 1
      %v3670 = vrot.slane %v3581, 1
      %v3671 = vrot.slane %v3589, 1
      %v3672 = vsel %vm850, %v3656, %v3664
      %v3673 = vsel %vm850, %v3657, %v3665
      %v3674 = vsel %vm850, %v3658, %v3666
      %v3675 = vsel %vm850, %v3659, %v3667
      %v3676 = vsel %vm850, %v3660, %v3668
      %v3677 = vsel %vm850, %v3661, %v3669
      %v3678 = vsel %vm850, %v3662, %v3670
      %v3679 = vsel %vm850, %v3663, %v3671
      %v3680 = vsel %vm850, %v3664, %v3656
      %v3681 = vsel %vm850, %v3665, %v3657
      %v3682 = vsel %vm850, %v3666, %v3658
      %v3683 = vsel %vm850, %v3667, %v3659
      %v3684 = vsel %vm850, %v3668, %v3660
      %v3685 = vsel %vm850, %v3669, %v3661
      %v3686 = vsel %vm850, %v3670, %v3662
      %v3687 = vsel %vm850, %v3671, %v3663
      %v3688 = vsel %vm869, %v3672, 0.0
      %v3689 = vsel %vm870, %v3680, 0.0
      %v3690 = vsel %vm869, %v3673, 0.0
      %v3691 = vsel %vm870, %v3681, 0.0
      %v3692 = vsel %vm869, %v3674, 0.0
      %v3693 = vsel %vm870, %v3682, 0.0
      %v3694 = vsel %vm869, %v3675, 0.0
      %v3695 = vsel %vm870, %v3683, 0.0
      %v3696 = vsel %vm869, %v3676, 0.0
      %v3697 = vsel %vm870, %v3684, 0.0
      %v3698 = vsel %vm869, %v3677, 0.0
      %v3699 = vsel %vm870, %v3685, 0.0
      %v3700 = vsel %vm869, %v3678, 0.0
      %v3701 = vsel %vm870, %v3686, 0.0
      %v3702 = vsel %vm869, %v3679, 0.0
      %v3703 = vsel %vm870, %v3687, 0.0
      %v3704 = vadd.f32 %v3640, %v3688
      %v3705 = vadd.f32 %v3641, %v3689
      %v3706 = vadd.f32 %v3642, %v3690
      %v3707 = vadd.f32 %v3643, %v3691
      %v3708 = vadd.f32 %v3644, %v3692
      %v3709 = vadd.f32 %v3645, %v3693
      %v3710 = vadd.f32 %v3646, %v3694
      %v3711 = vadd.f32 %v3647, %v3695
      %v3712 = vadd.f32 %v3648, %v3696
      %v3713 = vadd.f32 %v3649, %v3697
      %v3714 = vadd.f32 %v3650, %v3698
      %v3715 = vadd.f32 %v3651, %v3699
      %v3716 = vadd.f32 %v3652, %v3700
      %v3717 = vadd.f32 %v3653, %v3701
      %v3718 = vadd.f32 %v3654, %v3702
      %v3719 = vadd.f32 %v3655, %v3703
      %s3720 = scalar_lea.vmem [#allocation2], 128
      %v3721 = vld [vmem:[%s3720] sm:$0xff]
      %v3722 = vld [vmem:[%s3720 + $0x8] sm:$0xff]
      %v3723 = vld [vmem:[%s3720 + $0x10] sm:$0xff]
      %v3724 = vld [vmem:[%s3720 + $0x18] sm:$0xff]
      %v3725 = vld [vmem:[%s3720 + $0x20] sm:$0xff]
      %v3726 = vld [vmem:[%s3720 + $0x28] sm:$0xff]
      %v3727 = vld [vmem:[%s3720 + $0x30] sm:$0xff]
      %v3728 = vld [vmem:[%s3720 + $0x38] sm:$0xff]
      %v3729 = vld [vmem:[%s3720 + $0x40] sm:$0xff]
      %v3730 = vld [vmem:[%s3720 + $0x48] sm:$0xff]
      %v3731 = vld [vmem:[%s3720 + $0x50] sm:$0xff]
      %v3732 = vld [vmem:[%s3720 + $0x58] sm:$0xff]
      %v3733 = vld [vmem:[%s3720 + $0x60] sm:$0xff]
      %v3734 = vld [vmem:[%s3720 + $0x68] sm:$0xff]
      %v3735 = vld [vmem:[%s3720 + $0x70] sm:$0xff]
      %v3736 = vld [vmem:[%s3720 + $0x78] sm:$0xff]
      %v3737 = vadd.f32 %v3721, %v3704
      %v3738 = vadd.f32 %v3722, %v3705
      %v3739 = vadd.f32 %v3723, %v3706
      %v3740 = vadd.f32 %v3724, %v3707
      %v3741 = vadd.f32 %v3725, %v3708
      %v3742 = vadd.f32 %v3726, %v3709
      %v3743 = vadd.f32 %v3727, %v3710
      %v3744 = vadd.f32 %v3728, %v3711
      %v3745 = vadd.f32 %v3729, %v3712
      %v3746 = vadd.f32 %v3730, %v3713
      %v3747 = vadd.f32 %v3731, %v3714
      %v3748 = vadd.f32 %v3732, %v3715
      %v3749 = vadd.f32 %v3733, %v3716
      %v3750 = vadd.f32 %v3734, %v3717
      %v3751 = vadd.f32 %v3735, %v3718
      %v3752 = vadd.f32 %v3736, %v3719
      %3753 = vst [vmem:[%s3720] sm:$0xff] %v3737
      %3754 = vst [vmem:[%s3720 + $0x8] sm:$0xff] %v3738
      %3755 = vst [vmem:[%s3720 + $0x10] sm:$0xff] %v3739
      %3756 = vst [vmem:[%s3720 + $0x18] sm:$0xff] %v3740
      %3757 = vst [vmem:[%s3720 + $0x20] sm:$0xff] %v3741
      %3758 = vst [vmem:[%s3720 + $0x28] sm:$0xff] %v3742
      %3759 = vst [vmem:[%s3720 + $0x30] sm:$0xff] %v3743
      %3760 = vst [vmem:[%s3720 + $0x38] sm:$0xff] %v3744
      %3761 = vst [vmem:[%s3720 + $0x40] sm:$0xff] %v3745
      %3762 = vst [vmem:[%s3720 + $0x48] sm:$0xff] %v3746
      %3763 = vst [vmem:[%s3720 + $0x50] sm:$0xff] %v3747
      %3764 = vst [vmem:[%s3720 + $0x58] sm:$0xff] %v3748
      %3765 = vst [vmem:[%s3720 + $0x60] sm:$0xff] %v3749
      %3766 = vst [vmem:[%s3720 + $0x68] sm:$0xff] %v3750
      %3767 = vst [vmem:[%s3720 + $0x70] sm:$0xff] %v3751
      %3768 = vst [vmem:[%s3720 + $0x78] sm:$0xff] %v3752
      %v3769 = vld [vmem:[%s1451] sm:$0xff]
      %v3770 = vld [vmem:[%s1451 + $0x8] sm:$0xff]
      %v3771 = vld [vmem:[%s1451 + $0x10] sm:$0xff]
      %v3772 = vld [vmem:[%s1451 + $0x18] sm:$0xff]
      %v3773 = vld [vmem:[%s1451 + $0x20] sm:$0xff]
      %v3774 = vld [vmem:[%s1451 + $0x28] sm:$0xff]
      %v3775 = vld [vmem:[%s1451 + $0x30] sm:$0xff]
      %v3776 = vld [vmem:[%s1451 + $0x38] sm:$0xff]
      %v3777 = vld [vmem:[%s1451 + $0x40] sm:$0xff]
      %v3778 = vld [vmem:[%s1451 + $0x48] sm:$0xff]
      %v3779 = vld [vmem:[%s1451 + $0x50] sm:$0xff]
      %v3780 = vld [vmem:[%s1451 + $0x58] sm:$0xff]
      %v3781 = vld [vmem:[%s1451 + $0x60] sm:$0xff]
      %v3782 = vld [vmem:[%s1451 + $0x68] sm:$0xff]
      %v3783 = vld [vmem:[%s1451 + $0x70] sm:$0xff]
      %v3784 = vld [vmem:[%s1451 + $0x78] sm:$0xff]
      %v3785 = vxor.u32 %v3769, 2147483648
      %v3786 = vxor.u32 %v3770, 2147483648
      %v3787 = vxor.u32 %v3771, 2147483648
      %v3788 = vxor.u32 %v3772, 2147483648
      %v3789 = vxor.u32 %v3773, 2147483648
      %v3790 = vxor.u32 %v3774, 2147483648
      %v3791 = vxor.u32 %v3775, 2147483648
      %v3792 = vxor.u32 %v3776, 2147483648
      %v3793 = vxor.u32 %v3777, 2147483648
      %v3794 = vxor.u32 %v3778, 2147483648
      %v3795 = vxor.u32 %v3779, 2147483648
      %v3796 = vxor.u32 %v3780, 2147483648
      %v3797 = vxor.u32 %v3781, 2147483648
      %v3798 = vxor.u32 %v3782, 2147483648
      %v3799 = vxor.u32 %v3783, 2147483648
      %v3800 = vxor.u32 %v3784, 2147483648
      %v3801 = vmul.f32 %v3785, 1.442695
      %v3802 = vpow.pop %v3801
      %v3803 = vmul.f32 %v3786, 1.442695
      %v3804 = vpow.pop %v3803
      %v3805 = vmul.f32 %v3787, 1.442695
      %v3806 = vpow.pop %v3805
      %v3807 = vmul.f32 %v3788, 1.442695
      %v3808 = vpow.pop %v3807
      %v3809 = vmul.f32 %v3789, 1.442695
      %v3810 = vpow.pop %v3809
      %v3811 = vmul.f32 %v3790, 1.442695
      %v3812 = vpow.pop %v3811
      %v3813 = vmul.f32 %v3791, 1.442695
      %v3814 = vpow.pop %v3813
      %v3815 = vmul.f32 %v3792, 1.442695
      %v3816 = vpow.pop %v3815
      %v3817 = vmul.f32 %v3793, 1.442695
      %v3818 = vpow.pop %v3817
      %v3819 = vmul.f32 %v3794, 1.442695
      %v3820 = vpow.pop %v3819
      %v3821 = vmul.f32 %v3795, 1.442695
      %v3822 = vpow.pop %v3821
      %v3823 = vmul.f32 %v3796, 1.442695
      %v3824 = vpow.pop %v3823
      %v3825 = vmul.f32 %v3797, 1.442695
      %v3826 = vpow.pop %v3825
      %v3827 = vmul.f32 %v3798, 1.442695
      %v3828 = vpow.pop %v3827
      %v3829 = vmul.f32 %v3799, 1.442695
      %v3830 = vpow.pop %v3829
      %v3831 = vmul.f32 %v3800, 1.442695
      %v3832 = vpow.pop %v3831
      %v3833 = vadd.f32 %v3802, 1.0
      %v3834 = vadd.f32 %v3804, 1.0
      %v3835 = vadd.f32 %v3806, 1.0
      %v3836 = vadd.f32 %v3808, 1.0
      %v3837 = vadd.f32 %v3810, 1.0
      %v3838 = vadd.f32 %v3812, 1.0
      %v3839 = vadd.f32 %v3814, 1.0
      %v3840 = vadd.f32 %v3816, 1.0
      %v3841 = vadd.f32 %v3818, 1.0
      %v3842 = vadd.f32 %v3820, 1.0
      %v3843 = vadd.f32 %v3822, 1.0
      %v3844 = vadd.f32 %v3824, 1.0
      %v3845 = vadd.f32 %v3826, 1.0
      %v3846 = vadd.f32 %v3828, 1.0
      %v3847 = vadd.f32 %v3830, 1.0
      %v3848 = vadd.f32 %v3832, 1.0
      %v3849 = vrcp.pop %v3833
      %v3850 = vmul.f32 1.0, %v3849
      %v3851 = vrcp.pop %v3834
      %v3852 = vmul.f32 1.0, %v3851
      %v3853 = vrcp.pop %v3835
      %v3854 = vmul.f32 1.0, %v3853
      %v3855 = vrcp.pop %v3836
      %v3856 = vmul.f32 1.0, %v3855
      %v3857 = vrcp.pop %v3837
      %v3858 = vmul.f32 1.0, %v3857
      %v3859 = vrcp.pop %v3838
      %v3860 = vmul.f32 1.0, %v3859
      %v3861 = vrcp.pop %v3839
      %v3862 = vmul.f32 1.0, %v3861
      %v3863 = vrcp.pop %v3840
      %v3864 = vmul.f32 1.0, %v3863
      %v3865 = vrcp.pop %v3841
      %v3866 = vmul.f32 1.0, %v3865
      %v3867 = vrcp.pop %v3842
      %v3868 = vmul.f32 1.0, %v3867
      %v3869 = vrcp.pop %v3843
      %v3870 = vmul.f32 1.0, %v3869
      %v3871 = vrcp.pop %v3844
      %v3872 = vmul.f32 1.0, %v3871
      %v3873 = vrcp.pop %v3845
      %v3874 = vmul.f32 1.0, %v3873
      %v3875 = vrcp.pop %v3846
      %v3876 = vmul.f32 1.0, %v3875
      %v3877 = vrcp.pop %v3847
      %v3878 = vmul.f32 1.0, %v3877
      %v3879 = vrcp.pop %v3848
      %v3880 = vmul.f32 1.0, %v3879
      %v3881 = vtanh.pop %v3769
      %v3882 = vtanh.pop %v3770
      %v3883 = vtanh.pop %v3771
      %v3884 = vtanh.pop %v3772
      %v3885 = vtanh.pop %v3773
      %v3886 = vtanh.pop %v3774
      %v3887 = vtanh.pop %v3775
      %v3888 = vtanh.pop %v3776
      %v3889 = vtanh.pop %v3777
      %v3890 = vtanh.pop %v3778
      %v3891 = vtanh.pop %v3779
      %v3892 = vtanh.pop %v3780
      %v3893 = vtanh.pop %v3781
      %v3894 = vtanh.pop %v3782
      %v3895 = vtanh.pop %v3783
      %v3896 = vtanh.pop %v3784
      %v3897 = vld [vmem:[%s247] sm:$0xff]
      %v3898 = vld [vmem:[%s247 + $0x8] sm:$0xff]
      %v3899 = vld [vmem:[%s247 + $0x10] sm:$0xff]
      %v3900 = vld [vmem:[%s247 + $0x18] sm:$0xff]
      %v3901 = vld [vmem:[%s247 + $0x20] sm:$0xff]
      %v3902 = vld [vmem:[%s247 + $0x28] sm:$0xff]
      %v3903 = vld [vmem:[%s247 + $0x30] sm:$0xff]
      %v3904 = vld [vmem:[%s247 + $0x38] sm:$0xff]
      %v3905 = vld [vmem:[%s247 + $0x40] sm:$0xff]
      %v3906 = vld [vmem:[%s247 + $0x48] sm:$0xff]
      %v3907 = vld [vmem:[%s247 + $0x50] sm:$0xff]
      %v3908 = vld [vmem:[%s247 + $0x58] sm:$0xff]
      %v3909 = vld [vmem:[%s247 + $0x60] sm:$0xff]
      %v3910 = vld [vmem:[%s247 + $0x68] sm:$0xff]
      %v3911 = vld [vmem:[%s247 + $0x70] sm:$0xff]
      %v3912 = vld [vmem:[%s247 + $0x78] sm:$0xff]
      %3929 = vrot.lane.b32.xlu0 %v3897, 32
      %v3930 = vpop.permute.xlu0 %3929
      %3931 = vrot.lane.b32.xlu0 %v3898, 32
      %v3932 = vpop.permute.xlu0 %3931
      %3933 = vrot.lane.b32.xlu0 %v3899, 32
      %v3934 = vpop.permute.xlu0 %3933
      %3935 = vrot.lane.b32.xlu0 %v3900, 32
      %v3936 = vpop.permute.xlu0 %3935
      %3937 = vrot.lane.b32.xlu0 %v3901, 32
      %v3938 = vpop.permute.xlu0 %3937
      %3939 = vrot.lane.b32.xlu0 %v3902, 32
      %v3940 = vpop.permute.xlu0 %3939
      %3941 = vrot.lane.b32.xlu0 %v3903, 32
      %v3942 = vpop.permute.xlu0 %3941
      %3943 = vrot.lane.b32.xlu0 %v3904, 32
      %v3944 = vpop.permute.xlu0 %3943
      %3945 = vrot.lane.b32.xlu0 %v3905, 32
      %v3946 = vpop.permute.xlu0 %3945
      %3947 = vrot.lane.b32.xlu0 %v3906, 32
      %v3948 = vpop.permute.xlu0 %3947
      %3949 = vrot.lane.b32.xlu0 %v3907, 32
      %v3950 = vpop.permute.xlu0 %3949
      %3951 = vrot.lane.b32.xlu0 %v3908, 32
      %v3952 = vpop.permute.xlu0 %3951
      %3953 = vrot.lane.b32.xlu0 %v3909, 32
      %v3954 = vpop.permute.xlu0 %3953
      %3955 = vrot.lane.b32.xlu0 %v3910, 32
      %v3956 = vpop.permute.xlu0 %3955
      %3957 = vrot.lane.b32.xlu0 %v3911, 32
      %v3958 = vpop.permute.xlu0 %3957
      %3959 = vrot.lane.b32.xlu0 %v3912, 32
      %v3960 = vpop.permute.xlu0 %3959
      %v3977 = vmul.f32 %v3850, %v3930
      %v3978 = vmul.f32 %v3852, %v3932
      %v3979 = vmul.f32 %v3854, %v3934
      %v3980 = vmul.f32 %v3856, %v3936
      %v3981 = vmul.f32 %v3858, %v3938
      %v3982 = vmul.f32 %v3860, %v3940
      %v3983 = vmul.f32 %v3862, %v3942
      %v3984 = vmul.f32 %v3864, %v3944
      %v3985 = vmul.f32 %v3866, %v3946
      %v3986 = vmul.f32 %v3868, %v3948
      %v3987 = vmul.f32 %v3870, %v3950
      %v3988 = vmul.f32 %v3872, %v3952
      %v3989 = vmul.f32 %v3874, %v3954
      %v3990 = vmul.f32 %v3876, %v3956
      %v3991 = vmul.f32 %v3878, %v3958
      %v3992 = vmul.f32 %v3880, %v3960
      %4009 = vrot.lane.b32.xlu0 %v3881, 32
      %v4010 = vpop.permute.xlu0 %4009
      %4011 = vrot.lane.b32.xlu0 %v3882, 32
      %v4012 = vpop.permute.xlu0 %4011
      %4013 = vrot.lane.b32.xlu0 %v3883, 32
      %v4014 = vpop.permute.xlu0 %4013
      %4015 = vrot.lane.b32.xlu0 %v3884, 32
      %v4016 = vpop.permute.xlu0 %4015
      %4017 = vrot.lane.b32.xlu0 %v3885, 32
      %v4018 = vpop.permute.xlu0 %4017
      %4019 = vrot.lane.b32.xlu0 %v3886, 32
      %v4020 = vpop.permute.xlu0 %4019
      %4021 = vrot.lane.b32.xlu0 %v3887, 32
      %v4022 = vpop.permute.xlu0 %4021
      %4023 = vrot.lane.b32.xlu0 %v3888, 32
      %v4024 = vpop.permute.xlu0 %4023
      %4025 = vrot.lane.b32.xlu0 %v3889, 32
      %v4026 = vpop.permute.xlu0 %4025
      %4027 = vrot.lane.b32.xlu0 %v3890, 32
      %v4028 = vpop.permute.xlu0 %4027
      %4029 = vrot.lane.b32.xlu0 %v3891, 32
      %v4030 = vpop.permute.xlu0 %4029
      %4031 = vrot.lane.b32.xlu0 %v3892, 32
      %v4032 = vpop.permute.xlu0 %4031
      %4033 = vrot.lane.b32.xlu0 %v3893, 32
      %v4034 = vpop.permute.xlu0 %4033
      %4035 = vrot.lane.b32.xlu0 %v3894, 32
      %v4036 = vpop.permute.xlu0 %4035
      %4037 = vrot.lane.b32.xlu0 %v3895, 32
      %v4038 = vpop.permute.xlu0 %4037
      %4039 = vrot.lane.b32.xlu0 %v3896, 32
      %v4040 = vpop.permute.xlu0 %4039
      %v4057 = vmul.f32 %v3850, %v4010
      %v4058 = vmul.f32 %v3852, %v4012
      %v4059 = vmul.f32 %v3854, %v4014
      %v4060 = vmul.f32 %v3856, %v4016
      %v4061 = vmul.f32 %v3858, %v4018
      %v4062 = vmul.f32 %v3860, %v4020
      %v4063 = vmul.f32 %v3862, %v4022
      %v4064 = vmul.f32 %v3864, %v4024
      %v4065 = vmul.f32 %v3866, %v4026
      %v4066 = vmul.f32 %v3868, %v4028
      %v4067 = vmul.f32 %v3870, %v4030
      %v4068 = vmul.f32 %v3872, %v4032
      %v4069 = vmul.f32 %v3874, %v4034
      %v4070 = vmul.f32 %v3876, %v4036
      %v4071 = vmul.f32 %v3878, %v4038
      %v4072 = vmul.f32 %v3880, %v4040
      %4089 = vrot.lane.b32.xlu0 %v4057, 32
      %v4090 = vpop.permute.xlu0 %4089
      %4091 = vrot.lane.b32.xlu0 %v4058, 32
      %v4092 = vpop.permute.xlu0 %4091
      %4093 = vrot.lane.b32.xlu0 %v4059, 32
      %v4094 = vpop.permute.xlu0 %4093
      %4095 = vrot.lane.b32.xlu0 %v4060, 32
      %v4096 = vpop.permute.xlu0 %4095
      %4097 = vrot.lane.b32.xlu0 %v4061, 32
      %v4098 = vpop.permute.xlu0 %4097
      %4099 = vrot.lane.b32.xlu0 %v4062, 32
      %v4100 = vpop.permute.xlu0 %4099
      %4101 = vrot.lane.b32.xlu0 %v4063, 32
      %v4102 = vpop.permute.xlu0 %4101
      %4103 = vrot.lane.b32.xlu0 %v4064, 32
      %v4104 = vpop.permute.xlu0 %4103
      %4105 = vrot.lane.b32.xlu0 %v4065, 32
      %v4106 = vpop.permute.xlu0 %4105
      %4107 = vrot.lane.b32.xlu0 %v4066, 32
      %v4108 = vpop.permute.xlu0 %4107
      %4109 = vrot.lane.b32.xlu0 %v4067, 32
      %v4110 = vpop.permute.xlu0 %4109
      %4111 = vrot.lane.b32.xlu0 %v4068, 32
      %v4112 = vpop.permute.xlu0 %4111
      %4113 = vrot.lane.b32.xlu0 %v4069, 32
      %v4114 = vpop.permute.xlu0 %4113
      %4115 = vrot.lane.b32.xlu0 %v4070, 32
      %v4116 = vpop.permute.xlu0 %4115
      %4117 = vrot.lane.b32.xlu0 %v4071, 32
      %v4118 = vpop.permute.xlu0 %4117
      %4119 = vrot.lane.b32.xlu0 %v4072, 32
      %v4120 = vpop.permute.xlu0 %4119
      %v4137 = vadd.f32 %v3977, %v4090
      %v4138 = vadd.f32 %v3978, %v4092
      %v4139 = vadd.f32 %v3979, %v4094
      %v4140 = vadd.f32 %v3980, %v4096
      %v4141 = vadd.f32 %v3981, %v4098
      %v4142 = vadd.f32 %v3982, %v4100
      %v4143 = vadd.f32 %v3983, %v4102
      %v4144 = vadd.f32 %v3984, %v4104
      %v4145 = vadd.f32 %v3985, %v4106
      %v4146 = vadd.f32 %v3986, %v4108
      %v4147 = vadd.f32 %v3987, %v4110
      %v4148 = vadd.f32 %v3988, %v4112
      %v4149 = vadd.f32 %v3989, %v4114
      %v4150 = vadd.f32 %v3990, %v4116
      %v4151 = vadd.f32 %v3991, %v4118
      %v4152 = vadd.f32 %v3992, %v4120
      %v4153 = vtanh.pop %v4137
      %v4154 = vtanh.pop %v4138
      %v4155 = vtanh.pop %v4139
      %v4156 = vtanh.pop %v4140
      %v4157 = vtanh.pop %v4141
      %v4158 = vtanh.pop %v4142
      %v4159 = vtanh.pop %v4143
      %v4160 = vtanh.pop %v4144
      %v4161 = vtanh.pop %v4145
      %v4162 = vtanh.pop %v4146
      %v4163 = vtanh.pop %v4147
      %v4164 = vtanh.pop %v4148
      %v4165 = vtanh.pop %v4149
      %v4166 = vtanh.pop %v4150
      %v4167 = vtanh.pop %v4151
      %v4168 = vtanh.pop %v4152
      %4185 = vrot.lane.b32.xlu0 %v4153, 32
      %v4186 = vpop.permute.xlu0 %4185
      %4187 = vrot.lane.b32.xlu0 %v4154, 32
      %v4188 = vpop.permute.xlu0 %4187
      %4189 = vrot.lane.b32.xlu0 %v4155, 32
      %v4190 = vpop.permute.xlu0 %4189
      %4191 = vrot.lane.b32.xlu0 %v4156, 32
      %v4192 = vpop.permute.xlu0 %4191
      %4193 = vrot.lane.b32.xlu0 %v4157, 32
      %v4194 = vpop.permute.xlu0 %4193
      %4195 = vrot.lane.b32.xlu0 %v4158, 32
      %v4196 = vpop.permute.xlu0 %4195
      %4197 = vrot.lane.b32.xlu0 %v4159, 32
      %v4198 = vpop.permute.xlu0 %4197
      %4199 = vrot.lane.b32.xlu0 %v4160, 32
      %v4200 = vpop.permute.xlu0 %4199
      %4201 = vrot.lane.b32.xlu0 %v4161, 32
      %v4202 = vpop.permute.xlu0 %4201
      %4203 = vrot.lane.b32.xlu0 %v4162, 32
      %v4204 = vpop.permute.xlu0 %4203
      %4205 = vrot.lane.b32.xlu0 %v4163, 32
      %v4206 = vpop.permute.xlu0 %4205
      %4207 = vrot.lane.b32.xlu0 %v4164, 32
      %v4208 = vpop.permute.xlu0 %4207
      %4209 = vrot.lane.b32.xlu0 %v4165, 32
      %v4210 = vpop.permute.xlu0 %4209
      %4211 = vrot.lane.b32.xlu0 %v4166, 32
      %v4212 = vpop.permute.xlu0 %4211
      %4213 = vrot.lane.b32.xlu0 %v4167, 32
      %v4214 = vpop.permute.xlu0 %4213
      %4215 = vrot.lane.b32.xlu0 %v4168, 32
      %v4216 = vpop.permute.xlu0 %4215
      %v4233 = vmul.f32 %v3850, %v4186
      %v4234 = vmul.f32 %v3852, %v4188
      %v4235 = vmul.f32 %v3854, %v4190
      %v4236 = vmul.f32 %v3856, %v4192
      %v4237 = vmul.f32 %v3858, %v4194
      %v4238 = vmul.f32 %v3860, %v4196
      %v4239 = vmul.f32 %v3862, %v4198
      %v4240 = vmul.f32 %v3864, %v4200
      %v4241 = vmul.f32 %v3866, %v4202
      %v4242 = vmul.f32 %v3868, %v4204
      %v4243 = vmul.f32 %v3870, %v4206
      %v4244 = vmul.f32 %v3872, %v4208
      %v4245 = vmul.f32 %v3874, %v4210
      %v4246 = vmul.f32 %v3876, %v4212
      %v4247 = vmul.f32 %v3878, %v4214
      %v4248 = vmul.f32 %v3880, %v4216
      %4265 = vrot.lane.b32.xlu0 %v4233, 64
      %v4266 = vpop.permute.xlu0 %4265
      %4267 = vrot.lane.b32.xlu0 %v4234, 64
      %v4268 = vpop.permute.xlu0 %4267
      %4269 = vrot.lane.b32.xlu0 %v4235, 64
      %v4270 = vpop.permute.xlu0 %4269
      %4271 = vrot.lane.b32.xlu0 %v4236, 64
      %v4272 = vpop.permute.xlu0 %4271
      %4273 = vrot.lane.b32.xlu0 %v4237, 64
      %v4274 = vpop.permute.xlu0 %4273
      %4275 = vrot.lane.b32.xlu0 %v4238, 64
      %v4276 = vpop.permute.xlu0 %4275
      %4277 = vrot.lane.b32.xlu0 %v4239, 64
      %v4278 = vpop.permute.xlu0 %4277
      %4279 = vrot.lane.b32.xlu0 %v4240, 64
      %v4280 = vpop.permute.xlu0 %4279
      %4281 = vrot.lane.b32.xlu0 %v4241, 64
      %v4282 = vpop.permute.xlu0 %4281
      %4283 = vrot.lane.b32.xlu0 %v4242, 64
      %v4284 = vpop.permute.xlu0 %4283
      %4285 = vrot.lane.b32.xlu0 %v4243, 64
      %v4286 = vpop.permute.xlu0 %4285
      %4287 = vrot.lane.b32.xlu0 %v4244, 64
      %v4288 = vpop.permute.xlu0 %4287
      %4289 = vrot.lane.b32.xlu0 %v4245, 64
      %v4290 = vpop.permute.xlu0 %4289
      %4291 = vrot.lane.b32.xlu0 %v4246, 64
      %v4292 = vpop.permute.xlu0 %4291
      %4293 = vrot.lane.b32.xlu0 %v4247, 64
      %v4294 = vpop.permute.xlu0 %4293
      %4295 = vrot.lane.b32.xlu0 %v4248, 64
      %v4296 = vpop.permute.xlu0 %4295
      %v4313 = vcombine.low %v4266, %v4274
      %v4314 = vcombine.high %v4266, %v4274
      %v4316 = vunpack.c.l.s4 1983009808
      %v4317 = vunpack.c.0.s8 %v4316
      %v4318 = vlaneseq
      %v4319 = vshrl.u32 %v4318, 7
      %v4320 = vsub.s32 %v4317, %v4319
      %v4321 = vrot.slane %v4313, %v4320
      %v4323 = vunpack.c.l.s4 1983009808
      %v4324 = vunpack.c.0.s8 %v4323
      %v4325 = vlaneseq
      %v4326 = vshrl.u32 %v4325, 7
      %v4327 = vsub.s32 %v4324, %v4326
      %v4328 = vrot.slane %v4314, %v4327
      %v4329 = vcombine.low %v4270, %v4278
      %v4330 = vcombine.high %v4270, %v4278
      %v4332 = vunpack.c.l.s4 1983009808
      %v4333 = vunpack.c.0.s8 %v4332
      %v4334 = vlaneseq
      %v4335 = vshrl.u32 %v4334, 7
      %v4336 = vsub.s32 %v4333, %v4335
      %v4337 = vrot.slane %v4329, %v4336
      %v4339 = vunpack.c.l.s4 1983009808
      %v4340 = vunpack.c.0.s8 %v4339
      %v4341 = vlaneseq
      %v4342 = vshrl.u32 %v4341, 7
      %v4343 = vsub.s32 %v4340, %v4342
      %v4344 = vrot.slane %v4330, %v4343
      %v4345 = vcombine.low %v4282, %v4290
      %v4346 = vcombine.high %v4282, %v4290
      %v4348 = vunpack.c.l.s4 1983009808
      %v4349 = vunpack.c.0.s8 %v4348
      %v4350 = vlaneseq
      %v4351 = vshrl.u32 %v4350, 7
      %v4352 = vsub.s32 %v4349, %v4351
      %v4353 = vrot.slane %v4345, %v4352
      %v4355 = vunpack.c.l.s4 1983009808
      %v4356 = vunpack.c.0.s8 %v4355
      %v4357 = vlaneseq
      %v4358 = vshrl.u32 %v4357, 7
      %v4359 = vsub.s32 %v4356, %v4358
      %v4360 = vrot.slane %v4346, %v4359
      %v4361 = vcombine.low %v4286, %v4294
      %v4362 = vcombine.high %v4286, %v4294
      %v4364 = vunpack.c.l.s4 1983009808
      %v4365 = vunpack.c.0.s8 %v4364
      %v4366 = vlaneseq
      %v4367 = vshrl.u32 %v4366, 7
      %v4368 = vsub.s32 %v4365, %v4367
      %v4369 = vrot.slane %v4361, %v4368
      %v4371 = vunpack.c.l.s4 1983009808
      %v4372 = vunpack.c.0.s8 %v4371
      %v4373 = vlaneseq
      %v4374 = vshrl.u32 %v4373, 7
      %v4375 = vsub.s32 %v4372, %v4374
      %v4376 = vrot.slane %v4362, %v4375
      %v4377 = vcombine.low %v4321, %v4337
      %v4378 = vcombine.high %v4321, %v4337
      %v4380 = vunpack.c.l.s4 1934713408
      %v4381 = vunpack.c.0.s8 %v4380
      %v4382 = vlaneseq
      %v4383 = vshrl.u32 %v4382, 7
      %v4384 = vsub.s32 %v4381, %v4383
      %v4385 = vrot.slane %v4377, %v4384
      %v4387 = vunpack.c.l.s4 1934713408
      %v4388 = vunpack.c.0.s8 %v4387
      %v4389 = vlaneseq
      %v4390 = vshrl.u32 %v4389, 7
      %v4391 = vsub.s32 %v4388, %v4390
      %v4392 = vrot.slane %v4378, %v4391
      %v4393 = vcombine.low %v4328, %v4344
      %v4394 = vcombine.high %v4328, %v4344
      %v4396 = vunpack.c.l.s4 1934713408
      %v4397 = vunpack.c.0.s8 %v4396
      %v4398 = vlaneseq
      %v4399 = vshrl.u32 %v4398, 7
      %v4400 = vsub.s32 %v4397, %v4399
      %v4401 = vrot.slane %v4393, %v4400
      %v4403 = vunpack.c.l.s4 1934713408
      %v4404 = vunpack.c.0.s8 %v4403
      %v4405 = vlaneseq
      %v4406 = vshrl.u32 %v4405, 7
      %v4407 = vsub.s32 %v4404, %v4406
      %v4408 = vrot.slane %v4394, %v4407
      %v4409 = vcombine.low %v4353, %v4369
      %v4410 = vcombine.high %v4353, %v4369
      %v4412 = vunpack.c.l.s4 1934713408
      %v4413 = vunpack.c.0.s8 %v4412
      %v4414 = vlaneseq
      %v4415 = vshrl.u32 %v4414, 7
      %v4416 = vsub.s32 %v4413, %v4415
      %v4417 = vrot.slane %v4409, %v4416
      %v4419 = vunpack.c.l.s4 1934713408
      %v4420 = vunpack.c.0.s8 %v4419
      %v4421 = vlaneseq
      %v4422 = vshrl.u32 %v4421, 7
      %v4423 = vsub.s32 %v4420, %v4422
      %v4424 = vrot.slane %v4410, %v4423
      %v4425 = vcombine.low %v4360, %v4376
      %v4426 = vcombine.high %v4360, %v4376
      %v4428 = vunpack.c.l.s4 1934713408
      %v4429 = vunpack.c.0.s8 %v4428
      %v4430 = vlaneseq
      %v4431 = vshrl.u32 %v4430, 7
      %v4432 = vsub.s32 %v4429, %v4431
      %v4433 = vrot.slane %v4425, %v4432
      %v4435 = vunpack.c.l.s4 1934713408
      %v4436 = vunpack.c.0.s8 %v4435
      %v4437 = vlaneseq
      %v4438 = vshrl.u32 %v4437, 7
      %v4439 = vsub.s32 %v4436, %v4438
      %v4440 = vrot.slane %v4426, %v4439
      %v4441 = vcombine.low %v4385, %v4417
      %v4442 = vcombine.high %v4385, %v4417
      %v4443 = vcombine.low %v4392, %v4424
      %v4444 = vcombine.high %v4392, %v4424
      %v4445 = vcombine.low %v4401, %v4433
      %v4446 = vcombine.high %v4401, %v4433
      %v4447 = vcombine.low %v4408, %v4440
      %v4448 = vcombine.high %v4408, %v4440
      %v4449 = vcombine.low %v4268, %v4276
      %v4450 = vcombine.high %v4268, %v4276
      %v4452 = vunpack.c.l.s4 1983009808
      %v4453 = vunpack.c.0.s8 %v4452
      %v4454 = vlaneseq
      %v4455 = vshrl.u32 %v4454, 7
      %v4456 = vsub.s32 %v4453, %v4455
      %v4457 = vrot.slane %v4449, %v4456
      %v4459 = vunpack.c.l.s4 1983009808
      %v4460 = vunpack.c.0.s8 %v4459
      %v4461 = vlaneseq
      %v4462 = vshrl.u32 %v4461, 7
      %v4463 = vsub.s32 %v4460, %v4462
      %v4464 = vrot.slane %v4450, %v4463
      %v4465 = vcombine.low %v4272, %v4280
      %v4466 = vcombine.high %v4272, %v4280
      %v4468 = vunpack.c.l.s4 1983009808
      %v4469 = vunpack.c.0.s8 %v4468
      %v4470 = vlaneseq
      %v4471 = vshrl.u32 %v4470, 7
      %v4472 = vsub.s32 %v4469, %v4471
      %v4473 = vrot.slane %v4465, %v4472
      %v4475 = vunpack.c.l.s4 1983009808
      %v4476 = vunpack.c.0.s8 %v4475
      %v4477 = vlaneseq
      %v4478 = vshrl.u32 %v4477, 7
      %v4479 = vsub.s32 %v4476, %v4478
      %v4480 = vrot.slane %v4466, %v4479
      %v4481 = vcombine.low %v4284, %v4292
      %v4482 = vcombine.high %v4284, %v4292
      %v4484 = vunpack.c.l.s4 1983009808
      %v4485 = vunpack.c.0.s8 %v4484
      %v4486 = vlaneseq
      %v4487 = vshrl.u32 %v4486, 7
      %v4488 = vsub.s32 %v4485, %v4487
      %v4489 = vrot.slane %v4481, %v4488
      %v4491 = vunpack.c.l.s4 1983009808
      %v4492 = vunpack.c.0.s8 %v4491
      %v4493 = vlaneseq
      %v4494 = vshrl.u32 %v4493, 7
      %v4495 = vsub.s32 %v4492, %v4494
      %v4496 = vrot.slane %v4482, %v4495
      %v4497 = vcombine.low %v4288, %v4296
      %v4498 = vcombine.high %v4288, %v4296
      %v4500 = vunpack.c.l.s4 1983009808
      %v4501 = vunpack.c.0.s8 %v4500
      %v4502 = vlaneseq
      %v4503 = vshrl.u32 %v4502, 7
      %v4504 = vsub.s32 %v4501, %v4503
      %v4505 = vrot.slane %v4497, %v4504
      %v4507 = vunpack.c.l.s4 1983009808
      %v4508 = vunpack.c.0.s8 %v4507
      %v4509 = vlaneseq
      %v4510 = vshrl.u32 %v4509, 7
      %v4511 = vsub.s32 %v4508, %v4510
      %v4512 = vrot.slane %v4498, %v4511
      %v4513 = vcombine.low %v4457, %v4473
      %v4514 = vcombine.high %v4457, %v4473
      %v4516 = vunpack.c.l.s4 1934713408
      %v4517 = vunpack.c.0.s8 %v4516
      %v4518 = vlaneseq
      %v4519 = vshrl.u32 %v4518, 7
      %v4520 = vsub.s32 %v4517, %v4519
      %v4521 = vrot.slane %v4513, %v4520
      %v4523 = vunpack.c.l.s4 1934713408
      %v4524 = vunpack.c.0.s8 %v4523
      %v4525 = vlaneseq
      %v4526 = vshrl.u32 %v4525, 7
      %v4527 = vsub.s32 %v4524, %v4526
      %v4528 = vrot.slane %v4514, %v4527
      %v4529 = vcombine.low %v4464, %v4480
      %v4530 = vcombine.high %v4464, %v4480
      %v4532 = vunpack.c.l.s4 1934713408
      %v4533 = vunpack.c.0.s8 %v4532
      %v4534 = vlaneseq
      %v4535 = vshrl.u32 %v4534, 7
      %v4536 = vsub.s32 %v4533, %v4535
      %v4537 = vrot.slane %v4529, %v4536
      %v4539 = vunpack.c.l.s4 1934713408
      %v4540 = vunpack.c.0.s8 %v4539
      %v4541 = vlaneseq
      %v4542 = vshrl.u32 %v4541, 7
      %v4543 = vsub.s32 %v4540, %v4542
      %v4544 = vrot.slane %v4530, %v4543
      %v4545 = vcombine.low %v4489, %v4505
      %v4546 = vcombine.high %v4489, %v4505
      %v4548 = vunpack.c.l.s4 1934713408
      %v4549 = vunpack.c.0.s8 %v4548
      %v4550 = vlaneseq
      %v4551 = vshrl.u32 %v4550, 7
      %v4552 = vsub.s32 %v4549, %v4551
      %v4553 = vrot.slane %v4545, %v4552
      %v4555 = vunpack.c.l.s4 1934713408
      %v4556 = vunpack.c.0.s8 %v4555
      %v4557 = vlaneseq
      %v4558 = vshrl.u32 %v4557, 7
      %v4559 = vsub.s32 %v4556, %v4558
      %v4560 = vrot.slane %v4546, %v4559
      %v4561 = vcombine.low %v4496, %v4512
      %v4562 = vcombine.high %v4496, %v4512
      %v4564 = vunpack.c.l.s4 1934713408
      %v4565 = vunpack.c.0.s8 %v4564
      %v4566 = vlaneseq
      %v4567 = vshrl.u32 %v4566, 7
      %v4568 = vsub.s32 %v4565, %v4567
      %v4569 = vrot.slane %v4561, %v4568
      %v4571 = vunpack.c.l.s4 1934713408
      %v4572 = vunpack.c.0.s8 %v4571
      %v4573 = vlaneseq
      %v4574 = vshrl.u32 %v4573, 7
      %v4575 = vsub.s32 %v4572, %v4574
      %v4576 = vrot.slane %v4562, %v4575
      %v4577 = vcombine.low %v4521, %v4553
      %v4578 = vcombine.high %v4521, %v4553
      %v4579 = vcombine.low %v4528, %v4560
      %v4580 = vcombine.high %v4528, %v4560
      %v4581 = vcombine.low %v4537, %v4569
      %v4582 = vcombine.high %v4537, %v4569
      %v4583 = vcombine.low %v4544, %v4576
      %v4584 = vcombine.high %v4544, %v4576
      %4586 = vrot.lane.b32.xlu0 %v4442, 32
      %v4587 = vpop.permute.xlu0 %4586
      %4590 = vrot.lane.b32.xlu0 %v4443, 64
      %v4591 = vpop.permute.xlu0 %4590
      %4594 = vrot.lane.b32.xlu0 %v4444, 96
      %v4595 = vpop.permute.xlu0 %4594
      %4598 = vrot.lane.b32.xlu0 %v4446, 32
      %v4599 = vpop.permute.xlu0 %4598
      %4602 = vrot.lane.b32.xlu0 %v4447, 64
      %v4603 = vpop.permute.xlu0 %4602
      %4606 = vrot.lane.b32.xlu0 %v4448, 96
      %v4607 = vpop.permute.xlu0 %4606
      %4610 = vrot.lane.b32.xlu0 %v4578, 32
      %v4611 = vpop.permute.xlu0 %4610
      %4614 = vrot.lane.b32.xlu0 %v4579, 64
      %v4615 = vpop.permute.xlu0 %4614
      %4618 = vrot.lane.b32.xlu0 %v4580, 96
      %v4619 = vpop.permute.xlu0 %4618
      %4622 = vrot.lane.b32.xlu0 %v4582, 32
      %v4623 = vpop.permute.xlu0 %4622
      %4626 = vrot.lane.b32.xlu0 %v4583, 64
      %v4627 = vpop.permute.xlu0 %4626
      %4630 = vrot.lane.b32.xlu0 %v4584, 96
      %v4631 = vpop.permute.xlu0 %4630
      %vm4633 = vcmask 261120
      %v4634 = vsel %vm4633, %v4441, %v4587
      %vm4635 = vcmask 523264
      %v4636 = vsel %vm4635, %v4634, %v4591
      %vm4637 = vcmask 785408
      %v4638 = vsel %vm4637, %v4636, %v4595
      %v4639 = vsel %vm4633, %v4445, %v4599
      %v4640 = vsel %vm4635, %v4639, %v4603
      %v4641 = vsel %vm4637, %v4640, %v4607
      %v4642 = vsel %vm4633, %v4577, %v4611
      %v4643 = vsel %vm4635, %v4642, %v4615
      %v4644 = vsel %vm4637, %v4643, %v4619
      %v4645 = vsel %vm4633, %v4581, %v4623
      %v4646 = vsel %vm4635, %v4645, %v4627
      %v4647 = vsel %vm4637, %v4646, %v4631
      %4648 = vst [vmem:[%s252] sm:$0xff] %v4638
      %4649 = vst [vmem:[%s252 + $0x8] sm:$0xff] %v4641
      %4650 = vst [vmem:[%s252 + $0x10] sm:$0xff] %v4644
      %4651 = vst [vmem:[%s252 + $0x18] sm:$0xff] %v4647
      %4668 = vrot.lane.b32.xlu0 %v4137, 96
      %v4669 = vpop.permute.xlu0 %4668
      %4670 = vrot.lane.b32.xlu0 %v4138, 96
      %v4671 = vpop.permute.xlu0 %4670
      %4672 = vrot.lane.b32.xlu0 %v4139, 96
      %v4673 = vpop.permute.xlu0 %4672
      %4674 = vrot.lane.b32.xlu0 %v4140, 96
      %v4675 = vpop.permute.xlu0 %4674
      %4676 = vrot.lane.b32.xlu0 %v4141, 96
      %v4677 = vpop.permute.xlu0 %4676
      %4678 = vrot.lane.b32.xlu0 %v4142, 96
      %v4679 = vpop.permute.xlu0 %4678
      %4680 = vrot.lane.b32.xlu0 %v4143, 96
      %v4681 = vpop.permute.xlu0 %4680
      %4682 = vrot.lane.b32.xlu0 %v4144, 96
      %v4683 = vpop.permute.xlu0 %4682
      %4684 = vrot.lane.b32.xlu0 %v4145, 96
      %v4685 = vpop.permute.xlu0 %4684
      %4686 = vrot.lane.b32.xlu0 %v4146, 96
      %v4687 = vpop.permute.xlu0 %4686
      %4688 = vrot.lane.b32.xlu0 %v4147, 96
      %v4689 = vpop.permute.xlu0 %4688
      %4690 = vrot.lane.b32.xlu0 %v4148, 96
      %v4691 = vpop.permute.xlu0 %4690
      %4692 = vrot.lane.b32.xlu0 %v4149, 96
      %v4693 = vpop.permute.xlu0 %4692
      %4694 = vrot.lane.b32.xlu0 %v4150, 96
      %v4695 = vpop.permute.xlu0 %4694
      %4696 = vrot.lane.b32.xlu0 %v4151, 96
      %v4697 = vpop.permute.xlu0 %4696
      %4698 = vrot.lane.b32.xlu0 %v4152, 96
      %v4699 = vpop.permute.xlu0 %4698
      %v4716 = vcombine.low %v4669, %v4677
      %v4717 = vcombine.high %v4669, %v4677
      %v4719 = vunpack.c.l.s4 1983009808
      %v4720 = vunpack.c.0.s8 %v4719
      %v4721 = vlaneseq
      %v4722 = vshrl.u32 %v4721, 7
      %v4723 = vsub.s32 %v4720, %v4722
      %v4724 = vrot.slane %v4716, %v4723
      %v4726 = vunpack.c.l.s4 1983009808
      %v4727 = vunpack.c.0.s8 %v4726
      %v4728 = vlaneseq
      %v4729 = vshrl.u32 %v4728, 7
      %v4730 = vsub.s32 %v4727, %v4729
      %v4731 = vrot.slane %v4717, %v4730
      %v4732 = vcombine.low %v4673, %v4681
      %v4733 = vcombine.high %v4673, %v4681
      %v4735 = vunpack.c.l.s4 1983009808
      %v4736 = vunpack.c.0.s8 %v4735
      %v4737 = vlaneseq
      %v4738 = vshrl.u32 %v4737, 7
      %v4739 = vsub.s32 %v4736, %v4738
      %v4740 = vrot.slane %v4732, %v4739
      %v4742 = vunpack.c.l.s4 1983009808
      %v4743 = vunpack.c.0.s8 %v4742
      %v4744 = vlaneseq
      %v4745 = vshrl.u32 %v4744, 7
      %v4746 = vsub.s32 %v4743, %v4745
      %v4747 = vrot.slane %v4733, %v4746
      %v4748 = vcombine.low %v4685, %v4693
      %v4749 = vcombine.high %v4685, %v4693
      %v4751 = vunpack.c.l.s4 1983009808
      %v4752 = vunpack.c.0.s8 %v4751
      %v4753 = vlaneseq
      %v4754 = vshrl.u32 %v4753, 7
      %v4755 = vsub.s32 %v4752, %v4754
      %v4756 = vrot.slane %v4748, %v4755
      %v4758 = vunpack.c.l.s4 1983009808
      %v4759 = vunpack.c.0.s8 %v4758
      %v4760 = vlaneseq
      %v4761 = vshrl.u32 %v4760, 7
      %v4762 = vsub.s32 %v4759, %v4761
      %v4763 = vrot.slane %v4749, %v4762
      %v4764 = vcombine.low %v4689, %v4697
      %v4765 = vcombine.high %v4689, %v4697
      %v4767 = vunpack.c.l.s4 1983009808
      %v4768 = vunpack.c.0.s8 %v4767
      %v4769 = vlaneseq
      %v4770 = vshrl.u32 %v4769, 7
      %v4771 = vsub.s32 %v4768, %v4770
      %v4772 = vrot.slane %v4764, %v4771
      %v4774 = vunpack.c.l.s4 1983009808
      %v4775 = vunpack.c.0.s8 %v4774
      %v4776 = vlaneseq
      %v4777 = vshrl.u32 %v4776, 7
      %v4778 = vsub.s32 %v4775, %v4777
      %v4779 = vrot.slane %v4765, %v4778
      %v4780 = vcombine.low %v4724, %v4740
      %v4781 = vcombine.high %v4724, %v4740
      %v4783 = vunpack.c.l.s4 1934713408
      %v4784 = vunpack.c.0.s8 %v4783
      %v4785 = vlaneseq
      %v4786 = vshrl.u32 %v4785, 7
      %v4787 = vsub.s32 %v4784, %v4786
      %v4788 = vrot.slane %v4780, %v4787
      %v4790 = vunpack.c.l.s4 1934713408
      %v4791 = vunpack.c.0.s8 %v4790
      %v4792 = vlaneseq
      %v4793 = vshrl.u32 %v4792, 7
      %v4794 = vsub.s32 %v4791, %v4793
      %v4795 = vrot.slane %v4781, %v4794
      %v4796 = vcombine.low %v4731, %v4747
      %v4797 = vcombine.high %v4731, %v4747
      %v4799 = vunpack.c.l.s4 1934713408
      %v4800 = vunpack.c.0.s8 %v4799
      %v4801 = vlaneseq
      %v4802 = vshrl.u32 %v4801, 7
      %v4803 = vsub.s32 %v4800, %v4802
      %v4804 = vrot.slane %v4796, %v4803
      %v4806 = vunpack.c.l.s4 1934713408
      %v4807 = vunpack.c.0.s8 %v4806
      %v4808 = vlaneseq
      %v4809 = vshrl.u32 %v4808, 7
      %v4810 = vsub.s32 %v4807, %v4809
      %v4811 = vrot.slane %v4797, %v4810
      %v4812 = vcombine.low %v4756, %v4772
      %v4813 = vcombine.high %v4756, %v4772
      %v4815 = vunpack.c.l.s4 1934713408
      %v4816 = vunpack.c.0.s8 %v4815
      %v4817 = vlaneseq
      %v4818 = vshrl.u32 %v4817, 7
      %v4819 = vsub.s32 %v4816, %v4818
      %v4820 = vrot.slane %v4812, %v4819
      %v4822 = vunpack.c.l.s4 1934713408
      %v4823 = vunpack.c.0.s8 %v4822
      %v4824 = vlaneseq
      %v4825 = vshrl.u32 %v4824, 7
      %v4826 = vsub.s32 %v4823, %v4825
      %v4827 = vrot.slane %v4813, %v4826
      %v4828 = vcombine.low %v4763, %v4779
      %v4829 = vcombine.high %v4763, %v4779
      %v4831 = vunpack.c.l.s4 1934713408
      %v4832 = vunpack.c.0.s8 %v4831
      %v4833 = vlaneseq
      %v4834 = vshrl.u32 %v4833, 7
      %v4835 = vsub.s32 %v4832, %v4834
      %v4836 = vrot.slane %v4828, %v4835
      %v4838 = vunpack.c.l.s4 1934713408
      %v4839 = vunpack.c.0.s8 %v4838
      %v4840 = vlaneseq
      %v4841 = vshrl.u32 %v4840, 7
      %v4842 = vsub.s32 %v4839, %v4841
      %v4843 = vrot.slane %v4829, %v4842
      %v4844 = vcombine.low %v4788, %v4820
      %v4845 = vcombine.high %v4788, %v4820
      %v4846 = vcombine.low %v4795, %v4827
      %v4847 = vcombine.high %v4795, %v4827
      %v4848 = vcombine.low %v4804, %v4836
      %v4849 = vcombine.high %v4804, %v4836
      %v4850 = vcombine.low %v4811, %v4843
      %v4851 = vcombine.high %v4811, %v4843
      %v4852 = vcombine.low %v4671, %v4679
      %v4853 = vcombine.high %v4671, %v4679
      %v4855 = vunpack.c.l.s4 1983009808
      %v4856 = vunpack.c.0.s8 %v4855
      %v4857 = vlaneseq
      %v4858 = vshrl.u32 %v4857, 7
      %v4859 = vsub.s32 %v4856, %v4858
      %v4860 = vrot.slane %v4852, %v4859
      %v4862 = vunpack.c.l.s4 1983009808
      %v4863 = vunpack.c.0.s8 %v4862
      %v4864 = vlaneseq
      %v4865 = vshrl.u32 %v4864, 7
      %v4866 = vsub.s32 %v4863, %v4865
      %v4867 = vrot.slane %v4853, %v4866
      %v4868 = vcombine.low %v4675, %v4683
      %v4869 = vcombine.high %v4675, %v4683
      %v4871 = vunpack.c.l.s4 1983009808
      %v4872 = vunpack.c.0.s8 %v4871
      %v4873 = vlaneseq
      %v4874 = vshrl.u32 %v4873, 7
      %v4875 = vsub.s32 %v4872, %v4874
      %v4876 = vrot.slane %v4868, %v4875
      %v4878 = vunpack.c.l.s4 1983009808
      %v4879 = vunpack.c.0.s8 %v4878
      %v4880 = vlaneseq
      %v4881 = vshrl.u32 %v4880, 7
      %v4882 = vsub.s32 %v4879, %v4881
      %v4883 = vrot.slane %v4869, %v4882
      %v4884 = vcombine.low %v4687, %v4695
      %v4885 = vcombine.high %v4687, %v4695
      %v4887 = vunpack.c.l.s4 1983009808
      %v4888 = vunpack.c.0.s8 %v4887
      %v4889 = vlaneseq
      %v4890 = vshrl.u32 %v4889, 7
      %v4891 = vsub.s32 %v4888, %v4890
      %v4892 = vrot.slane %v4884, %v4891
      %v4894 = vunpack.c.l.s4 1983009808
      %v4895 = vunpack.c.0.s8 %v4894
      %v4896 = vlaneseq
      %v4897 = vshrl.u32 %v4896, 7
      %v4898 = vsub.s32 %v4895, %v4897
      %v4899 = vrot.slane %v4885, %v4898
      %v4900 = vcombine.low %v4691, %v4699
      %v4901 = vcombine.high %v4691, %v4699
      %v4903 = vunpack.c.l.s4 1983009808
      %v4904 = vunpack.c.0.s8 %v4903
      %v4905 = vlaneseq
      %v4906 = vshrl.u32 %v4905, 7
      %v4907 = vsub.s32 %v4904, %v4906
      %v4908 = vrot.slane %v4900, %v4907
      %v4910 = vunpack.c.l.s4 1983009808
      %v4911 = vunpack.c.0.s8 %v4910
      %v4912 = vlaneseq
      %v4913 = vshrl.u32 %v4912, 7
      %v4914 = vsub.s32 %v4911, %v4913
      %v4915 = vrot.slane %v4901, %v4914
      %v4916 = vcombine.low %v4860, %v4876
      %v4917 = vcombine.high %v4860, %v4876
      %v4919 = vunpack.c.l.s4 1934713408
      %v4920 = vunpack.c.0.s8 %v4919
      %v4921 = vlaneseq
      %v4922 = vshrl.u32 %v4921, 7
      %v4923 = vsub.s32 %v4920, %v4922
      %v4924 = vrot.slane %v4916, %v4923
      %v4926 = vunpack.c.l.s4 1934713408
      %v4927 = vunpack.c.0.s8 %v4926
      %v4928 = vlaneseq
      %v4929 = vshrl.u32 %v4928, 7
      %v4930 = vsub.s32 %v4927, %v4929
      %v4931 = vrot.slane %v4917, %v4930
      %v4932 = vcombine.low %v4867, %v4883
      %v4933 = vcombine.high %v4867, %v4883
      %v4935 = vunpack.c.l.s4 1934713408
      %v4936 = vunpack.c.0.s8 %v4935
      %v4937 = vlaneseq
      %v4938 = vshrl.u32 %v4937, 7
      %v4939 = vsub.s32 %v4936, %v4938
      %v4940 = vrot.slane %v4932, %v4939
      %v4942 = vunpack.c.l.s4 1934713408
      %v4943 = vunpack.c.0.s8 %v4942
      %v4944 = vlaneseq
      %v4945 = vshrl.u32 %v4944, 7
      %v4946 = vsub.s32 %v4943, %v4945
      %v4947 = vrot.slane %v4933, %v4946
      %v4948 = vcombine.low %v4892, %v4908
      %v4949 = vcombine.high %v4892, %v4908
      %v4951 = vunpack.c.l.s4 1934713408
      %v4952 = vunpack.c.0.s8 %v4951
      %v4953 = vlaneseq
      %v4954 = vshrl.u32 %v4953, 7
      %v4955 = vsub.s32 %v4952, %v4954
      %v4956 = vrot.slane %v4948, %v4955
      %v4958 = vunpack.c.l.s4 1934713408
      %v4959 = vunpack.c.0.s8 %v4958
      %v4960 = vlaneseq
      %v4961 = vshrl.u32 %v4960, 7
      %v4962 = vsub.s32 %v4959, %v4961
      %v4963 = vrot.slane %v4949, %v4962
      %v4964 = vcombine.low %v4899, %v4915
      %v4965 = vcombine.high %v4899, %v4915
      %v4967 = vunpack.c.l.s4 1934713408
      %v4968 = vunpack.c.0.s8 %v4967
      %v4969 = vlaneseq
      %v4970 = vshrl.u32 %v4969, 7
      %v4971 = vsub.s32 %v4968, %v4970
      %v4972 = vrot.slane %v4964, %v4971
      %v4974 = vunpack.c.l.s4 1934713408
      %v4975 = vunpack.c.0.s8 %v4974
      %v4976 = vlaneseq
      %v4977 = vshrl.u32 %v4976, 7
      %v4978 = vsub.s32 %v4975, %v4977
      %v4979 = vrot.slane %v4965, %v4978
      %v4980 = vcombine.low %v4924, %v4956
      %v4981 = vcombine.high %v4924, %v4956
      %v4982 = vcombine.low %v4931, %v4963
      %v4983 = vcombine.high %v4931, %v4963
      %v4984 = vcombine.low %v4940, %v4972
      %v4985 = vcombine.high %v4940, %v4972
      %v4986 = vcombine.low %v4947, %v4979
      %v4987 = vcombine.high %v4947, %v4979
      %4989 = vrot.lane.b32.xlu0 %v4845, 32
      %v4990 = vpop.permute.xlu0 %4989
      %4993 = vrot.lane.b32.xlu0 %v4846, 64
      %v4994 = vpop.permute.xlu0 %4993
      %4997 = vrot.lane.b32.xlu0 %v4847, 96
      %v4998 = vpop.permute.xlu0 %4997
      %5001 = vrot.lane.b32.xlu0 %v4849, 32
      %v5002 = vpop.permute.xlu0 %5001
      %5005 = vrot.lane.b32.xlu0 %v4850, 64
      %v5006 = vpop.permute.xlu0 %5005
      %5009 = vrot.lane.b32.xlu0 %v4851, 96
      %v5010 = vpop.permute.xlu0 %5009
      %5013 = vrot.lane.b32.xlu0 %v4981, 32
      %v5014 = vpop.permute.xlu0 %5013
      %5017 = vrot.lane.b32.xlu0 %v4982, 64
      %v5018 = vpop.permute.xlu0 %5017
      %5021 = vrot.lane.b32.xlu0 %v4983, 96
      %v5022 = vpop.permute.xlu0 %5021
      %5025 = vrot.lane.b32.xlu0 %v4985, 32
      %v5026 = vpop.permute.xlu0 %5025
      %5029 = vrot.lane.b32.xlu0 %v4986, 64
      %v5030 = vpop.permute.xlu0 %5029
      %5033 = vrot.lane.b32.xlu0 %v4987, 96
      %v5034 = vpop.permute.xlu0 %5033
      %v5036 = vsel %vm4633, %v4844, %v4990
      %v5037 = vsel %vm4635, %v5036, %v4994
      %v5038 = vsel %vm4637, %v5037, %v4998
      %v5039 = vsel %vm4633, %v4848, %v5002
      %v5040 = vsel %vm4635, %v5039, %v5006
      %v5041 = vsel %vm4637, %v5040, %v5010
      %v5042 = vsel %vm4633, %v4980, %v5014
      %v5043 = vsel %vm4635, %v5042, %v5018
      %v5044 = vsel %vm4637, %v5043, %v5022
      %v5045 = vsel %vm4633, %v4984, %v5026
      %v5046 = vsel %vm4635, %v5045, %v5030
      %v5047 = vsel %vm4637, %v5046, %v5034
      %5048 = vst [vmem:[%s257] sm:$0xff] %v5038
      %5049 = vst [vmem:[%s257 + $0x8] sm:$0xff] %v5041
      %5050 = vst [vmem:[%s257 + $0x10] sm:$0xff] %v5044
      %5051 = vst [vmem:[%s257 + $0x18] sm:$0xff] %v5047
      %v5052 = vld [vmem:[%s3173] sm:$0xff]
      %v5053 = vld [vmem:[%s3173 + $0x8] sm:$0xff]
      %v5054 = vld [vmem:[%s3173 + $0x10] sm:$0xff]
      %v5055 = vld [vmem:[%s3173 + $0x18] sm:$0xff]
      %v5056 = vld [vmem:[%s3173 + $0x20] sm:$0xff]
      %v5057 = vld [vmem:[%s3173 + $0x28] sm:$0xff]
      %v5058 = vld [vmem:[%s3173 + $0x30] sm:$0xff]
      %v5059 = vld [vmem:[%s3173 + $0x38] sm:$0xff]
      %v5060 = vld [vmem:[%s3173 + $0x40] sm:$0xff]
      %v5061 = vld [vmem:[%s3173 + $0x48] sm:$0xff]
      %v5062 = vld [vmem:[%s3173 + $0x50] sm:$0xff]
      %v5063 = vld [vmem:[%s3173 + $0x58] sm:$0xff]
      %v5064 = vld [vmem:[%s3173 + $0x60] sm:$0xff]
      %v5065 = vld [vmem:[%s3173 + $0x68] sm:$0xff]
      %v5066 = vld [vmem:[%s3173 + $0x70] sm:$0xff]
      %v5067 = vld [vmem:[%s3173 + $0x78] sm:$0xff]
      %v5068 = vxor.u32 %v5052, 2147483648
      %v5069 = vxor.u32 %v5053, 2147483648
      %v5070 = vxor.u32 %v5054, 2147483648
      %v5071 = vxor.u32 %v5055, 2147483648
      %v5072 = vxor.u32 %v5056, 2147483648
      %v5073 = vxor.u32 %v5057, 2147483648
      %v5074 = vxor.u32 %v5058, 2147483648
      %v5075 = vxor.u32 %v5059, 2147483648
      %v5076 = vxor.u32 %v5060, 2147483648
      %v5077 = vxor.u32 %v5061, 2147483648
      %v5078 = vxor.u32 %v5062, 2147483648
      %v5079 = vxor.u32 %v5063, 2147483648
      %v5080 = vxor.u32 %v5064, 2147483648
      %v5081 = vxor.u32 %v5065, 2147483648
      %v5082 = vxor.u32 %v5066, 2147483648
      %v5083 = vxor.u32 %v5067, 2147483648
      %v5084 = vmul.f32 %v5068, 1.442695
      %v5085 = vpow.pop %v5084
      %v5086 = vmul.f32 %v5069, 1.442695
      %v5087 = vpow.pop %v5086
      %v5088 = vmul.f32 %v5070, 1.442695
      %v5089 = vpow.pop %v5088
      %v5090 = vmul.f32 %v5071, 1.442695
      %v5091 = vpow.pop %v5090
      %v5092 = vmul.f32 %v5072, 1.442695
      %v5093 = vpow.pop %v5092
      %v5094 = vmul.f32 %v5073, 1.442695
      %v5095 = vpow.pop %v5094
      %v5096 = vmul.f32 %v5074, 1.442695
      %v5097 = vpow.pop %v5096
      %v5098 = vmul.f32 %v5075, 1.442695
      %v5099 = vpow.pop %v5098
      %v5100 = vmul.f32 %v5076, 1.442695
      %v5101 = vpow.pop %v5100
      %v5102 = vmul.f32 %v5077, 1.442695
      %v5103 = vpow.pop %v5102
      %v5104 = vmul.f32 %v5078, 1.442695
      %v5105 = vpow.pop %v5104
      %v5106 = vmul.f32 %v5079, 1.442695
      %v5107 = vpow.pop %v5106
      %v5108 = vmul.f32 %v5080, 1.442695
      %v5109 = vpow.pop %v5108
      %v5110 = vmul.f32 %v5081, 1.442695
      %v5111 = vpow.pop %v5110
      %v5112 = vmul.f32 %v5082, 1.442695
      %v5113 = vpow.pop %v5112
      %v5114 = vmul.f32 %v5083, 1.442695
      %v5115 = vpow.pop %v5114
      %v5116 = vadd.f32 %v5085, 1.0
      %v5117 = vadd.f32 %v5087, 1.0
      %v5118 = vadd.f32 %v5089, 1.0
      %v5119 = vadd.f32 %v5091, 1.0
      %v5120 = vadd.f32 %v5093, 1.0
      %v5121 = vadd.f32 %v5095, 1.0
      %v5122 = vadd.f32 %v5097, 1.0
      %v5123 = vadd.f32 %v5099, 1.0
      %v5124 = vadd.f32 %v5101, 1.0
      %v5125 = vadd.f32 %v5103, 1.0
      %v5126 = vadd.f32 %v5105, 1.0
      %v5127 = vadd.f32 %v5107, 1.0
      %v5128 = vadd.f32 %v5109, 1.0
      %v5129 = vadd.f32 %v5111, 1.0
      %v5130 = vadd.f32 %v5113, 1.0
      %v5131 = vadd.f32 %v5115, 1.0
      %v5132 = vrcp.pop %v5116
      %v5133 = vmul.f32 1.0, %v5132
      %v5134 = vrcp.pop %v5117
      %v5135 = vmul.f32 1.0, %v5134
      %v5136 = vrcp.pop %v5118
      %v5137 = vmul.f32 1.0, %v5136
      %v5138 = vrcp.pop %v5119
      %v5139 = vmul.f32 1.0, %v5138
      %v5140 = vrcp.pop %v5120
      %v5141 = vmul.f32 1.0, %v5140
      %v5142 = vrcp.pop %v5121
      %v5143 = vmul.f32 1.0, %v5142
      %v5144 = vrcp.pop %v5122
      %v5145 = vmul.f32 1.0, %v5144
      %v5146 = vrcp.pop %v5123
      %v5147 = vmul.f32 1.0, %v5146
      %v5148 = vrcp.pop %v5124
      %v5149 = vmul.f32 1.0, %v5148
      %v5150 = vrcp.pop %v5125
      %v5151 = vmul.f32 1.0, %v5150
      %v5152 = vrcp.pop %v5126
      %v5153 = vmul.f32 1.0, %v5152
      %v5154 = vrcp.pop %v5127
      %v5155 = vmul.f32 1.0, %v5154
      %v5156 = vrcp.pop %v5128
      %v5157 = vmul.f32 1.0, %v5156
      %v5158 = vrcp.pop %v5129
      %v5159 = vmul.f32 1.0, %v5158
      %v5160 = vrcp.pop %v5130
      %v5161 = vmul.f32 1.0, %v5160
      %v5162 = vrcp.pop %v5131
      %v5163 = vmul.f32 1.0, %v5162
      %v5164 = vtanh.pop %v5052
      %v5165 = vtanh.pop %v5053
      %v5166 = vtanh.pop %v5054
      %v5167 = vtanh.pop %v5055
      %v5168 = vtanh.pop %v5056
      %v5169 = vtanh.pop %v5057
      %v5170 = vtanh.pop %v5058
      %v5171 = vtanh.pop %v5059
      %v5172 = vtanh.pop %v5060
      %v5173 = vtanh.pop %v5061
      %v5174 = vtanh.pop %v5062
      %v5175 = vtanh.pop %v5063
      %v5176 = vtanh.pop %v5064
      %v5177 = vtanh.pop %v5065
      %v5178 = vtanh.pop %v5066
      %v5179 = vtanh.pop %v5067
      %s5180 = scalar_lea.vmem %s247, 128
      %v5181 = vld [vmem:[%s5180] sm:$0xff]
      %v5182 = vld [vmem:[%s5180 + $0x8] sm:$0xff]
      %v5183 = vld [vmem:[%s5180 + $0x10] sm:$0xff]
      %v5184 = vld [vmem:[%s5180 + $0x18] sm:$0xff]
      %v5185 = vld [vmem:[%s5180 + $0x20] sm:$0xff]
      %v5186 = vld [vmem:[%s5180 + $0x28] sm:$0xff]
      %v5187 = vld [vmem:[%s5180 + $0x30] sm:$0xff]
      %v5188 = vld [vmem:[%s5180 + $0x38] sm:$0xff]
      %v5189 = vld [vmem:[%s5180 + $0x40] sm:$0xff]
      %v5190 = vld [vmem:[%s5180 + $0x48] sm:$0xff]
      %v5191 = vld [vmem:[%s5180 + $0x50] sm:$0xff]
      %v5192 = vld [vmem:[%s5180 + $0x58] sm:$0xff]
      %v5193 = vld [vmem:[%s5180 + $0x60] sm:$0xff]
      %v5194 = vld [vmem:[%s5180 + $0x68] sm:$0xff]
      %v5195 = vld [vmem:[%s5180 + $0x70] sm:$0xff]
      %v5196 = vld [vmem:[%s5180 + $0x78] sm:$0xff]
      %5213 = vrot.lane.b32.xlu0 %v5181, 32
      %v5214 = vpop.permute.xlu0 %5213
      %5215 = vrot.lane.b32.xlu0 %v5182, 32
      %v5216 = vpop.permute.xlu0 %5215
      %5217 = vrot.lane.b32.xlu0 %v5183, 32
      %v5218 = vpop.permute.xlu0 %5217
      %5219 = vrot.lane.b32.xlu0 %v5184, 32
      %v5220 = vpop.permute.xlu0 %5219
      %5221 = vrot.lane.b32.xlu0 %v5185, 32
      %v5222 = vpop.permute.xlu0 %5221
      %5223 = vrot.lane.b32.xlu0 %v5186, 32
      %v5224 = vpop.permute.xlu0 %5223
      %5225 = vrot.lane.b32.xlu0 %v5187, 32
      %v5226 = vpop.permute.xlu0 %5225
      %5227 = vrot.lane.b32.xlu0 %v5188, 32
      %v5228 = vpop.permute.xlu0 %5227
      %5229 = vrot.lane.b32.xlu0 %v5189, 32
      %v5230 = vpop.permute.xlu0 %5229
      %5231 = vrot.lane.b32.xlu0 %v5190, 32
      %v5232 = vpop.permute.xlu0 %5231
      %5233 = vrot.lane.b32.xlu0 %v5191, 32
      %v5234 = vpop.permute.xlu0 %5233
      %5235 = vrot.lane.b32.xlu0 %v5192, 32
      %v5236 = vpop.permute.xlu0 %5235
      %5237 = vrot.lane.b32.xlu0 %v5193, 32
      %v5238 = vpop.permute.xlu0 %5237
      %5239 = vrot.lane.b32.xlu0 %v5194, 32
      %v5240 = vpop.permute.xlu0 %5239
      %5241 = vrot.lane.b32.xlu0 %v5195, 32
      %v5242 = vpop.permute.xlu0 %5241
      %5243 = vrot.lane.b32.xlu0 %v5196, 32
      %v5244 = vpop.permute.xlu0 %5243
      %v5261 = vmul.f32 %v5133, %v5214
      %v5262 = vmul.f32 %v5135, %v5216
      %v5263 = vmul.f32 %v5137, %v5218
      %v5264 = vmul.f32 %v5139, %v5220
      %v5265 = vmul.f32 %v5141, %v5222
      %v5266 = vmul.f32 %v5143, %v5224
      %v5267 = vmul.f32 %v5145, %v5226
      %v5268 = vmul.f32 %v5147, %v5228
      %v5269 = vmul.f32 %v5149, %v5230
      %v5270 = vmul.f32 %v5151, %v5232
      %v5271 = vmul.f32 %v5153, %v5234
      %v5272 = vmul.f32 %v5155, %v5236
      %v5273 = vmul.f32 %v5157, %v5238
      %v5274 = vmul.f32 %v5159, %v5240
      %v5275 = vmul.f32 %v5161, %v5242
      %v5276 = vmul.f32 %v5163, %v5244
      %5293 = vrot.lane.b32.xlu0 %v5164, 32
      %v5294 = vpop.permute.xlu0 %5293
      %5295 = vrot.lane.b32.xlu0 %v5165, 32
      %v5296 = vpop.permute.xlu0 %5295
      %5297 = vrot.lane.b32.xlu0 %v5166, 32
      %v5298 = vpop.permute.xlu0 %5297
      %5299 = vrot.lane.b32.xlu0 %v5167, 32
      %v5300 = vpop.permute.xlu0 %5299
      %5301 = vrot.lane.b32.xlu0 %v5168, 32
      %v5302 = vpop.permute.xlu0 %5301
      %5303 = vrot.lane.b32.xlu0 %v5169, 32
      %v5304 = vpop.permute.xlu0 %5303
      %5305 = vrot.lane.b32.xlu0 %v5170, 32
      %v5306 = vpop.permute.xlu0 %5305
      %5307 = vrot.lane.b32.xlu0 %v5171, 32
      %v5308 = vpop.permute.xlu0 %5307
      %5309 = vrot.lane.b32.xlu0 %v5172, 32
      %v5310 = vpop.permute.xlu0 %5309
      %5311 = vrot.lane.b32.xlu0 %v5173, 32
      %v5312 = vpop.permute.xlu0 %5311
      %5313 = vrot.lane.b32.xlu0 %v5174, 32
      %v5314 = vpop.permute.xlu0 %5313
      %5315 = vrot.lane.b32.xlu0 %v5175, 32
      %v5316 = vpop.permute.xlu0 %5315
      %5317 = vrot.lane.b32.xlu0 %v5176, 32
      %v5318 = vpop.permute.xlu0 %5317
      %5319 = vrot.lane.b32.xlu0 %v5177, 32
      %v5320 = vpop.permute.xlu0 %5319
      %5321 = vrot.lane.b32.xlu0 %v5178, 32
      %v5322 = vpop.permute.xlu0 %5321
      %5323 = vrot.lane.b32.xlu0 %v5179, 32
      %v5324 = vpop.permute.xlu0 %5323
      %v5341 = vmul.f32 %v5133, %v5294
      %v5342 = vmul.f32 %v5135, %v5296
      %v5343 = vmul.f32 %v5137, %v5298
      %v5344 = vmul.f32 %v5139, %v5300
      %v5345 = vmul.f32 %v5141, %v5302
      %v5346 = vmul.f32 %v5143, %v5304
      %v5347 = vmul.f32 %v5145, %v5306
      %v5348 = vmul.f32 %v5147, %v5308
      %v5349 = vmul.f32 %v5149, %v5310
      %v5350 = vmul.f32 %v5151, %v5312
      %v5351 = vmul.f32 %v5153, %v5314
      %v5352 = vmul.f32 %v5155, %v5316
      %v5353 = vmul.f32 %v5157, %v5318
      %v5354 = vmul.f32 %v5159, %v5320
      %v5355 = vmul.f32 %v5161, %v5322
      %v5356 = vmul.f32 %v5163, %v5324
      %5373 = vrot.lane.b32.xlu0 %v5341, 32
      %v5374 = vpop.permute.xlu0 %5373
      %5375 = vrot.lane.b32.xlu0 %v5342, 32
      %v5376 = vpop.permute.xlu0 %5375
      %5377 = vrot.lane.b32.xlu0 %v5343, 32
      %v5378 = vpop.permute.xlu0 %5377
      %5379 = vrot.lane.b32.xlu0 %v5344, 32
      %v5380 = vpop.permute.xlu0 %5379
      %5381 = vrot.lane.b32.xlu0 %v5345, 32
      %v5382 = vpop.permute.xlu0 %5381
      %5383 = vrot.lane.b32.xlu0 %v5346, 32
      %v5384 = vpop.permute.xlu0 %5383
      %5385 = vrot.lane.b32.xlu0 %v5347, 32
      %v5386 = vpop.permute.xlu0 %5385
      %5387 = vrot.lane.b32.xlu0 %v5348, 32
      %v5388 = vpop.permute.xlu0 %5387
      %5389 = vrot.lane.b32.xlu0 %v5349, 32
      %v5390 = vpop.permute.xlu0 %5389
      %5391 = vrot.lane.b32.xlu0 %v5350, 32
      %v5392 = vpop.permute.xlu0 %5391
      %5393 = vrot.lane.b32.xlu0 %v5351, 32
      %v5394 = vpop.permute.xlu0 %5393
      %5395 = vrot.lane.b32.xlu0 %v5352, 32
      %v5396 = vpop.permute.xlu0 %5395
      %5397 = vrot.lane.b32.xlu0 %v5353, 32
      %v5398 = vpop.permute.xlu0 %5397
      %5399 = vrot.lane.b32.xlu0 %v5354, 32
      %v5400 = vpop.permute.xlu0 %5399
      %5401 = vrot.lane.b32.xlu0 %v5355, 32
      %v5402 = vpop.permute.xlu0 %5401
      %5403 = vrot.lane.b32.xlu0 %v5356, 32
      %v5404 = vpop.permute.xlu0 %5403
      %v5421 = vadd.f32 %v5261, %v5374
      %v5422 = vadd.f32 %v5262, %v5376
      %v5423 = vadd.f32 %v5263, %v5378
      %v5424 = vadd.f32 %v5264, %v5380
      %v5425 = vadd.f32 %v5265, %v5382
      %v5426 = vadd.f32 %v5266, %v5384
      %v5427 = vadd.f32 %v5267, %v5386
      %v5428 = vadd.f32 %v5268, %v5388
      %v5429 = vadd.f32 %v5269, %v5390
      %v5430 = vadd.f32 %v5270, %v5392
      %v5431 = vadd.f32 %v5271, %v5394
      %v5432 = vadd.f32 %v5272, %v5396
      %v5433 = vadd.f32 %v5273, %v5398
      %v5434 = vadd.f32 %v5274, %v5400
      %v5435 = vadd.f32 %v5275, %v5402
      %v5436 = vadd.f32 %v5276, %v5404
      %v5437 = vtanh.pop %v5421
      %v5438 = vtanh.pop %v5422
      %v5439 = vtanh.pop %v5423
      %v5440 = vtanh.pop %v5424
      %v5441 = vtanh.pop %v5425
      %v5442 = vtanh.pop %v5426
      %v5443 = vtanh.pop %v5427
      %v5444 = vtanh.pop %v5428
      %v5445 = vtanh.pop %v5429
      %v5446 = vtanh.pop %v5430
      %v5447 = vtanh.pop %v5431
      %v5448 = vtanh.pop %v5432
      %v5449 = vtanh.pop %v5433
      %v5450 = vtanh.pop %v5434
      %v5451 = vtanh.pop %v5435
      %v5452 = vtanh.pop %v5436
      %5469 = vrot.lane.b32.xlu0 %v5437, 32
      %v5470 = vpop.permute.xlu0 %5469
      %5471 = vrot.lane.b32.xlu0 %v5438, 32
      %v5472 = vpop.permute.xlu0 %5471
      %5473 = vrot.lane.b32.xlu0 %v5439, 32
      %v5474 = vpop.permute.xlu0 %5473
      %5475 = vrot.lane.b32.xlu0 %v5440, 32
      %v5476 = vpop.permute.xlu0 %5475
      %5477 = vrot.lane.b32.xlu0 %v5441, 32
      %v5478 = vpop.permute.xlu0 %5477
      %5479 = vrot.lane.b32.xlu0 %v5442, 32
      %v5480 = vpop.permute.xlu0 %5479
      %5481 = vrot.lane.b32.xlu0 %v5443, 32
      %v5482 = vpop.permute.xlu0 %5481
      %5483 = vrot.lane.b32.xlu0 %v5444, 32
      %v5484 = vpop.permute.xlu0 %5483
      %5485 = vrot.lane.b32.xlu0 %v5445, 32
      %v5486 = vpop.permute.xlu0 %5485
      %5487 = vrot.lane.b32.xlu0 %v5446, 32
      %v5488 = vpop.permute.xlu0 %5487
      %5489 = vrot.lane.b32.xlu0 %v5447, 32
      %v5490 = vpop.permute.xlu0 %5489
      %5491 = vrot.lane.b32.xlu0 %v5448, 32
      %v5492 = vpop.permute.xlu0 %5491
      %5493 = vrot.lane.b32.xlu0 %v5449, 32
      %v5494 = vpop.permute.xlu0 %5493
      %5495 = vrot.lane.b32.xlu0 %v5450, 32
      %v5496 = vpop.permute.xlu0 %5495
      %5497 = vrot.lane.b32.xlu0 %v5451, 32
      %v5498 = vpop.permute.xlu0 %5497
      %5499 = vrot.lane.b32.xlu0 %v5452, 32
      %v5500 = vpop.permute.xlu0 %5499
      %v5517 = vmul.f32 %v5133, %v5470
      %v5518 = vmul.f32 %v5135, %v5472
      %v5519 = vmul.f32 %v5137, %v5474
      %v5520 = vmul.f32 %v5139, %v5476
      %v5521 = vmul.f32 %v5141, %v5478
      %v5522 = vmul.f32 %v5143, %v5480
      %v5523 = vmul.f32 %v5145, %v5482
      %v5524 = vmul.f32 %v5147, %v5484
      %v5525 = vmul.f32 %v5149, %v5486
      %v5526 = vmul.f32 %v5151, %v5488
      %v5527 = vmul.f32 %v5153, %v5490
      %v5528 = vmul.f32 %v5155, %v5492
      %v5529 = vmul.f32 %v5157, %v5494
      %v5530 = vmul.f32 %v5159, %v5496
      %v5531 = vmul.f32 %v5161, %v5498
      %v5532 = vmul.f32 %v5163, %v5500
      %5549 = vrot.lane.b32.xlu0 %v5517, 64
      %v5550 = vpop.permute.xlu0 %5549
      %5551 = vrot.lane.b32.xlu0 %v5518, 64
      %v5552 = vpop.permute.xlu0 %5551
      %5553 = vrot.lane.b32.xlu0 %v5519, 64
      %v5554 = vpop.permute.xlu0 %5553
      %5555 = vrot.lane.b32.xlu0 %v5520, 64
      %v5556 = vpop.permute.xlu0 %5555
      %5557 = vrot.lane.b32.xlu0 %v5521, 64
      %v5558 = vpop.permute.xlu0 %5557
      %5559 = vrot.lane.b32.xlu0 %v5522, 64
      %v5560 = vpop.permute.xlu0 %5559
      %5561 = vrot.lane.b32.xlu0 %v5523, 64
      %v5562 = vpop.permute.xlu0 %5561
      %5563 = vrot.lane.b32.xlu0 %v5524, 64
      %v5564 = vpop.permute.xlu0 %5563
      %5565 = vrot.lane.b32.xlu0 %v5525, 64
      %v5566 = vpop.permute.xlu0 %5565
      %5567 = vrot.lane.b32.xlu0 %v5526, 64
      %v5568 = vpop.permute.xlu0 %5567
      %5569 = vrot.lane.b32.xlu0 %v5527, 64
      %v5570 = vpop.permute.xlu0 %5569
      %5571 = vrot.lane.b32.xlu0 %v5528, 64
      %v5572 = vpop.permute.xlu0 %5571
      %5573 = vrot.lane.b32.xlu0 %v5529, 64
      %v5574 = vpop.permute.xlu0 %5573
      %5575 = vrot.lane.b32.xlu0 %v5530, 64
      %v5576 = vpop.permute.xlu0 %5575
      %5577 = vrot.lane.b32.xlu0 %v5531, 64
      %v5578 = vpop.permute.xlu0 %5577
      %5579 = vrot.lane.b32.xlu0 %v5532, 64
      %v5580 = vpop.permute.xlu0 %5579
      %v5597 = vcombine.low %v5550, %v5558
      %v5598 = vcombine.high %v5550, %v5558
      %v5600 = vunpack.c.l.s4 1983009808
      %v5601 = vunpack.c.0.s8 %v5600
      %v5602 = vlaneseq
      %v5603 = vshrl.u32 %v5602, 7
      %v5604 = vsub.s32 %v5601, %v5603
      %v5605 = vrot.slane %v5597, %v5604
      %v5607 = vunpack.c.l.s4 1983009808
      %v5608 = vunpack.c.0.s8 %v5607
      %v5609 = vlaneseq
      %v5610 = vshrl.u32 %v5609, 7
      %v5611 = vsub.s32 %v5608, %v5610
      %v5612 = vrot.slane %v5598, %v5611
      %v5613 = vcombine.low %v5554, %v5562
      %v5614 = vcombine.high %v5554, %v5562
      %v5616 = vunpack.c.l.s4 1983009808
      %v5617 = vunpack.c.0.s8 %v5616
      %v5618 = vlaneseq
      %v5619 = vshrl.u32 %v5618, 7
      %v5620 = vsub.s32 %v5617, %v5619
      %v5621 = vrot.slane %v5613, %v5620
      %v5623 = vunpack.c.l.s4 1983009808
      %v5624 = vunpack.c.0.s8 %v5623
      %v5625 = vlaneseq
      %v5626 = vshrl.u32 %v5625, 7
      %v5627 = vsub.s32 %v5624, %v5626
      %v5628 = vrot.slane %v5614, %v5627
      %v5629 = vcombine.low %v5566, %v5574
      %v5630 = vcombine.high %v5566, %v5574
      %v5632 = vunpack.c.l.s4 1983009808
      %v5633 = vunpack.c.0.s8 %v5632
      %v5634 = vlaneseq
      %v5635 = vshrl.u32 %v5634, 7
      %v5636 = vsub.s32 %v5633, %v5635
      %v5637 = vrot.slane %v5629, %v5636
      %v5639 = vunpack.c.l.s4 1983009808
      %v5640 = vunpack.c.0.s8 %v5639
      %v5641 = vlaneseq
      %v5642 = vshrl.u32 %v5641, 7
      %v5643 = vsub.s32 %v5640, %v5642
      %v5644 = vrot.slane %v5630, %v5643
      %v5645 = vcombine.low %v5570, %v5578
      %v5646 = vcombine.high %v5570, %v5578
      %v5648 = vunpack.c.l.s4 1983009808
      %v5649 = vunpack.c.0.s8 %v5648
      %v5650 = vlaneseq
      %v5651 = vshrl.u32 %v5650, 7
      %v5652 = vsub.s32 %v5649, %v5651
      %v5653 = vrot.slane %v5645, %v5652
      %v5655 = vunpack.c.l.s4 1983009808
      %v5656 = vunpack.c.0.s8 %v5655
      %v5657 = vlaneseq
      %v5658 = vshrl.u32 %v5657, 7
      %v5659 = vsub.s32 %v5656, %v5658
      %v5660 = vrot.slane %v5646, %v5659
      %v5661 = vcombine.low %v5605, %v5621
      %v5662 = vcombine.high %v5605, %v5621
      %v5664 = vunpack.c.l.s4 1934713408
      %v5665 = vunpack.c.0.s8 %v5664
      %v5666 = vlaneseq
      %v5667 = vshrl.u32 %v5666, 7
      %v5668 = vsub.s32 %v5665, %v5667
      %v5669 = vrot.slane %v5661, %v5668
      %v5671 = vunpack.c.l.s4 1934713408
      %v5672 = vunpack.c.0.s8 %v5671
      %v5673 = vlaneseq
      %v5674 = vshrl.u32 %v5673, 7
      %v5675 = vsub.s32 %v5672, %v5674
      %v5676 = vrot.slane %v5662, %v5675
      %v5677 = vcombine.low %v5612, %v5628
      %v5678 = vcombine.high %v5612, %v5628
      %v5680 = vunpack.c.l.s4 1934713408
      %v5681 = vunpack.c.0.s8 %v5680
      %v5682 = vlaneseq
      %v5683 = vshrl.u32 %v5682, 7
      %v5684 = vsub.s32 %v5681, %v5683
      %v5685 = vrot.slane %v5677, %v5684
      %v5687 = vunpack.c.l.s4 1934713408
      %v5688 = vunpack.c.0.s8 %v5687
      %v5689 = vlaneseq
      %v5690 = vshrl.u32 %v5689, 7
      %v5691 = vsub.s32 %v5688, %v5690
      %v5692 = vrot.slane %v5678, %v5691
      %v5693 = vcombine.low %v5637, %v5653
      %v5694 = vcombine.high %v5637, %v5653
      %v5696 = vunpack.c.l.s4 1934713408
      %v5697 = vunpack.c.0.s8 %v5696
      %v5698 = vlaneseq
      %v5699 = vshrl.u32 %v5698, 7
      %v5700 = vsub.s32 %v5697, %v5699
      %v5701 = vrot.slane %v5693, %v5700
      %v5703 = vunpack.c.l.s4 1934713408
      %v5704 = vunpack.c.0.s8 %v5703
      %v5705 = vlaneseq
      %v5706 = vshrl.u32 %v5705, 7
      %v5707 = vsub.s32 %v5704, %v5706
      %v5708 = vrot.slane %v5694, %v5707
      %v5709 = vcombine.low %v5644, %v5660
      %v5710 = vcombine.high %v5644, %v5660
      %v5712 = vunpack.c.l.s4 1934713408
      %v5713 = vunpack.c.0.s8 %v5712
      %v5714 = vlaneseq
      %v5715 = vshrl.u32 %v5714, 7
      %v5716 = vsub.s32 %v5713, %v5715
      %v5717 = vrot.slane %v5709, %v5716
      %v5719 = vunpack.c.l.s4 1934713408
      %v5720 = vunpack.c.0.s8 %v5719
      %v5721 = vlaneseq
      %v5722 = vshrl.u32 %v5721, 7
      %v5723 = vsub.s32 %v5720, %v5722
      %v5724 = vrot.slane %v5710, %v5723
      %v5725 = vcombine.low %v5669, %v5701
      %v5726 = vcombine.high %v5669, %v5701
      %v5727 = vcombine.low %v5676, %v5708
      %v5728 = vcombine.high %v5676, %v5708
      %v5729 = vcombine.low %v5685, %v5717
      %v5730 = vcombine.high %v5685, %v5717
      %v5731 = vcombine.low %v5692, %v5724
      %v5732 = vcombine.high %v5692, %v5724
      %v5733 = vcombine.low %v5552, %v5560
      %v5734 = vcombine.high %v5552, %v5560
      %v5736 = vunpack.c.l.s4 1983009808
      %v5737 = vunpack.c.0.s8 %v5736
      %v5738 = vlaneseq
      %v5739 = vshrl.u32 %v5738, 7
      %v5740 = vsub.s32 %v5737, %v5739
      %v5741 = vrot.slane %v5733, %v5740
      %v5743 = vunpack.c.l.s4 1983009808
      %v5744 = vunpack.c.0.s8 %v5743
      %v5745 = vlaneseq
      %v5746 = vshrl.u32 %v5745, 7
      %v5747 = vsub.s32 %v5744, %v5746
      %v5748 = vrot.slane %v5734, %v5747
      %v5749 = vcombine.low %v5556, %v5564
      %v5750 = vcombine.high %v5556, %v5564
      %v5752 = vunpack.c.l.s4 1983009808
      %v5753 = vunpack.c.0.s8 %v5752
      %v5754 = vlaneseq
      %v5755 = vshrl.u32 %v5754, 7
      %v5756 = vsub.s32 %v5753, %v5755
      %v5757 = vrot.slane %v5749, %v5756
      %v5759 = vunpack.c.l.s4 1983009808
      %v5760 = vunpack.c.0.s8 %v5759
      %v5761 = vlaneseq
      %v5762 = vshrl.u32 %v5761, 7
      %v5763 = vsub.s32 %v5760, %v5762
      %v5764 = vrot.slane %v5750, %v5763
      %v5765 = vcombine.low %v5568, %v5576
      %v5766 = vcombine.high %v5568, %v5576
      %v5768 = vunpack.c.l.s4 1983009808
      %v5769 = vunpack.c.0.s8 %v5768
      %v5770 = vlaneseq
      %v5771 = vshrl.u32 %v5770, 7
      %v5772 = vsub.s32 %v5769, %v5771
      %v5773 = vrot.slane %v5765, %v5772
      %v5775 = vunpack.c.l.s4 1983009808
      %v5776 = vunpack.c.0.s8 %v5775
      %v5777 = vlaneseq
      %v5778 = vshrl.u32 %v5777, 7
      %v5779 = vsub.s32 %v5776, %v5778
      %v5780 = vrot.slane %v5766, %v5779
      %v5781 = vcombine.low %v5572, %v5580
      %v5782 = vcombine.high %v5572, %v5580
      %v5784 = vunpack.c.l.s4 1983009808
      %v5785 = vunpack.c.0.s8 %v5784
      %v5786 = vlaneseq
      %v5787 = vshrl.u32 %v5786, 7
      %v5788 = vsub.s32 %v5785, %v5787
      %v5789 = vrot.slane %v5781, %v5788
      %v5791 = vunpack.c.l.s4 1983009808
      %v5792 = vunpack.c.0.s8 %v5791
      %v5793 = vlaneseq
      %v5794 = vshrl.u32 %v5793, 7
      %v5795 = vsub.s32 %v5792, %v5794
      %v5796 = vrot.slane %v5782, %v5795
      %v5797 = vcombine.low %v5741, %v5757
      %v5798 = vcombine.high %v5741, %v5757
      %v5800 = vunpack.c.l.s4 1934713408
      %v5801 = vunpack.c.0.s8 %v5800
      %v5802 = vlaneseq
      %v5803 = vshrl.u32 %v5802, 7
      %v5804 = vsub.s32 %v5801, %v5803
      %v5805 = vrot.slane %v5797, %v5804
      %v5807 = vunpack.c.l.s4 1934713408
      %v5808 = vunpack.c.0.s8 %v5807
      %v5809 = vlaneseq
      %v5810 = vshrl.u32 %v5809, 7
      %v5811 = vsub.s32 %v5808, %v5810
      %v5812 = vrot.slane %v5798, %v5811
      %v5813 = vcombine.low %v5748, %v5764
      %v5814 = vcombine.high %v5748, %v5764
      %v5816 = vunpack.c.l.s4 1934713408
      %v5817 = vunpack.c.0.s8 %v5816
      %v5818 = vlaneseq
      %v5819 = vshrl.u32 %v5818, 7
      %v5820 = vsub.s32 %v5817, %v5819
      %v5821 = vrot.slane %v5813, %v5820
      %v5823 = vunpack.c.l.s4 1934713408
      %v5824 = vunpack.c.0.s8 %v5823
      %v5825 = vlaneseq
      %v5826 = vshrl.u32 %v5825, 7
      %v5827 = vsub.s32 %v5824, %v5826
      %v5828 = vrot.slane %v5814, %v5827
      %v5829 = vcombine.low %v5773, %v5789
      %v5830 = vcombine.high %v5773, %v5789
      %v5832 = vunpack.c.l.s4 1934713408
      %v5833 = vunpack.c.0.s8 %v5832
      %v5834 = vlaneseq
      %v5835 = vshrl.u32 %v5834, 7
      %v5836 = vsub.s32 %v5833, %v5835
      %v5837 = vrot.slane %v5829, %v5836
      %v5839 = vunpack.c.l.s4 1934713408
      %v5840 = vunpack.c.0.s8 %v5839
      %v5841 = vlaneseq
      %v5842 = vshrl.u32 %v5841, 7
      %v5843 = vsub.s32 %v5840, %v5842
      %v5844 = vrot.slane %v5830, %v5843
      %v5845 = vcombine.low %v5780, %v5796
      %v5846 = vcombine.high %v5780, %v5796
      %v5848 = vunpack.c.l.s4 1934713408
      %v5849 = vunpack.c.0.s8 %v5848
      %v5850 = vlaneseq
      %v5851 = vshrl.u32 %v5850, 7
      %v5852 = vsub.s32 %v5849, %v5851
      %v5853 = vrot.slane %v5845, %v5852
      %v5855 = vunpack.c.l.s4 1934713408
      %v5856 = vunpack.c.0.s8 %v5855
      %v5857 = vlaneseq
      %v5858 = vshrl.u32 %v5857, 7
      %v5859 = vsub.s32 %v5856, %v5858
      %v5860 = vrot.slane %v5846, %v5859
      %v5861 = vcombine.low %v5805, %v5837
      %v5862 = vcombine.high %v5805, %v5837
      %v5863 = vcombine.low %v5812, %v5844
      %v5864 = vcombine.high %v5812, %v5844
      %v5865 = vcombine.low %v5821, %v5853
      %v5866 = vcombine.high %v5821, %v5853
      %v5867 = vcombine.low %v5828, %v5860
      %v5868 = vcombine.high %v5828, %v5860
      %5870 = vrot.lane.b32.xlu0 %v5726, 32
      %v5871 = vpop.permute.xlu0 %5870
      %5874 = vrot.lane.b32.xlu0 %v5727, 64
      %v5875 = vpop.permute.xlu0 %5874
      %5878 = vrot.lane.b32.xlu0 %v5728, 96
      %v5879 = vpop.permute.xlu0 %5878
      %5882 = vrot.lane.b32.xlu0 %v5730, 32
      %v5883 = vpop.permute.xlu0 %5882
      %5886 = vrot.lane.b32.xlu0 %v5731, 64
      %v5887 = vpop.permute.xlu0 %5886
      %5890 = vrot.lane.b32.xlu0 %v5732, 96
      %v5891 = vpop.permute.xlu0 %5890
      %5894 = vrot.lane.b32.xlu0 %v5862, 32
      %v5895 = vpop.permute.xlu0 %5894
      %5898 = vrot.lane.b32.xlu0 %v5863, 64
      %v5899 = vpop.permute.xlu0 %5898
      %5902 = vrot.lane.b32.xlu0 %v5864, 96
      %v5903 = vpop.permute.xlu0 %5902
      %5906 = vrot.lane.b32.xlu0 %v5866, 32
      %v5907 = vpop.permute.xlu0 %5906
      %5910 = vrot.lane.b32.xlu0 %v5867, 64
      %v5911 = vpop.permute.xlu0 %5910
      %5914 = vrot.lane.b32.xlu0 %v5868, 96
      %v5915 = vpop.permute.xlu0 %5914
      %v5917 = vsel %vm4633, %v5725, %v5871
      %v5918 = vsel %vm4635, %v5917, %v5875
      %v5919 = vsel %vm4637, %v5918, %v5879
      %v5920 = vsel %vm4633, %v5729, %v5883
      %v5921 = vsel %vm4635, %v5920, %v5887
      %v5922 = vsel %vm4637, %v5921, %v5891
      %v5923 = vsel %vm4633, %v5861, %v5895
      %v5924 = vsel %vm4635, %v5923, %v5899
      %v5925 = vsel %vm4637, %v5924, %v5903
      %v5926 = vsel %vm4633, %v5865, %v5907
      %v5927 = vsel %vm4635, %v5926, %v5911
      %v5928 = vsel %vm4637, %v5927, %v5915
      %5929 = vst [vmem:[%s252 + $0x20] sm:$0xff] %v5919
      %5930 = vst [vmem:[%s252 + $0x28] sm:$0xff] %v5922
      %5931 = vst [vmem:[%s252 + $0x30] sm:$0xff] %v5925
      %5932 = vst [vmem:[%s252 + $0x38] sm:$0xff] %v5928
      %5949 = vrot.lane.b32.xlu0 %v5421, 96
      %v5950 = vpop.permute.xlu0 %5949
      %5951 = vrot.lane.b32.xlu0 %v5422, 96
      %v5952 = vpop.permute.xlu0 %5951
      %5953 = vrot.lane.b32.xlu0 %v5423, 96
      %v5954 = vpop.permute.xlu0 %5953
      %5955 = vrot.lane.b32.xlu0 %v5424, 96
      %v5956 = vpop.permute.xlu0 %5955
      %5957 = vrot.lane.b32.xlu0 %v5425, 96
      %v5958 = vpop.permute.xlu0 %5957
      %5959 = vrot.lane.b32.xlu0 %v5426, 96
      %v5960 = vpop.permute.xlu0 %5959
      %5961 = vrot.lane.b32.xlu0 %v5427, 96
      %v5962 = vpop.permute.xlu0 %5961
      %5963 = vrot.lane.b32.xlu0 %v5428, 96
      %v5964 = vpop.permute.xlu0 %5963
      %5965 = vrot.lane.b32.xlu0 %v5429, 96
      %v5966 = vpop.permute.xlu0 %5965
      %5967 = vrot.lane.b32.xlu0 %v5430, 96
      %v5968 = vpop.permute.xlu0 %5967
      %5969 = vrot.lane.b32.xlu0 %v5431, 96
      %v5970 = vpop.permute.xlu0 %5969
      %5971 = vrot.lane.b32.xlu0 %v5432, 96
      %v5972 = vpop.permute.xlu0 %5971
      %5973 = vrot.lane.b32.xlu0 %v5433, 96
      %v5974 = vpop.permute.xlu0 %5973
      %5975 = vrot.lane.b32.xlu0 %v5434, 96
      %v5976 = vpop.permute.xlu0 %5975
      %5977 = vrot.lane.b32.xlu0 %v5435, 96
      %v5978 = vpop.permute.xlu0 %5977
      %5979 = vrot.lane.b32.xlu0 %v5436, 96
      %v5980 = vpop.permute.xlu0 %5979
      %v5997 = vcombine.low %v5950, %v5958
      %v5998 = vcombine.high %v5950, %v5958
      %v6000 = vunpack.c.l.s4 1983009808
      %v6001 = vunpack.c.0.s8 %v6000
      %v6002 = vlaneseq
      %v6003 = vshrl.u32 %v6002, 7
      %v6004 = vsub.s32 %v6001, %v6003
      %v6005 = vrot.slane %v5997, %v6004
      %v6007 = vunpack.c.l.s4 1983009808
      %v6008 = vunpack.c.0.s8 %v6007
      %v6009 = vlaneseq
      %v6010 = vshrl.u32 %v6009, 7
      %v6011 = vsub.s32 %v6008, %v6010
      %v6012 = vrot.slane %v5998, %v6011
      %v6013 = vcombine.low %v5954, %v5962
      %v6014 = vcombine.high %v5954, %v5962
      %v6016 = vunpack.c.l.s4 1983009808
      %v6017 = vunpack.c.0.s8 %v6016
      %v6018 = vlaneseq
      %v6019 = vshrl.u32 %v6018, 7
      %v6020 = vsub.s32 %v6017, %v6019
      %v6021 = vrot.slane %v6013, %v6020
      %v6023 = vunpack.c.l.s4 1983009808
      %v6024 = vunpack.c.0.s8 %v6023
      %v6025 = vlaneseq
      %v6026 = vshrl.u32 %v6025, 7
      %v6027 = vsub.s32 %v6024, %v6026
      %v6028 = vrot.slane %v6014, %v6027
      %v6029 = vcombine.low %v5966, %v5974
      %v6030 = vcombine.high %v5966, %v5974
      %v6032 = vunpack.c.l.s4 1983009808
      %v6033 = vunpack.c.0.s8 %v6032
      %v6034 = vlaneseq
      %v6035 = vshrl.u32 %v6034, 7
      %v6036 = vsub.s32 %v6033, %v6035
      %v6037 = vrot.slane %v6029, %v6036
      %v6039 = vunpack.c.l.s4 1983009808
      %v6040 = vunpack.c.0.s8 %v6039
      %v6041 = vlaneseq
      %v6042 = vshrl.u32 %v6041, 7
      %v6043 = vsub.s32 %v6040, %v6042
      %v6044 = vrot.slane %v6030, %v6043
      %v6045 = vcombine.low %v5970, %v5978
      %v6046 = vcombine.high %v5970, %v5978
      %v6048 = vunpack.c.l.s4 1983009808
      %v6049 = vunpack.c.0.s8 %v6048
      %v6050 = vlaneseq
      %v6051 = vshrl.u32 %v6050, 7
      %v6052 = vsub.s32 %v6049, %v6051
      %v6053 = vrot.slane %v6045, %v6052
      %v6055 = vunpack.c.l.s4 1983009808
      %v6056 = vunpack.c.0.s8 %v6055
      %v6057 = vlaneseq
      %v6058 = vshrl.u32 %v6057, 7
      %v6059 = vsub.s32 %v6056, %v6058
      %v6060 = vrot.slane %v6046, %v6059
      %v6061 = vcombine.low %v6005, %v6021
      %v6062 = vcombine.high %v6005, %v6021
      %v6064 = vunpack.c.l.s4 1934713408
      %v6065 = vunpack.c.0.s8 %v6064
      %v6066 = vlaneseq
      %v6067 = vshrl.u32 %v6066, 7
      %v6068 = vsub.s32 %v6065, %v6067
      %v6069 = vrot.slane %v6061, %v6068
      %v6071 = vunpack.c.l.s4 1934713408
      %v6072 = vunpack.c.0.s8 %v6071
      %v6073 = vlaneseq
      %v6074 = vshrl.u32 %v6073, 7
      %v6075 = vsub.s32 %v6072, %v6074
      %v6076 = vrot.slane %v6062, %v6075
      %v6077 = vcombine.low %v6012, %v6028
      %v6078 = vcombine.high %v6012, %v6028
      %v6080 = vunpack.c.l.s4 1934713408
      %v6081 = vunpack.c.0.s8 %v6080
      %v6082 = vlaneseq
      %v6083 = vshrl.u32 %v6082, 7
      %v6084 = vsub.s32 %v6081, %v6083
      %v6085 = vrot.slane %v6077, %v6084
      %v6087 = vunpack.c.l.s4 1934713408
      %v6088 = vunpack.c.0.s8 %v6087
      %v6089 = vlaneseq
      %v6090 = vshrl.u32 %v6089, 7
      %v6091 = vsub.s32 %v6088, %v6090
      %v6092 = vrot.slane %v6078, %v6091
      %v6093 = vcombine.low %v6037, %v6053
      %v6094 = vcombine.high %v6037, %v6053
      %v6096 = vunpack.c.l.s4 1934713408
      %v6097 = vunpack.c.0.s8 %v6096
      %v6098 = vlaneseq
      %v6099 = vshrl.u32 %v6098, 7
      %v6100 = vsub.s32 %v6097, %v6099
      %v6101 = vrot.slane %v6093, %v6100
      %v6103 = vunpack.c.l.s4 1934713408
      %v6104 = vunpack.c.0.s8 %v6103
      %v6105 = vlaneseq
      %v6106 = vshrl.u32 %v6105, 7
      %v6107 = vsub.s32 %v6104, %v6106
      %v6108 = vrot.slane %v6094, %v6107
      %v6109 = vcombine.low %v6044, %v6060
      %v6110 = vcombine.high %v6044, %v6060
      %v6112 = vunpack.c.l.s4 1934713408
      %v6113 = vunpack.c.0.s8 %v6112
      %v6114 = vlaneseq
      %v6115 = vshrl.u32 %v6114, 7
      %v6116 = vsub.s32 %v6113, %v6115
      %v6117 = vrot.slane %v6109, %v6116
      %v6119 = vunpack.c.l.s4 1934713408
      %v6120 = vunpack.c.0.s8 %v6119
      %v6121 = vlaneseq
      %v6122 = vshrl.u32 %v6121, 7
      %v6123 = vsub.s32 %v6120, %v6122
      %v6124 = vrot.slane %v6110, %v6123
      %v6125 = vcombine.low %v6069, %v6101
      %v6126 = vcombine.high %v6069, %v6101
      %v6127 = vcombine.low %v6076, %v6108
      %v6128 = vcombine.high %v6076, %v6108
      %v6129 = vcombine.low %v6085, %v6117
      %v6130 = vcombine.high %v6085, %v6117
      %v6131 = vcombine.low %v6092, %v6124
      %v6132 = vcombine.high %v6092, %v6124
      %v6133 = vcombine.low %v5952, %v5960
      %v6134 = vcombine.high %v5952, %v5960
      %v6136 = vunpack.c.l.s4 1983009808
      %v6137 = vunpack.c.0.s8 %v6136
      %v6138 = vlaneseq
      %v6139 = vshrl.u32 %v6138, 7
      %v6140 = vsub.s32 %v6137, %v6139
      %v6141 = vrot.slane %v6133, %v6140
      %v6143 = vunpack.c.l.s4 1983009808
      %v6144 = vunpack.c.0.s8 %v6143
      %v6145 = vlaneseq
      %v6146 = vshrl.u32 %v6145, 7
      %v6147 = vsub.s32 %v6144, %v6146
      %v6148 = vrot.slane %v6134, %v6147
      %v6149 = vcombine.low %v5956, %v5964
      %v6150 = vcombine.high %v5956, %v5964
      %v6152 = vunpack.c.l.s4 1983009808
      %v6153 = vunpack.c.0.s8 %v6152
      %v6154 = vlaneseq
      %v6155 = vshrl.u32 %v6154, 7
      %v6156 = vsub.s32 %v6153, %v6155
      %v6157 = vrot.slane %v6149, %v6156
      %v6159 = vunpack.c.l.s4 1983009808
      %v6160 = vunpack.c.0.s8 %v6159
      %v6161 = vlaneseq
      %v6162 = vshrl.u32 %v6161, 7
      %v6163 = vsub.s32 %v6160, %v6162
      %v6164 = vrot.slane %v6150, %v6163
      %v6165 = vcombine.low %v5968, %v5976
      %v6166 = vcombine.high %v5968, %v5976
      %v6168 = vunpack.c.l.s4 1983009808
      %v6169 = vunpack.c.0.s8 %v6168
      %v6170 = vlaneseq
      %v6171 = vshrl.u32 %v6170, 7
      %v6172 = vsub.s32 %v6169, %v6171
      %v6173 = vrot.slane %v6165, %v6172
      %v6175 = vunpack.c.l.s4 1983009808
      %v6176 = vunpack.c.0.s8 %v6175
      %v6177 = vlaneseq
      %v6178 = vshrl.u32 %v6177, 7
      %v6179 = vsub.s32 %v6176, %v6178
      %v6180 = vrot.slane %v6166, %v6179
      %v6181 = vcombine.low %v5972, %v5980
      %v6182 = vcombine.high %v5972, %v5980
      %v6184 = vunpack.c.l.s4 1983009808
      %v6185 = vunpack.c.0.s8 %v6184
      %v6186 = vlaneseq
      %v6187 = vshrl.u32 %v6186, 7
      %v6188 = vsub.s32 %v6185, %v6187
      %v6189 = vrot.slane %v6181, %v6188
      %v6191 = vunpack.c.l.s4 1983009808
      %v6192 = vunpack.c.0.s8 %v6191
      %v6193 = vlaneseq
      %v6194 = vshrl.u32 %v6193, 7
      %v6195 = vsub.s32 %v6192, %v6194
      %v6196 = vrot.slane %v6182, %v6195
      %v6197 = vcombine.low %v6141, %v6157
      %v6198 = vcombine.high %v6141, %v6157
      %v6200 = vunpack.c.l.s4 1934713408
      %v6201 = vunpack.c.0.s8 %v6200
      %v6202 = vlaneseq
      %v6203 = vshrl.u32 %v6202, 7
      %v6204 = vsub.s32 %v6201, %v6203
      %v6205 = vrot.slane %v6197, %v6204
      %v6207 = vunpack.c.l.s4 1934713408
      %v6208 = vunpack.c.0.s8 %v6207
      %v6209 = vlaneseq
      %v6210 = vshrl.u32 %v6209, 7
      %v6211 = vsub.s32 %v6208, %v6210
      %v6212 = vrot.slane %v6198, %v6211
      %v6213 = vcombine.low %v6148, %v6164
      %v6214 = vcombine.high %v6148, %v6164
      %v6216 = vunpack.c.l.s4 1934713408
      %v6217 = vunpack.c.0.s8 %v6216
      %v6218 = vlaneseq
      %v6219 = vshrl.u32 %v6218, 7
      %v6220 = vsub.s32 %v6217, %v6219
      %v6221 = vrot.slane %v6213, %v6220
      %v6223 = vunpack.c.l.s4 1934713408
      %v6224 = vunpack.c.0.s8 %v6223
      %v6225 = vlaneseq
      %v6226 = vshrl.u32 %v6225, 7
      %v6227 = vsub.s32 %v6224, %v6226
      %v6228 = vrot.slane %v6214, %v6227
      %v6229 = vcombine.low %v6173, %v6189
      %v6230 = vcombine.high %v6173, %v6189
      %v6232 = vunpack.c.l.s4 1934713408
      %v6233 = vunpack.c.0.s8 %v6232
      %v6234 = vlaneseq
      %v6235 = vshrl.u32 %v6234, 7
      %v6236 = vsub.s32 %v6233, %v6235
      %v6237 = vrot.slane %v6229, %v6236
      %v6239 = vunpack.c.l.s4 1934713408
      %v6240 = vunpack.c.0.s8 %v6239
      %v6241 = vlaneseq
      %v6242 = vshrl.u32 %v6241, 7
      %v6243 = vsub.s32 %v6240, %v6242
      %v6244 = vrot.slane %v6230, %v6243
      %v6245 = vcombine.low %v6180, %v6196
      %v6246 = vcombine.high %v6180, %v6196
      %v6248 = vunpack.c.l.s4 1934713408
      %v6249 = vunpack.c.0.s8 %v6248
      %v6250 = vlaneseq
      %v6251 = vshrl.u32 %v6250, 7
      %v6252 = vsub.s32 %v6249, %v6251
      %v6253 = vrot.slane %v6245, %v6252
      %v6255 = vunpack.c.l.s4 1934713408
      %v6256 = vunpack.c.0.s8 %v6255
      %v6257 = vlaneseq
      %v6258 = vshrl.u32 %v6257, 7
      %v6259 = vsub.s32 %v6256, %v6258
      %v6260 = vrot.slane %v6246, %v6259
      %v6261 = vcombine.low %v6205, %v6237
      %v6262 = vcombine.high %v6205, %v6237
      %v6263 = vcombine.low %v6212, %v6244
      %v6264 = vcombine.high %v6212, %v6244
      %v6265 = vcombine.low %v6221, %v6253
      %v6266 = vcombine.high %v6221, %v6253
      %v6267 = vcombine.low %v6228, %v6260
      %v6268 = vcombine.high %v6228, %v6260
      %6270 = vrot.lane.b32.xlu0 %v6126, 32
      %v6271 = vpop.permute.xlu0 %6270
      %6274 = vrot.lane.b32.xlu0 %v6127, 64
      %v6275 = vpop.permute.xlu0 %6274
      %6278 = vrot.lane.b32.xlu0 %v6128, 96
      %v6279 = vpop.permute.xlu0 %6278
      %6282 = vrot.lane.b32.xlu0 %v6130, 32
      %v6283 = vpop.permute.xlu0 %6282
      %6286 = vrot.lane.b32.xlu0 %v6131, 64
      %v6287 = vpop.permute.xlu0 %6286
      %6290 = vrot.lane.b32.xlu0 %v6132, 96
      %v6291 = vpop.permute.xlu0 %6290
      %6294 = vrot.lane.b32.xlu0 %v6262, 32
      %v6295 = vpop.permute.xlu0 %6294
      %6298 = vrot.lane.b32.xlu0 %v6263, 64
      %v6299 = vpop.permute.xlu0 %6298
      %6302 = vrot.lane.b32.xlu0 %v6264, 96
      %v6303 = vpop.permute.xlu0 %6302
      %6306 = vrot.lane.b32.xlu0 %v6266, 32
      %v6307 = vpop.permute.xlu0 %6306
      %6310 = vrot.lane.b32.xlu0 %v6267, 64
      %v6311 = vpop.permute.xlu0 %6310
      %6314 = vrot.lane.b32.xlu0 %v6268, 96
      %v6315 = vpop.permute.xlu0 %6314
      %v6317 = vsel %vm4633, %v6125, %v6271
      %v6318 = vsel %vm4635, %v6317, %v6275
      %v6319 = vsel %vm4637, %v6318, %v6279
      %v6320 = vsel %vm4633, %v6129, %v6283
      %v6321 = vsel %vm4635, %v6320, %v6287
      %v6322 = vsel %vm4637, %v6321, %v6291
      %v6323 = vsel %vm4633, %v6261, %v6295
      %v6324 = vsel %vm4635, %v6323, %v6299
      %v6325 = vsel %vm4637, %v6324, %v6303
      %v6326 = vsel %vm4633, %v6265, %v6307
      %v6327 = vsel %vm4635, %v6326, %v6311
      %v6328 = vsel %vm4637, %v6327, %v6315
      %6329 = vst [vmem:[%s257 + $0x20] sm:$0xff] %v6319
      %6330 = vst [vmem:[%s257 + $0x28] sm:$0xff] %v6322
      %6331 = vst [vmem:[%s257 + $0x30] sm:$0xff] %v6325
      %6332 = vst [vmem:[%s257 + $0x38] sm:$0xff] %v6328
      %p6333 = scmp.lt.s32.totalorder %s17, 1
      %s6334 = scalar_select %p6333, %s17, 1
      %s6335 = smul.addr %s6334, 8
      %s6336 = smul.addr %s6335, 8
      %s6337 = scalar_lea.vmem %s4, %s6336
      %p6338 = scmp.lt.s32.totalorder %s17, 1
      %s6339 = scalar_select %p6338, %s17, 1
      %s6340 = smul.addr %s6339, 8
      %s6341 = smul.addr %s6340, 8
      %s6342 = scalar_lea.vmem %s5, %s6341
      // Predicated region
      $region37: #{generative_cell_forward.1} parent=35 // pred_check
        %p6343 = pneg %p129
      $region38: #{generative_cell_forward.1} parent=35 // pred_check_branch
        %6345 = sbr.rel (%p6343) target = $region40
      $region39: #{generative_cell_forward.1} parent=35 // pred_region
        _
      $region40: #{generative_cell_forward.1} parent=35 // pred_fallthru
        _
      // Predicated region
      $region41: #{generative_cell_forward.1} parent=35 // pred_check
        %p6346 = pneg %p155
      $region42: #{generative_cell_forward.1} parent=35 // pred_check_branch
        %6348 = sbr.rel (%p6346) target = $region44
      $region43: #{generative_cell_forward.1} parent=35 // pred_region
        _
      $region44: #{generative_cell_forward.1} parent=35 // pred_fallthru
        _
    $region36: #{generative_cell_forward.1} parent=5 // pred_fallthru
      _
    %p6349 = scmp.le.s32.totalorder 2, %s12
    // Predicated region
    $region45: #{generative_cell_forward.1} parent=5 // pred_check
      %p6350 = pneg %p6349
    $region46: #{generative_cell_forward.1} parent=5 // pred_check_branch
      %6352 = sbr.rel (%p6350) target = $region48
    $region47: #{generative_cell_forward.1} parent=5 // pred_region
      %s6353 = ssub.s32 %s12, 2
      // Predicated region
      $region49: #{generative_cell_forward.1} parent=47 // pred_check
        %p6354 = pneg %p135
      $region50: #{generative_cell_forward.1} parent=47 // pred_check_branch
        %6356 = sbr.rel (%p6354) target = $region52
      $region51: #{generative_cell_forward.1} parent=47 // pred_region
        %p6357 = scmp.lt.s32.totalorder %s18, 1
        %s6358 = scalar_select %p6357, %s18, 1
        %s6359 = smul.addr %s6358, 8
        %s6360 = smul.addr %s6359, 8
        %s6361 = scalar_lea.vmem %s4, %s6360
      $region52: #{generative_cell_forward.1} parent=47 // pred_fallthru
        _
      // Predicated region
      $region53: #{generative_cell_forward.1} parent=47 // pred_check
        %p6362 = pneg %p161
      $region54: #{generative_cell_forward.1} parent=47 // pred_check_branch
        %6364 = sbr.rel (%p6362) target = $region56
      $region55: #{generative_cell_forward.1} parent=47 // pred_region
        %p6365 = scmp.lt.s32.totalorder %s18, 1
        %s6366 = scalar_select %p6365, %s18, 1
        %s6367 = smul.addr %s6366, 8
        %s6368 = smul.addr %s6367, 8
        %s6369 = scalar_lea.vmem %s5, %s6368
      $region56: #{generative_cell_forward.1} parent=47 // pred_fallthru
        _
    $region48: #{generative_cell_forward.1} parent=5 // pred_fallthru
      _
  $region6: #{generative_cell_forward.1} parent=0 // loop_footer
    %s16 = sadd.s32 1, %s12
  $region7: #{generative_cell_forward.1} parent=0 // loop_footer_branch
    %11 = sbr.rel target = $region3
  $region8: #{generative_cell_forward.1} parent=0 // loop_exit
    _

</llo_original>
